<compile_context>
chip_gen: v7x
topology: tpu7x:2x2x1
jax: 0.10.0
libtpu: 0.0.40
codegen_flags: <defaults>
</compile_context>

<pallas_src>
from functools import partial

import jax
import jax.numpy as jnp
from jax.experimental import pallas as pl
from jax.experimental.pallas import tpu as pltpu

NEG_LARGE = -1e30
LANE = 128  # lane-dense padding for the I_knn / values outputs


def _gln_kernel(top_k,
                student_ref, teacher_t_ref, adj_ref, onehot_ref, onehot_t_ref,
                iknn_ref, vals_ref):
    block_rows = student_ref.shape[0]
    n = teacher_t_ref.shape[1]
    r0 = pl.program_id(0) * block_rows

    # similarity block = student_rows @ teacher.T + 10 on the *global* diagonal
    # (f32 matmul kept: D is tiny and f32 preserves reference top-k ordering)
    sim = jnp.dot(student_ref[...], teacher_t_ref[...],
                  preferred_element_type=jnp.float32)
    row_ids = jax.lax.broadcasted_iota(jnp.int32, (block_rows, n), 0) + r0
    col_ids = jax.lax.broadcasted_iota(jnp.int32, (block_rows, n), 1)
    sim = sim + jnp.where(row_ids == col_ids,
                          jnp.float32(10.0), jnp.float32(0.0))

    # same-cluster indicator on the MXU (bf16 inputs, exact for 0/1 values):
    # counts[i, j] = #clusterings where labels agree; same = counts > 0
    counts = jnp.dot(onehot_ref[...], onehot_t_ref[...],
                     preferred_element_type=jnp.float32)
    # pos graph values = adj + same  (locality + globality), values in {0,1,2}
    posv = adj_ref[...].astype(jnp.float32) + (counts > 0.0).astype(jnp.float32)

    # iterative row-wise top-k (k small & static) -> KNN indices + pos values
    # at the selected columns (no dense mask / dense pos writeback needed)
    work = sim
    colk = jax.lax.broadcasted_iota(jnp.int32, (block_rows, LANE), 1)
    iknn = jnp.zeros((block_rows, LANE), jnp.int32)
    vals = jnp.zeros((block_rows, LANE), jnp.float32)
    for t in range(top_k):
        m = jnp.max(work, axis=1, keepdims=True)
        is_max = work == m
        # first occurrence of the max (stable tie-break, matches torch.topk)
        idx = jnp.min(jnp.where(is_max, col_ids, n), axis=1, keepdims=True)
        hit = col_ids == idx
        v = jnp.sum(jnp.where(hit, posv, jnp.float32(0.0)),
                    axis=1, keepdims=True)
        work = jnp.where(hit, jnp.float32(NEG_LARGE), work)
        lane_t = colk == t
        iknn = jnp.where(lane_t, idx, iknn)
        vals = jnp.where(lane_t, v, vals)

    iknn_ref[...] = iknn
    vals_ref[...] = vals


def _pick_block_rows(n, d, ck, vmem_budget=40 << 20, max_rows=512):
    """VMEM-budget-aware row tile: multiple of 8, prefers an even #blocks >= 2."""
    resident = d * n * 4 + ck * n * 2                    # teacher.T f32 + onehot.T bf16
    per_row = (2 * n * 2                                 # adj block (bf16, 2 buffers)
               + 2 * d * 4                               # student block (f32, 2 buffers)
               + 2 * ck * 2                              # onehot block (bf16, 2 buffers)
               + 4 * LANE * 8                            # iknn/vals outputs (2 buffers ea)
               + 6 * n * 4)                              # sim/work/posv/counts/iotas temps
    budget = max(vmem_budget - resident, per_row * 8)
    cap = int(min(max_rows, max(8, (budget // per_row) // 8 * 8), n))
    cands = [r for r in range(8, cap + 1, 8) if n % r == 0]
    if not cands:
        return n  # fallback: single block (disables 2-TC sharding, still correct)
    even = [r for r in cands if n // r >= 2 and (n // r) % 2 == 0]
    if even:
        return max(even)
    multi = [r for r in cands if n // r >= 2]
    return max(multi) if multi else max(cands)


def _spec(block_shape, index_map, single_buffer=False):
    if single_buffer:
        try:
            return pl.BlockSpec(block_shape, index_map,
                                pipeline_mode=pl.Buffered(1))
        except (AttributeError, TypeError):
            pass  # this jax version lacks pipeline_mode / Buffered
    return pl.BlockSpec(block_shape, index_map)


def gln_pallas_call(student, teacher, adj, onehot, top_k, block_rows=None):
    N, D = student.shape
    CK = onehot.shape[1]
    assert top_k <= LANE
    if block_rows is None:
        block_rows = _pick_block_rows(N, D, CK)

    teacher_t = teacher.T                                   # f32 (exact top-k)
    adj_bf16 = adj.astype(jnp.bfloat16)                     # 0/1 -> exact in bf16
    onehot_bf16 = onehot.astype(jnp.bfloat16)                # 0/1 -> exact in bf16
    onehot_t = onehot_bf16.T
    grid = (N // block_rows,)

    kernel = partial(_gln_kernel, top_k)
    out_shapes = (
        jax.ShapeDtypeStruct((N, LANE), jnp.int32),    # I_knn (lane-dense padded)
        jax.ShapeDtypeStruct((N, LANE), jnp.float32),  # pos values at KNN positions
    )
    cost = pl.CostEstimate(
        flops=int(2 * N * N * (D + CK) + 6 * top_k * N * N),
        transcendentals=0,
        bytes_accessed=int(N * N * 2 + 2 * N * D * 4 + 2 * N * CK * 2
                           + N * LANE * 8),
    )

    def _call(single_buffer):
        return pl.pallas_call(
            kernel,
            out_shape=out_shapes,
            grid=grid,
            in_specs=[
                _spec((block_rows, D), lambda i: (i, 0)),                  # student rows (f32)
                _spec((D, N), lambda i: (0, 0), single_buffer),            # teacher.T (resident)
                _spec((block_rows, N), lambda i: (i, 0)),                  # adj rows (bf16)
                _spec((block_rows, CK), lambda i: (i, 0)),                 # one-hot rows (bf16)
                _spec((CK, N), lambda i: (0, 0), single_buffer),           # one-hot.T (resident)
            ],
            out_specs=(
                _spec((block_rows, LANE), lambda i: (i, 0)),
                _spec((block_rows, LANE), lambda i: (i, 0)),
            ),
            compiler_params=pltpu.CompilerParams(
                dimension_semantics=("parallel",),
                vmem_limit_bytes=64 << 20),
            cost_estimate=cost,
        )(student, teacher_t, adj_bf16, onehot_bf16, onehot_t)

    try:
        iknn_pad, vals_pad = _call(True)
    except Exception:
        # fallback: pipeline_mode=pl.Buffered(1) rejected by this jax build
        iknn_pad, vals_pad = _call(False)
    return iknn_pad[:, :top_k], vals_pad[:, :top_k]


def batched_kmeans_labels(x, k, seeds, iters=10):
    # TODO(synk): sklearn KMeans (kmeans++ init / convergence criterion) has no
    # clean Pallas equivalent; deterministic fixed-iteration Lloyd's, vmapped
    # over all clustering seeds.  Distances via ||c||^2 - 2*x@c.T (MXU) instead
    # of the broadcasted N*K*D intermediate.
    n = x.shape[0]

    def one(seed):
        key = jax.random.PRNGKey(seed)
        init_idx = jax.random.choice(key, n, (k,), replace=False)
        cent0 = x[init_idx]

        def assign(cent):
            xc = jnp.dot(x, cent.T, preferred_element_type=jnp.float32)
            cn = jnp.sum(cent * cent, axis=1)
            return jnp.argmin(cn[None, :] - 2.0 * xc, axis=1)

        def body(_, cent):
            lab = assign(cent)
            onehot = jax.nn.one_hot(lab, k, dtype=x.dtype)
            counts = onehot.sum(axis=0)
            new_cent = (onehot.T @ x) / jnp.maximum(counts[:, None], 1.0)
            return jnp.where(counts[:, None] > 0, new_cent, cent)

        cent = jax.lax.fori_loop(0, iters, body, cent0)
        return assign(cent).astype(jnp.int32)

    return jax.vmap(one)(seeds)


class GLNSamplerPallas:
    def __init__(self, num_centroids: int):
        self.num_centroids = num_centroids
        self.num_clusterings = 5

    def forward(self, adj, student, teacher, top_k, rng_key):
        n_data, _ = student.shape
        # 5 clusterings of the teacher representation (seeds 3407..3411), batched
        seeds = jnp.arange(self.num_clusterings, dtype=jnp.int32) + 3407
        cluster_labels = batched_kmeans_labels(teacher, self.num_centroids, seeds)

        # pack labels into a [N, C*K] one-hot matrix so the kernel can test
        # same-cluster membership with a single (bf16) MXU matmul.
        onehot = jax.nn.one_hot(cluster_labels, self.num_centroids,
                                dtype=jnp.float32)                     # [C, N, K]
        onehot = jnp.transpose(onehot, (1, 0, 2)).reshape(n_data, -1)  # [N, C*K]

        iknn, pos_vals = gln_pallas_call(student, teacher, adj, onehot, top_k)

        # torch-sparse semantics: locality keeps explicit zeros at every KNN
        # position, so pos_.coalesce() indices == all KNN positions, row-major
        # with columns ascending within a row.  Permute the per-row values the
        # same way so (indices, values) is exactly the coalesced COO of pos_.
        order = jnp.argsort(iknn, axis=1)
        positive = jnp.take_along_axis(iknn, order, axis=1).reshape(-1).astype(jnp.int32)
        anchor = jnp.repeat(jnp.arange(n_data, dtype=jnp.int32), top_k)
        self.pos_indices = jnp.stack([anchor, positive])               # COO indices of pos_
        self.pos_values = jnp.take_along_axis(pos_vals, order, axis=1).reshape(-1)

        # reference uses python random.choices -> uniform ints in [0, n_data)
        negative = jax.random.randint(rng_key, (anchor.shape[0],), 0, n_data,
                                      dtype=jnp.int32)
        return anchor, positive, negative


if __name__ == "__main__":
    key = jax.random.PRNGKey(0)
    k1, k2, k3, k4 = jax.random.split(key, 4)

    N, D, TOP_K, NUM_CENTROIDS = 64, 32, 8, 4
    student = jax.random.normal(k1, (N, D), jnp.float32)
    teacher = jax.random.normal(k2, (N, D), jnp.float32)
    adj = (jax.random.uniform(k3, (N, N)) < 0.1).astype(jnp.float32)
    adj = jnp.maximum(adj, adj.T)

    sampler = GLNSamplerPallas(num_centroids=NUM_CENTROIDS)
    anchor, positive, negative = sampler.forward(adj, student, teacher, TOP_K, k4)
    jax.block_until_ready((anchor, positive, negative, sampler.pos_values))

    assert anchor.shape == (N * TOP_K,)
    assert positive.shape == (N * TOP_K,)
    assert negative.shape == (N * TOP_K,)
    assert int(positive.min()) >= 0 and int(positive.max()) < N
    # pos graph values are adj + same-cluster indicator at KNN positions -> {0,1,2}
    assert float(sampler.pos_values.min()) >= 0.0
    assert float(sampler.pos_values.max()) <= 2.0
    print("KERNEL_OK")
</pallas_src>

<mosaic_0001>
module attributes {stable_mosaic.version = 11 : i64} {
  func.func @_gln_kernel(%arg0: i32, %arg1: memref<32x32xf32, #tpu.memory_space<vmem>>, %arg2: memref<32x64xf32, #tpu.memory_space<vmem>>, %arg3: memref<32x64xbf16, #tpu.memory_space<vmem>>, %arg4: memref<32x20xbf16, #tpu.memory_space<vmem>>, %arg5: memref<20x64xbf16, #tpu.memory_space<vmem>>, %arg6: memref<32x128xi32, #tpu.memory_space<vmem>>, %arg7: memref<32x128xf32, #tpu.memory_space<vmem>>) attributes {dimension_semantics = [#tpu.dimension_semantics<parallel>], iteration_bounds = array<i64: 2>, scalar_prefetch = 0 : i64, scratch_operands = 0 : i64, tpu.core_type = #tpu.core_type<tc>, window_params = [{transform_indices = @transform_0, window_bounds = array<i64: 32, 32>}, {pipeline_mode = #tpu.pipeline_mode<synchronous>, transform_indices = @transform_1, window_bounds = array<i64: 32, 64>}, {transform_indices = @transform_2, window_bounds = array<i64: 32, 64>}, {transform_indices = @transform_3, window_bounds = array<i64: 32, 20>}, {pipeline_mode = #tpu.pipeline_mode<synchronous>, transform_indices = @transform_4, window_bounds = array<i64: 20, 64>}, {transform_indices = @transform_5, window_bounds = array<i64: 32, 128>}, {transform_indices = @transform_6, window_bounds = array<i64: 32, 128>}]} {
    %c32_i32 = arith.constant 32 : i32
    %0 = arith.muli %arg0, %c32_i32 : i32
    %c0 = arith.constant 0 : index
    %c0_0 = arith.constant 0 : index
    %1 = vector.load %arg1[%c0, %c0_0] : memref<32x32xf32, #tpu.memory_space<vmem>>, vector<32x32xf32>
    %c0_1 = arith.constant 0 : index
    %c0_2 = arith.constant 0 : index
    %2 = vector.load %arg2[%c0_1, %c0_2] : memref<32x64xf32, #tpu.memory_space<vmem>>, vector<32x64xf32>
    %cst = arith.constant dense<0.000000e+00> : vector<32x64xf32>
    %3 = tpu.matmul %1, %2, %cst {dimension_numbers = #tpu.dot_dimension_numbers<[1], [0], [0], [1], [0, 0, 1, 1], [], []>} : vector<32x32xf32>, vector<32x64xf32>, vector<32x64xf32> -> vector<32x64xf32>
    %4 = tpu.iota {dimensions = array<i32: 0>} : vector<32x64xi32>
    %5 = vector.broadcast %0 : i32 to vector<32x64xi32>
    %6 = arith.addi %4, %5 : vector<32x64xi32>
    %7 = tpu.iota {dimensions = array<i32: 1>} : vector<32x64xi32>
    %8 = arith.cmpi eq, %6, %7 : vector<32x64xi32>
    %cst_3 = arith.constant 1.000000e+01 : f32
    %cst_4 = arith.constant 0.000000e+00 : f32
    %9 = vector.broadcast %cst_3 : f32 to vector<32x64xf32>
    %10 = vector.broadcast %cst_4 : f32 to vector<32x64xf32>
    %11 = arith.select %8, %9, %10 : vector<32x64xi1>, vector<32x64xf32>
    %12 = arith.addf %3, %11 : vector<32x64xf32>
    %c0_5 = arith.constant 0 : index
    %c0_6 = arith.constant 0 : index
    %13 = vector.load %arg4[%c0_5, %c0_6] : memref<32x20xbf16, #tpu.memory_space<vmem>>, vector<32x20xbf16>
    %c0_7 = arith.constant 0 : index
    %c0_8 = arith.constant 0 : index
    %14 = vector.load %arg5[%c0_7, %c0_8] : memref<20x64xbf16, #tpu.memory_space<vmem>>, vector<20x64xbf16>
    %cst_9 = arith.constant dense<0.000000e+00> : vector<32x64xf32>
    %15 = tpu.matmul %13, %14, %cst_9 {dimension_numbers = #tpu.dot_dimension_numbers<[1], [0], [0], [1], [0, 0, 1, 1], [], []>} : vector<32x20xbf16>, vector<20x64xbf16>, vector<32x64xf32> -> vector<32x64xf32>
    %c0_10 = arith.constant 0 : index
    %c0_11 = arith.constant 0 : index
    %16 = vector.load %arg3[%c0_10, %c0_11] : memref<32x64xbf16, #tpu.memory_space<vmem>>, vector<32x64xbf16>
    %17 = arith.extf %16 : vector<32x64xbf16> to vector<32x64xf32>
    %cst_12 = arith.constant 0.000000e+00 : f32
    %18 = vector.broadcast %cst_12 : f32 to vector<32x64xf32>
    %19 = arith.cmpf ogt, %15, %18 : vector<32x64xf32>
    %20 = arith.extui %19 : vector<32x64xi1> to vector<32x64xi32>
    %21 = arith.sitofp %20 : vector<32x64xi32> to vector<32x64xf32>
    %22 = arith.addf %17, %21 : vector<32x64xf32>
    %23 = tpu.iota {dimensions = array<i32: 1>} : vector<32x128xi32>
    %c0_i32 = arith.constant 0 : i32
    %24 = vector.broadcast %c0_i32 : i32 to vector<32x128xi32>
    %cst_13 = arith.constant 0.000000e+00 : f32
    %25 = vector.broadcast %cst_13 : f32 to vector<32x128xf32>
    %cst_14 = arith.constant dense<0xFF800000> : vector<32xf32>
    %26 = vector.multi_reduction <maximumf>, %12, %cst_14 [1] : vector<32x64xf32> to vector<32xf32>
    %27 = vector.shape_cast %26 : vector<32xf32> to vector<32x1xf32>
    %28 = vector.broadcast %27 : vector<32x1xf32> to vector<32x64xf32>
    %29 = arith.cmpf oeq, %12, %28 : vector<32x64xf32>
    %c64_i32 = arith.constant 64 : i32
    %30 = vector.broadcast %c64_i32 : i32 to vector<32x64xi32>
    %31 = arith.select %29, %7, %30 : vector<32x64xi1>, vector<32x64xi32>
    %cst_15 = arith.constant dense<2147483647> : vector<32xi32>
    %32 = vector.multi_reduction <minsi>, %31, %cst_15 [1] : vector<32x64xi32> to vector<32xi32>
    %33 = vector.shape_cast %32 : vector<32xi32> to vector<32x1xi32>
    %34 = vector.broadcast %33 : vector<32x1xi32> to vector<32x64xi32>
    %35 = arith.cmpi eq, %7, %34 : vector<32x64xi32>
    %cst_16 = arith.constant 0.000000e+00 : f32
    %36 = vector.broadcast %cst_16 : f32 to vector<32x64xf32>
    %37 = arith.select %35, %22, %36 : vector<32x64xi1>, vector<32x64xf32>
    %cst_17 = arith.constant dense<0.000000e+00> : vector<32xf32>
    %38 = vector.multi_reduction <add>, %37, %cst_17 [1] : vector<32x64xf32> to vector<32xf32>
    %39 = vector.shape_cast %38 : vector<32xf32> to vector<32x1xf32>
    %cst_18 = arith.constant -1.000000e+30 : f32
    %40 = vector.broadcast %cst_18 : f32 to vector<32x64xf32>
    %41 = arith.select %35, %40, %12 : vector<32x64xi1>, vector<32x64xf32>
    %c0_i32_19 = arith.constant 0 : i32
    %42 = vector.broadcast %c0_i32_19 : i32 to vector<32x128xi32>
    %43 = arith.cmpi eq, %23, %42 : vector<32x128xi32>
    %44 = vector.shape_cast %33 : vector<32x1xi32> to vector<32x1xi32>
    %45 = vector.broadcast %44 : vector<32x1xi32> to vector<32x128xi32>
    %46 = arith.select %43, %45, %24 : vector<32x128xi1>, vector<32x128xi32>
    %47 = vector.shape_cast %39 : vector<32x1xf32> to vector<32x1xf32>
    %48 = vector.broadcast %47 : vector<32x1xf32> to vector<32x128xf32>
    %49 = arith.select %43, %48, %25 : vector<32x128xi1>, vector<32x128xf32>
    %cst_20 = arith.constant dense<0xFF800000> : vector<32xf32>
    %50 = vector.multi_reduction <maximumf>, %41, %cst_20 [1] : vector<32x64xf32> to vector<32xf32>
    %51 = vector.shape_cast %50 : vector<32xf32> to vector<32x1xf32>
    %52 = vector.broadcast %51 : vector<32x1xf32> to vector<32x64xf32>
    %53 = arith.cmpf oeq, %41, %52 : vector<32x64xf32>
    %c64_i32_21 = arith.constant 64 : i32
    %54 = vector.broadcast %c64_i32_21 : i32 to vector<32x64xi32>
    %55 = arith.select %53, %7, %54 : vector<32x64xi1>, vector<32x64xi32>
    %cst_22 = arith.constant dense<2147483647> : vector<32xi32>
    %56 = vector.multi_reduction <minsi>, %55, %cst_22 [1] : vector<32x64xi32> to vector<32xi32>
    %57 = vector.shape_cast %56 : vector<32xi32> to vector<32x1xi32>
    %58 = vector.broadcast %57 : vector<32x1xi32> to vector<32x64xi32>
    %59 = arith.cmpi eq, %7, %58 : vector<32x64xi32>
    %cst_23 = arith.constant 0.000000e+00 : f32
    %60 = vector.broadcast %cst_23 : f32 to vector<32x64xf32>
    %61 = arith.select %59, %22, %60 : vector<32x64xi1>, vector<32x64xf32>
    %cst_24 = arith.constant dense<0.000000e+00> : vector<32xf32>
    %62 = vector.multi_reduction <add>, %61, %cst_24 [1] : vector<32x64xf32> to vector<32xf32>
    %63 = vector.shape_cast %62 : vector<32xf32> to vector<32x1xf32>
    %cst_25 = arith.constant -1.000000e+30 : f32
    %64 = vector.broadcast %cst_25 : f32 to vector<32x64xf32>
    %65 = arith.select %59, %64, %41 : vector<32x64xi1>, vector<32x64xf32>
    %c1_i32 = arith.constant 1 : i32
    %66 = vector.broadcast %c1_i32 : i32 to vector<32x128xi32>
    %67 = arith.cmpi eq, %23, %66 : vector<32x128xi32>
    %68 = vector.shape_cast %57 : vector<32x1xi32> to vector<32x1xi32>
    %69 = vector.broadcast %68 : vector<32x1xi32> to vector<32x128xi32>
    %70 = arith.select %67, %69, %46 : vector<32x128xi1>, vector<32x128xi32>
    %71 = vector.shape_cast %63 : vector<32x1xf32> to vector<32x1xf32>
    %72 = vector.broadcast %71 : vector<32x1xf32> to vector<32x128xf32>
    %73 = arith.select %67, %72, %49 : vector<32x128xi1>, vector<32x128xf32>
    %cst_26 = arith.constant dense<0xFF800000> : vector<32xf32>
    %74 = vector.multi_reduction <maximumf>, %65, %cst_26 [1] : vector<32x64xf32> to vector<32xf32>
    %75 = vector.shape_cast %74 : vector<32xf32> to vector<32x1xf32>
    %76 = vector.broadcast %75 : vector<32x1xf32> to vector<32x64xf32>
    %77 = arith.cmpf oeq, %65, %76 : vector<32x64xf32>
    %c64_i32_27 = arith.constant 64 : i32
    %78 = vector.broadcast %c64_i32_27 : i32 to vector<32x64xi32>
    %79 = arith.select %77, %7, %78 : vector<32x64xi1>, vector<32x64xi32>
    %cst_28 = arith.constant dense<2147483647> : vector<32xi32>
    %80 = vector.multi_reduction <minsi>, %79, %cst_28 [1] : vector<32x64xi32> to vector<32xi32>
    %81 = vector.shape_cast %80 : vector<32xi32> to vector<32x1xi32>
    %82 = vector.broadcast %81 : vector<32x1xi32> to vector<32x64xi32>
    %83 = arith.cmpi eq, %7, %82 : vector<32x64xi32>
    %cst_29 = arith.constant 0.000000e+00 : f32
    %84 = vector.broadcast %cst_29 : f32 to vector<32x64xf32>
    %85 = arith.select %83, %22, %84 : vector<32x64xi1>, vector<32x64xf32>
    %cst_30 = arith.constant dense<0.000000e+00> : vector<32xf32>
    %86 = vector.multi_reduction <add>, %85, %cst_30 [1] : vector<32x64xf32> to vector<32xf32>
    %87 = vector.shape_cast %86 : vector<32xf32> to vector<32x1xf32>
    %cst_31 = arith.constant -1.000000e+30 : f32
    %88 = vector.broadcast %cst_31 : f32 to vector<32x64xf32>
    %89 = arith.select %83, %88, %65 : vector<32x64xi1>, vector<32x64xf32>
    %c2_i32 = arith.constant 2 : i32
    %90 = vector.broadcast %c2_i32 : i32 to vector<32x128xi32>
    %91 = arith.cmpi eq, %23, %90 : vector<32x128xi32>
    %92 = vector.shape_cast %81 : vector<32x1xi32> to vector<32x1xi32>
    %93 = vector.broadcast %92 : vector<32x1xi32> to vector<32x128xi32>
    %94 = arith.select %91, %93, %70 : vector<32x128xi1>, vector<32x128xi32>
    %95 = vector.shape_cast %87 : vector<32x1xf32> to vector<32x1xf32>
    %96 = vector.broadcast %95 : vector<32x1xf32> to vector<32x128xf32>
    %97 = arith.select %91, %96, %73 : vector<32x128xi1>, vector<32x128xf32>
    %cst_32 = arith.constant dense<0xFF800000> : vector<32xf32>
    %98 = vector.multi_reduction <maximumf>, %89, %cst_32 [1] : vector<32x64xf32> to vector<32xf32>
    %99 = vector.shape_cast %98 : vector<32xf32> to vector<32x1xf32>
    %100 = vector.broadcast %99 : vector<32x1xf32> to vector<32x64xf32>
    %101 = arith.cmpf oeq, %89, %100 : vector<32x64xf32>
    %c64_i32_33 = arith.constant 64 : i32
    %102 = vector.broadcast %c64_i32_33 : i32 to vector<32x64xi32>
    %103 = arith.select %101, %7, %102 : vector<32x64xi1>, vector<32x64xi32>
    %cst_34 = arith.constant dense<2147483647> : vector<32xi32>
    %104 = vector.multi_reduction <minsi>, %103, %cst_34 [1] : vector<32x64xi32> to vector<32xi32>
    %105 = vector.shape_cast %104 : vector<32xi32> to vector<32x1xi32>
    %106 = vector.broadcast %105 : vector<32x1xi32> to vector<32x64xi32>
    %107 = arith.cmpi eq, %7, %106 : vector<32x64xi32>
    %cst_35 = arith.constant 0.000000e+00 : f32
    %108 = vector.broadcast %cst_35 : f32 to vector<32x64xf32>
    %109 = arith.select %107, %22, %108 : vector<32x64xi1>, vector<32x64xf32>
    %cst_36 = arith.constant dense<0.000000e+00> : vector<32xf32>
    %110 = vector.multi_reduction <add>, %109, %cst_36 [1] : vector<32x64xf32> to vector<32xf32>
    %111 = vector.shape_cast %110 : vector<32xf32> to vector<32x1xf32>
    %cst_37 = arith.constant -1.000000e+30 : f32
    %112 = vector.broadcast %cst_37 : f32 to vector<32x64xf32>
    %113 = arith.select %107, %112, %89 : vector<32x64xi1>, vector<32x64xf32>
    %c3_i32 = arith.constant 3 : i32
    %114 = vector.broadcast %c3_i32 : i32 to vector<32x128xi32>
    %115 = arith.cmpi eq, %23, %114 : vector<32x128xi32>
    %116 = vector.shape_cast %105 : vector<32x1xi32> to vector<32x1xi32>
    %117 = vector.broadcast %116 : vector<32x1xi32> to vector<32x128xi32>
    %118 = arith.select %115, %117, %94 : vector<32x128xi1>, vector<32x128xi32>
    %119 = vector.shape_cast %111 : vector<32x1xf32> to vector<32x1xf32>
    %120 = vector.broadcast %119 : vector<32x1xf32> to vector<32x128xf32>
    %121 = arith.select %115, %120, %97 : vector<32x128xi1>, vector<32x128xf32>
    %cst_38 = arith.constant dense<0xFF800000> : vector<32xf32>
    %122 = vector.multi_reduction <maximumf>, %113, %cst_38 [1] : vector<32x64xf32> to vector<32xf32>
    %123 = vector.shape_cast %122 : vector<32xf32> to vector<32x1xf32>
    %124 = vector.broadcast %123 : vector<32x1xf32> to vector<32x64xf32>
    %125 = arith.cmpf oeq, %113, %124 : vector<32x64xf32>
    %c64_i32_39 = arith.constant 64 : i32
    %126 = vector.broadcast %c64_i32_39 : i32 to vector<32x64xi32>
    %127 = arith.select %125, %7, %126 : vector<32x64xi1>, vector<32x64xi32>
    %cst_40 = arith.constant dense<2147483647> : vector<32xi32>
    %128 = vector.multi_reduction <minsi>, %127, %cst_40 [1] : vector<32x64xi32> to vector<32xi32>
    %129 = vector.shape_cast %128 : vector<32xi32> to vector<32x1xi32>
    %130 = vector.broadcast %129 : vector<32x1xi32> to vector<32x64xi32>
    %131 = arith.cmpi eq, %7, %130 : vector<32x64xi32>
    %cst_41 = arith.constant 0.000000e+00 : f32
    %132 = vector.broadcast %cst_41 : f32 to vector<32x64xf32>
    %133 = arith.select %131, %22, %132 : vector<32x64xi1>, vector<32x64xf32>
    %cst_42 = arith.constant dense<0.000000e+00> : vector<32xf32>
    %134 = vector.multi_reduction <add>, %133, %cst_42 [1] : vector<32x64xf32> to vector<32xf32>
    %135 = vector.shape_cast %134 : vector<32xf32> to vector<32x1xf32>
    %cst_43 = arith.constant -1.000000e+30 : f32
    %136 = vector.broadcast %cst_43 : f32 to vector<32x64xf32>
    %137 = arith.select %131, %136, %113 : vector<32x64xi1>, vector<32x64xf32>
    %c4_i32 = arith.constant 4 : i32
    %138 = vector.broadcast %c4_i32 : i32 to vector<32x128xi32>
    %139 = arith.cmpi eq, %23, %138 : vector<32x128xi32>
    %140 = vector.shape_cast %129 : vector<32x1xi32> to vector<32x1xi32>
    %141 = vector.broadcast %140 : vector<32x1xi32> to vector<32x128xi32>
    %142 = arith.select %139, %141, %118 : vector<32x128xi1>, vector<32x128xi32>
    %143 = vector.shape_cast %135 : vector<32x1xf32> to vector<32x1xf32>
    %144 = vector.broadcast %143 : vector<32x1xf32> to vector<32x128xf32>
    %145 = arith.select %139, %144, %121 : vector<32x128xi1>, vector<32x128xf32>
    %cst_44 = arith.constant dense<0xFF800000> : vector<32xf32>
    %146 = vector.multi_reduction <maximumf>, %137, %cst_44 [1] : vector<32x64xf32> to vector<32xf32>
    %147 = vector.shape_cast %146 : vector<32xf32> to vector<32x1xf32>
    %148 = vector.broadcast %147 : vector<32x1xf32> to vector<32x64xf32>
    %149 = arith.cmpf oeq, %137, %148 : vector<32x64xf32>
    %c64_i32_45 = arith.constant 64 : i32
    %150 = vector.broadcast %c64_i32_45 : i32 to vector<32x64xi32>
    %151 = arith.select %149, %7, %150 : vector<32x64xi1>, vector<32x64xi32>
    %cst_46 = arith.constant dense<2147483647> : vector<32xi32>
    %152 = vector.multi_reduction <minsi>, %151, %cst_46 [1] : vector<32x64xi32> to vector<32xi32>
    %153 = vector.shape_cast %152 : vector<32xi32> to vector<32x1xi32>
    %154 = vector.broadcast %153 : vector<32x1xi32> to vector<32x64xi32>
    %155 = arith.cmpi eq, %7, %154 : vector<32x64xi32>
    %cst_47 = arith.constant 0.000000e+00 : f32
    %156 = vector.broadcast %cst_47 : f32 to vector<32x64xf32>
    %157 = arith.select %155, %22, %156 : vector<32x64xi1>, vector<32x64xf32>
    %cst_48 = arith.constant dense<0.000000e+00> : vector<32xf32>
    %158 = vector.multi_reduction <add>, %157, %cst_48 [1] : vector<32x64xf32> to vector<32xf32>
    %159 = vector.shape_cast %158 : vector<32xf32> to vector<32x1xf32>
    %cst_49 = arith.constant -1.000000e+30 : f32
    %160 = vector.broadcast %cst_49 : f32 to vector<32x64xf32>
    %161 = arith.select %155, %160, %137 : vector<32x64xi1>, vector<32x64xf32>
    %c5_i32 = arith.constant 5 : i32
    %162 = vector.broadcast %c5_i32 : i32 to vector<32x128xi32>
    %163 = arith.cmpi eq, %23, %162 : vector<32x128xi32>
    %164 = vector.shape_cast %153 : vector<32x1xi32> to vector<32x1xi32>
    %165 = vector.broadcast %164 : vector<32x1xi32> to vector<32x128xi32>
    %166 = arith.select %163, %165, %142 : vector<32x128xi1>, vector<32x128xi32>
    %167 = vector.shape_cast %159 : vector<32x1xf32> to vector<32x1xf32>
    %168 = vector.broadcast %167 : vector<32x1xf32> to vector<32x128xf32>
    %169 = arith.select %163, %168, %145 : vector<32x128xi1>, vector<32x128xf32>
    %cst_50 = arith.constant dense<0xFF800000> : vector<32xf32>
    %170 = vector.multi_reduction <maximumf>, %161, %cst_50 [1] : vector<32x64xf32> to vector<32xf32>
    %171 = vector.shape_cast %170 : vector<32xf32> to vector<32x1xf32>
    %172 = vector.broadcast %171 : vector<32x1xf32> to vector<32x64xf32>
    %173 = arith.cmpf oeq, %161, %172 : vector<32x64xf32>
    %c64_i32_51 = arith.constant 64 : i32
    %174 = vector.broadcast %c64_i32_51 : i32 to vector<32x64xi32>
    %175 = arith.select %173, %7, %174 : vector<32x64xi1>, vector<32x64xi32>
    %cst_52 = arith.constant dense<2147483647> : vector<32xi32>
    %176 = vector.multi_reduction <minsi>, %175, %cst_52 [1] : vector<32x64xi32> to vector<32xi32>
    %177 = vector.shape_cast %176 : vector<32xi32> to vector<32x1xi32>
    %178 = vector.broadcast %177 : vector<32x1xi32> to vector<32x64xi32>
    %179 = arith.cmpi eq, %7, %178 : vector<32x64xi32>
    %cst_53 = arith.constant 0.000000e+00 : f32
    %180 = vector.broadcast %cst_53 : f32 to vector<32x64xf32>
    %181 = arith.select %179, %22, %180 : vector<32x64xi1>, vector<32x64xf32>
    %cst_54 = arith.constant dense<0.000000e+00> : vector<32xf32>
    %182 = vector.multi_reduction <add>, %181, %cst_54 [1] : vector<32x64xf32> to vector<32xf32>
    %183 = vector.shape_cast %182 : vector<32xf32> to vector<32x1xf32>
    %cst_55 = arith.constant -1.000000e+30 : f32
    %184 = vector.broadcast %cst_55 : f32 to vector<32x64xf32>
    %185 = arith.select %179, %184, %161 : vector<32x64xi1>, vector<32x64xf32>
    %c6_i32 = arith.constant 6 : i32
    %186 = vector.broadcast %c6_i32 : i32 to vector<32x128xi32>
    %187 = arith.cmpi eq, %23, %186 : vector<32x128xi32>
    %188 = vector.shape_cast %177 : vector<32x1xi32> to vector<32x1xi32>
    %189 = vector.broadcast %188 : vector<32x1xi32> to vector<32x128xi32>
    %190 = arith.select %187, %189, %166 : vector<32x128xi1>, vector<32x128xi32>
    %191 = vector.shape_cast %183 : vector<32x1xf32> to vector<32x1xf32>
    %192 = vector.broadcast %191 : vector<32x1xf32> to vector<32x128xf32>
    %193 = arith.select %187, %192, %169 : vector<32x128xi1>, vector<32x128xf32>
    %cst_56 = arith.constant dense<0xFF800000> : vector<32xf32>
    %194 = vector.multi_reduction <maximumf>, %185, %cst_56 [1] : vector<32x64xf32> to vector<32xf32>
    %195 = vector.shape_cast %194 : vector<32xf32> to vector<32x1xf32>
    %196 = vector.broadcast %195 : vector<32x1xf32> to vector<32x64xf32>
    %197 = arith.cmpf oeq, %185, %196 : vector<32x64xf32>
    %c64_i32_57 = arith.constant 64 : i32
    %198 = vector.broadcast %c64_i32_57 : i32 to vector<32x64xi32>
    %199 = arith.select %197, %7, %198 : vector<32x64xi1>, vector<32x64xi32>
    %cst_58 = arith.constant dense<2147483647> : vector<32xi32>
    %200 = vector.multi_reduction <minsi>, %199, %cst_58 [1] : vector<32x64xi32> to vector<32xi32>
    %201 = vector.shape_cast %200 : vector<32xi32> to vector<32x1xi32>
    %202 = vector.broadcast %201 : vector<32x1xi32> to vector<32x64xi32>
    %203 = arith.cmpi eq, %7, %202 : vector<32x64xi32>
    %cst_59 = arith.constant 0.000000e+00 : f32
    %204 = vector.broadcast %cst_59 : f32 to vector<32x64xf32>
    %205 = arith.select %203, %22, %204 : vector<32x64xi1>, vector<32x64xf32>
    %cst_60 = arith.constant dense<0.000000e+00> : vector<32xf32>
    %206 = vector.multi_reduction <add>, %205, %cst_60 [1] : vector<32x64xf32> to vector<32xf32>
    %207 = vector.shape_cast %206 : vector<32xf32> to vector<32x1xf32>
    %c7_i32 = arith.constant 7 : i32
    %208 = vector.broadcast %c7_i32 : i32 to vector<32x128xi32>
    %209 = arith.cmpi eq, %23, %208 : vector<32x128xi32>
    %210 = vector.shape_cast %201 : vector<32x1xi32> to vector<32x1xi32>
    %211 = vector.broadcast %210 : vector<32x1xi32> to vector<32x128xi32>
    %212 = arith.select %209, %211, %190 : vector<32x128xi1>, vector<32x128xi32>
    %213 = vector.shape_cast %207 : vector<32x1xf32> to vector<32x1xf32>
    %214 = vector.broadcast %213 : vector<32x1xf32> to vector<32x128xf32>
    %215 = arith.select %209, %214, %193 : vector<32x128xi1>, vector<32x128xf32>
    %c0_61 = arith.constant 0 : index
    %c0_62 = arith.constant 0 : index
    %216 = vector.load %arg6[%c0_61, %c0_62] : memref<32x128xi32, #tpu.memory_space<vmem>>, vector<32x128xi32>
    tpu.vector_store %arg6[%c0_61, %c0_62], %212 {strides = array<i32>} : memref<32x128xi32, #tpu.memory_space<vmem>>, vector<32x128xi32>,
    %c0_63 = arith.constant 0 : index
    %c0_64 = arith.constant 0 : index
    %217 = vector.load %arg7[%c0_63, %c0_64] : memref<32x128xf32, #tpu.memory_space<vmem>>, vector<32x128xf32>
    tpu.vector_store %arg7[%c0_63, %c0_64], %215 {strides = array<i32>} : memref<32x128xf32, #tpu.memory_space<vmem>>, vector<32x128xf32>,
    return
  }
  func.func @transform_0(%arg0: i32) -> (i32, i32) {
    %c0_i32 = arith.constant 0 : i32
    %c0_i32_0 = arith.constant 0 : i32
    return %arg0, %c0_i32 : i32, i32
  }
  func.func @transform_1(%arg0: i32) -> (i32, i32) {
    %c0_i32 = arith.constant 0 : i32
    %c0_i32_0 = arith.constant 0 : i32
    %c0_i32_1 = arith.constant 0 : i32
    return %c0_i32, %c0_i32_0 : i32, i32
  }
  func.func @transform_2(%arg0: i32) -> (i32, i32) {
    %c0_i32 = arith.constant 0 : i32
    %c0_i32_0 = arith.constant 0 : i32
    return %arg0, %c0_i32 : i32, i32
  }
  func.func @transform_3(%arg0: i32) -> (i32, i32) {
    %c0_i32 = arith.constant 0 : i32
    %c0_i32_0 = arith.constant 0 : i32
    return %arg0, %c0_i32 : i32, i32
  }
  func.func @transform_4(%arg0: i32) -> (i32, i32) {
    %c0_i32 = arith.constant 0 : i32
    %c0_i32_0 = arith.constant 0 : i32
    %c0_i32_1 = arith.constant 0 : i32
    return %c0_i32, %c0_i32_0 : i32, i32
  }
  func.func @transform_5(%arg0: i32) -> (i32, i32) {
    %c0_i32 = arith.constant 0 : i32
    %c0_i32_0 = arith.constant 0 : i32
    return %arg0, %c0_i32 : i32, i32
  }
  func.func @transform_6(%arg0: i32) -> (i32, i32) {
    %c0_i32 = arith.constant 0 : i32
    %c0_i32_0 = arith.constant 0 : i32
    return %arg0, %c0_i32 : i32, i32
  }
}

module attributes {stable_mosaic.version = 11 : i64} {
  func.func @_gln_kernel(%arg0: i32, %arg1: memref<32x32xf32, #tpu.memory_space<vmem>>, %arg2: memref<32x64xf32, #tpu.memory_space<vmem>>, %arg3: memref<32x64xbf16, #tpu.memory_space<vmem>>, %arg4: memref<32x20xbf16, #tpu.memory_space<vmem>>, %arg5: memref<20x64xbf16, #tpu.memory_space<vmem>>, %arg6: memref<32x128xi32, #tpu.memory_space<vmem>>, %arg7: memref<32x128xf32, #tpu.memory_space<vmem>>) attributes {dimension_semantics = [#tpu.dimension_semantics<parallel>], iteration_bounds = array<i64: 2>, scalar_prefetch = 0 : i64, scratch_operands = 0 : i64, tpu.core_type = #tpu.core_type<tc>, window_params = [{transform_indices = @transform_0, window_bounds = array<i64: 32, 32>}, {pipeline_mode = #tpu.pipeline_mode<synchronous>, transform_indices = @transform_1, window_bounds = array<i64: 32, 64>}, {transform_indices = @transform_2, window_bounds = array<i64: 32, 64>}, {transform_indices = @transform_3, window_bounds = array<i64: 32, 20>}, {pipeline_mode = #tpu.pipeline_mode<synchronous>, transform_indices = @transform_4, window_bounds = array<i64: 20, 64>}, {transform_indices = @transform_5, window_bounds = array<i64: 32, 128>}, {transform_indices = @transform_6, window_bounds = array<i64: 32, 128>}]} {
    %c32_i32 = arith.constant 32 : i32
    %0 = arith.muli %arg0, %c32_i32 : i32
    %c0 = arith.constant 0 : index
    %c0_0 = arith.constant 0 : index
    %1 = vector.load %arg1[%c0, %c0_0] : memref<32x32xf32, #tpu.memory_space<vmem>>, vector<32x32xf32>
    %c0_1 = arith.constant 0 : index
    %c0_2 = arith.constant 0 : index
    %2 = vector.load %arg2[%c0_1, %c0_2] : memref<32x64xf32, #tpu.memory_space<vmem>>, vector<32x64xf32>
    %cst = arith.constant dense<0.000000e+00> : vector<32x64xf32>
    %3 = tpu.matmul %1, %2, %cst {dimension_numbers = #tpu.dot_dimension_numbers<[1], [0], [0], [1], [0, 0, 1, 1], [], []>} : vector<32x32xf32>, vector<32x64xf32>, vector<32x64xf32> -> vector<32x64xf32>
    %4 = tpu.iota {dimensions = array<i32: 0>} : vector<32x64xi32>
    %5 = vector.broadcast %0 : i32 to vector<32x64xi32>
    %6 = arith.addi %4, %5 : vector<32x64xi32>
    %7 = tpu.iota {dimensions = array<i32: 1>} : vector<32x64xi32>
    %8 = arith.cmpi eq, %6, %7 : vector<32x64xi32>
    %cst_3 = arith.constant 1.000000e+01 : f32
    %cst_4 = arith.constant 0.000000e+00 : f32
    %9 = vector.broadcast %cst_3 : f32 to vector<32x64xf32>
    %10 = vector.broadcast %cst_4 : f32 to vector<32x64xf32>
    %11 = arith.select %8, %9, %10 : vector<32x64xi1>, vector<32x64xf32>
    %12 = arith.addf %3, %11 : vector<32x64xf32>
    %c0_5 = arith.constant 0 : index
    %c0_6 = arith.constant 0 : index
    %13 = vector.load %arg4[%c0_5, %c0_6] : memref<32x20xbf16, #tpu.memory_space<vmem>>, vector<32x20xbf16>
    %c0_7 = arith.constant 0 : index
    %c0_8 = arith.constant 0 : index
    %14 = vector.load %arg5[%c0_7, %c0_8] : memref<20x64xbf16, #tpu.memory_space<vmem>>, vector<20x64xbf16>
    %cst_9 = arith.constant dense<0.000000e+00> : vector<32x64xf32>
    %15 = tpu.matmul %13, %14, %cst_9 {dimension_numbers = #tpu.dot_dimension_numbers<[1], [0], [0], [1], [0, 0, 1, 1], [], []>} : vector<32x20xbf16>, vector<20x64xbf16>, vector<32x64xf32> -> vector<32x64xf32>
    %c0_10 = arith.constant 0 : index
    %c0_11 = arith.constant 0 : index
    %16 = vector.load %arg3[%c0_10, %c0_11] : memref<32x64xbf16, #tpu.memory_space<vmem>>, vector<32x64xbf16>
    %17 = arith.extf %16 : vector<32x64xbf16> to vector<32x64xf32>
    %cst_12 = arith.constant 0.000000e+00 : f32
    %18 = vector.broadcast %cst_12 : f32 to vector<32x64xf32>
    %19 = arith.cmpf ogt, %15, %18 : vector<32x64xf32>
    %20 = arith.extui %19 : vector<32x64xi1> to vector<32x64xi32>
    %21 = arith.sitofp %20 : vector<32x64xi32> to vector<32x64xf32>
    %22 = arith.addf %17, %21 : vector<32x64xf32>
    %23 = tpu.iota {dimensions = array<i32: 1>} : vector<32x128xi32>
    %c0_i32 = arith.constant 0 : i32
    %24 = vector.broadcast %c0_i32 : i32 to vector<32x128xi32>
    %cst_13 = arith.constant 0.000000e+00 : f32
    %25 = vector.broadcast %cst_13 : f32 to vector<32x128xf32>
    %cst_14 = arith.constant dense<0xFF800000> : vector<32xf32>
    %26 = vector.multi_reduction <maximumf>, %12, %cst_14 [1] : vector<32x64xf32> to vector<32xf32>
    %27 = vector.shape_cast %26 : vector<32xf32> to vector<32x1xf32>
    %28 = vector.broadcast %27 : vector<32x1xf32> to vector<32x64xf32>
    %29 = arith.cmpf oeq, %12, %28 : vector<32x64xf32>
    %c64_i32 = arith.constant 64 : i32
    %30 = vector.broadcast %c64_i32 : i32 to vector<32x64xi32>
    %31 = arith.select %29, %7, %30 : vector<32x64xi1>, vector<32x64xi32>
    %cst_15 = arith.constant dense<2147483647> : vector<32xi32>
    %32 = vector.multi_reduction <minsi>, %31, %cst_15 [1] : vector<32x64xi32> to vector<32xi32>
    %33 = vector.shape_cast %32 : vector<32xi32> to vector<32x1xi32>
    %34 = vector.broadcast %33 : vector<32x1xi32> to vector<32x64xi32>
    %35 = arith.cmpi eq, %7, %34 : vector<32x64xi32>
    %cst_16 = arith.constant 0.000000e+00 : f32
    %36 = vector.broadcast %cst_16 : f32 to vector<32x64xf32>
    %37 = arith.select %35, %22, %36 : vector<32x64xi1>, vector<32x64xf32>
    %cst_17 = arith.constant dense<0.000000e+00> : vector<32xf32>
    %38 = vector.multi_reduction <add>, %37, %cst_17 [1] : vector<32x64xf32> to vector<32xf32>
    %39 = vector.shape_cast %38 : vector<32xf32> to vector<32x1xf32>
    %cst_18 = arith.constant -1.000000e+30 : f32
    %40 = vector.broadcast %cst_18 : f32 to vector<32x64xf32>
    %41 = arith.select %35, %40, %12 : vector<32x64xi1>, vector<32x64xf32>
    %c0_i32_19 = arith.constant 0 : i32
    %42 = vector.broadcast %c0_i32_19 : i32 to vector<32x128xi32>
    %43 = arith.cmpi eq, %23, %42 : vector<32x128xi32>
    %44 = vector.shape_cast %33 : vector<32x1xi32> to vector<32x1xi32>
    %45 = vector.broadcast %44 : vector<32x1xi32> to vector<32x128xi32>
    %46 = arith.select %43, %45, %24 : vector<32x128xi1>, vector<32x128xi32>
    %47 = vector.shape_cast %39 : vector<32x1xf32> to vector<32x1xf32>
    %48 = vector.broadcast %47 : vector<32x1xf32> to vector<32x128xf32>
    %49 = arith.select %43, %48, %25 : vector<32x128xi1>, vector<32x128xf32>
    %cst_20 = arith.constant dense<0xFF800000> : vector<32xf32>
    %50 = vector.multi_reduction <maximumf>, %41, %cst_20 [1] : vector<32x64xf32> to vector<32xf32>
    %51 = vector.shape_cast %50 : vector<32xf32> to vector<32x1xf32>
    %52 = vector.broadcast %51 : vector<32x1xf32> to vector<32x64xf32>
    %53 = arith.cmpf oeq, %41, %52 : vector<32x64xf32>
    %c64_i32_21 = arith.constant 64 : i32
    %54 = vector.broadcast %c64_i32_21 : i32 to vector<32x64xi32>
    %55 = arith.select %53, %7, %54 : vector<32x64xi1>, vector<32x64xi32>
    %cst_22 = arith.constant dense<2147483647> : vector<32xi32>
    %56 = vector.multi_reduction <minsi>, %55, %cst_22 [1] : vector<32x64xi32> to vector<32xi32>
    %57 = vector.shape_cast %56 : vector<32xi32> to vector<32x1xi32>
    %58 = vector.broadcast %57 : vector<32x1xi32> to vector<32x64xi32>
    %59 = arith.cmpi eq, %7, %58 : vector<32x64xi32>
    %cst_23 = arith.constant 0.000000e+00 : f32
    %60 = vector.broadcast %cst_23 : f32 to vector<32x64xf32>
    %61 = arith.select %59, %22, %60 : vector<32x64xi1>, vector<32x64xf32>
    %cst_24 = arith.constant dense<0.000000e+00> : vector<32xf32>
    %62 = vector.multi_reduction <add>, %61, %cst_24 [1] : vector<32x64xf32> to vector<32xf32>
    %63 = vector.shape_cast %62 : vector<32xf32> to vector<32x1xf32>
    %cst_25 = arith.constant -1.000000e+30 : f32
    %64 = vector.broadcast %cst_25 : f32 to vector<32x64xf32>
    %65 = arith.select %59, %64, %41 : vector<32x64xi1>, vector<32x64xf32>
    %c1_i32 = arith.constant 1 : i32
    %66 = vector.broadcast %c1_i32 : i32 to vector<32x128xi32>
    %67 = arith.cmpi eq, %23, %66 : vector<32x128xi32>
    %68 = vector.shape_cast %57 : vector<32x1xi32> to vector<32x1xi32>
    %69 = vector.broadcast %68 : vector<32x1xi32> to vector<32x128xi32>
    %70 = arith.select %67, %69, %46 : vector<32x128xi1>, vector<32x128xi32>
    %71 = vector.shape_cast %63 : vector<32x1xf32> to vector<32x1xf32>
    %72 = vector.broadcast %71 : vector<32x1xf32> to vector<32x128xf32>
    %73 = arith.select %67, %72, %49 : vector<32x128xi1>, vector<32x128xf32>
    %cst_26 = arith.constant dense<0xFF800000> : vector<32xf32>
    %74 = vector.multi_reduction <maximumf>, %65, %cst_26 [1] : vector<32x64xf32> to vector<32xf32>
    %75 = vector.shape_cast %74 : vector<32xf32> to vector<32x1xf32>
    %76 = vector.broadcast %75 : vector<32x1xf32> to vector<32x64xf32>
    %77 = arith.cmpf oeq, %65, %76 : vector<32x64xf32>
    %c64_i32_27 = arith.constant 64 : i32
    %78 = vector.broadcast %c64_i32_27 : i32 to vector<32x64xi32>
    %79 = arith.select %77, %7, %78 : vector<32x64xi1>, vector<32x64xi32>
    %cst_28 = arith.constant dense<2147483647> : vector<32xi32>
    %80 = vector.multi_reduction <minsi>, %79, %cst_28 [1] : vector<32x64xi32> to vector<32xi32>
    %81 = vector.shape_cast %80 : vector<32xi32> to vector<32x1xi32>
    %82 = vector.broadcast %81 : vector<32x1xi32> to vector<32x64xi32>
    %83 = arith.cmpi eq, %7, %82 : vector<32x64xi32>
    %cst_29 = arith.constant 0.000000e+00 : f32
    %84 = vector.broadcast %cst_29 : f32 to vector<32x64xf32>
    %85 = arith.select %83, %22, %84 : vector<32x64xi1>, vector<32x64xf32>
    %cst_30 = arith.constant dense<0.000000e+00> : vector<32xf32>
    %86 = vector.multi_reduction <add>, %85, %cst_30 [1] : vector<32x64xf32> to vector<32xf32>
    %87 = vector.shape_cast %86 : vector<32xf32> to vector<32x1xf32>
    %cst_31 = arith.constant -1.000000e+30 : f32
    %88 = vector.broadcast %cst_31 : f32 to vector<32x64xf32>
    %89 = arith.select %83, %88, %65 : vector<32x64xi1>, vector<32x64xf32>
    %c2_i32 = arith.constant 2 : i32
    %90 = vector.broadcast %c2_i32 : i32 to vector<32x128xi32>
    %91 = arith.cmpi eq, %23, %90 : vector<32x128xi32>
    %92 = vector.shape_cast %81 : vector<32x1xi32> to vector<32x1xi32>
    %93 = vector.broadcast %92 : vector<32x1xi32> to vector<32x128xi32>
    %94 = arith.select %91, %93, %70 : vector<32x128xi1>, vector<32x128xi32>
    %95 = vector.shape_cast %87 : vector<32x1xf32> to vector<32x1xf32>
    %96 = vector.broadcast %95 : vector<32x1xf32> to vector<32x128xf32>
    %97 = arith.select %91, %96, %73 : vector<32x128xi1>, vector<32x128xf32>
    %cst_32 = arith.constant dense<0xFF800000> : vector<32xf32>
    %98 = vector.multi_reduction <maximumf>, %89, %cst_32 [1] : vector<32x64xf32> to vector<32xf32>
    %99 = vector.shape_cast %98 : vector<32xf32> to vector<32x1xf32>
    %100 = vector.broadcast %99 : vector<32x1xf32> to vector<32x64xf32>
    %101 = arith.cmpf oeq, %89, %100 : vector<32x64xf32>
    %c64_i32_33 = arith.constant 64 : i32
    %102 = vector.broadcast %c64_i32_33 : i32 to vector<32x64xi32>
    %103 = arith.select %101, %7, %102 : vector<32x64xi1>, vector<32x64xi32>
    %cst_34 = arith.constant dense<2147483647> : vector<32xi32>
    %104 = vector.multi_reduction <minsi>, %103, %cst_34 [1] : vector<32x64xi32> to vector<32xi32>
    %105 = vector.shape_cast %104 : vector<32xi32> to vector<32x1xi32>
    %106 = vector.broadcast %105 : vector<32x1xi32> to vector<32x64xi32>
    %107 = arith.cmpi eq, %7, %106 : vector<32x64xi32>
    %cst_35 = arith.constant 0.000000e+00 : f32
    %108 = vector.broadcast %cst_35 : f32 to vector<32x64xf32>
    %109 = arith.select %107, %22, %108 : vector<32x64xi1>, vector<32x64xf32>
    %cst_36 = arith.constant dense<0.000000e+00> : vector<32xf32>
    %110 = vector.multi_reduction <add>, %109, %cst_36 [1] : vector<32x64xf32> to vector<32xf32>
    %111 = vector.shape_cast %110 : vector<32xf32> to vector<32x1xf32>
    %cst_37 = arith.constant -1.000000e+30 : f32
    %112 = vector.broadcast %cst_37 : f32 to vector<32x64xf32>
    %113 = arith.select %107, %112, %89 : vector<32x64xi1>, vector<32x64xf32>
    %c3_i32 = arith.constant 3 : i32
    %114 = vector.broadcast %c3_i32 : i32 to vector<32x128xi32>
    %115 = arith.cmpi eq, %23, %114 : vector<32x128xi32>
    %116 = vector.shape_cast %105 : vector<32x1xi32> to vector<32x1xi32>
    %117 = vector.broadcast %116 : vector<32x1xi32> to vector<32x128xi32>
    %118 = arith.select %115, %117, %94 : vector<32x128xi1>, vector<32x128xi32>
    %119 = vector.shape_cast %111 : vector<32x1xf32> to vector<32x1xf32>
    %120 = vector.broadcast %119 : vector<32x1xf32> to vector<32x128xf32>
    %121 = arith.select %115, %120, %97 : vector<32x128xi1>, vector<32x128xf32>
    %cst_38 = arith.constant dense<0xFF800000> : vector<32xf32>
    %122 = vector.multi_reduction <maximumf>, %113, %cst_38 [1] : vector<32x64xf32> to vector<32xf32>
    %123 = vector.shape_cast %122 : vector<32xf32> to vector<32x1xf32>
    %124 = vector.broadcast %123 : vector<32x1xf32> to vector<32x64xf32>
    %125 = arith.cmpf oeq, %113, %124 : vector<32x64xf32>
    %c64_i32_39 = arith.constant 64 : i32
    %126 = vector.broadcast %c64_i32_39 : i32 to vector<32x64xi32>
    %127 = arith.select %125, %7, %126 : vector<32x64xi1>, vector<32x64xi32>
    %cst_40 = arith.constant dense<2147483647> : vector<32xi32>
    %128 = vector.multi_reduction <minsi>, %127, %cst_40 [1] : vector<32x64xi32> to vector<32xi32>
    %129 = vector.shape_cast %128 : vector<32xi32> to vector<32x1xi32>
    %130 = vector.broadcast %129 : vector<32x1xi32> to vector<32x64xi32>
    %131 = arith.cmpi eq, %7, %130 : vector<32x64xi32>
    %cst_41 = arith.constant 0.000000e+00 : f32
    %132 = vector.broadcast %cst_41 : f32 to vector<32x64xf32>
    %133 = arith.select %131, %22, %132 : vector<32x64xi1>, vector<32x64xf32>
    %cst_42 = arith.constant dense<0.000000e+00> : vector<32xf32>
    %134 = vector.multi_reduction <add>, %133, %cst_42 [1] : vector<32x64xf32> to vector<32xf32>
    %135 = vector.shape_cast %134 : vector<32xf32> to vector<32x1xf32>
    %cst_43 = arith.constant -1.000000e+30 : f32
    %136 = vector.broadcast %cst_43 : f32 to vector<32x64xf32>
    %137 = arith.select %131, %136, %113 : vector<32x64xi1>, vector<32x64xf32>
    %c4_i32 = arith.constant 4 : i32
    %138 = vector.broadcast %c4_i32 : i32 to vector<32x128xi32>
    %139 = arith.cmpi eq, %23, %138 : vector<32x128xi32>
    %140 = vector.shape_cast %129 : vector<32x1xi32> to vector<32x1xi32>
    %141 = vector.broadcast %140 : vector<32x1xi32> to vector<32x128xi32>
    %142 = arith.select %139, %141, %118 : vector<32x128xi1>, vector<32x128xi32>
    %143 = vector.shape_cast %135 : vector<32x1xf32> to vector<32x1xf32>
    %144 = vector.broadcast %143 : vector<32x1xf32> to vector<32x128xf32>
    %145 = arith.select %139, %144, %121 : vector<32x128xi1>, vector<32x128xf32>
    %cst_44 = arith.constant dense<0xFF800000> : vector<32xf32>
    %146 = vector.multi_reduction <maximumf>, %137, %cst_44 [1] : vector<32x64xf32> to vector<32xf32>
    %147 = vector.shape_cast %146 : vector<32xf32> to vector<32x1xf32>
    %148 = vector.broadcast %147 : vector<32x1xf32> to vector<32x64xf32>
    %149 = arith.cmpf oeq, %137, %148 : vector<32x64xf32>
    %c64_i32_45 = arith.constant 64 : i32
    %150 = vector.broadcast %c64_i32_45 : i32 to vector<32x64xi32>
    %151 = arith.select %149, %7, %150 : vector<32x64xi1>, vector<32x64xi32>
    %cst_46 = arith.constant dense<2147483647> : vector<32xi32>
    %152 = vector.multi_reduction <minsi>, %151, %cst_46 [1] : vector<32x64xi32> to vector<32xi32>
    %153 = vector.shape_cast %152 : vector<32xi32> to vector<32x1xi32>
    %154 = vector.broadcast %153 : vector<32x1xi32> to vector<32x64xi32>
    %155 = arith.cmpi eq, %7, %154 : vector<32x64xi32>
    %cst_47 = arith.constant 0.000000e+00 : f32
    %156 = vector.broadcast %cst_47 : f32 to vector<32x64xf32>
    %157 = arith.select %155, %22, %156 : vector<32x64xi1>, vector<32x64xf32>
    %cst_48 = arith.constant dense<0.000000e+00> : vector<32xf32>
    %158 = vector.multi_reduction <add>, %157, %cst_48 [1] : vector<32x64xf32> to vector<32xf32>
    %159 = vector.shape_cast %158 : vector<32xf32> to vector<32x1xf32>
    %cst_49 = arith.constant -1.000000e+30 : f32
    %160 = vector.broadcast %cst_49 : f32 to vector<32x64xf32>
    %161 = arith.select %155, %160, %137 : vector<32x64xi1>, vector<32x64xf32>
    %c5_i32 = arith.constant 5 : i32
    %162 = vector.broadcast %c5_i32 : i32 to vector<32x128xi32>
    %163 = arith.cmpi eq, %23, %162 : vector<32x128xi32>
    %164 = vector.shape_cast %153 : vector<32x1xi32> to vector<32x1xi32>
    %165 = vector.broadcast %164 : vector<32x1xi32> to vector<32x128xi32>
    %166 = arith.select %163, %165, %142 : vector<32x128xi1>, vector<32x128xi32>
    %167 = vector.shape_cast %159 : vector<32x1xf32> to vector<32x1xf32>
    %168 = vector.broadcast %167 : vector<32x1xf32> to vector<32x128xf32>
    %169 = arith.select %163, %168, %145 : vector<32x128xi1>, vector<32x128xf32>
    %cst_50 = arith.constant dense<0xFF800000> : vector<32xf32>
    %170 = vector.multi_reduction <maximumf>, %161, %cst_50 [1] : vector<32x64xf32> to vector<32xf32>
    %171 = vector.shape_cast %170 : vector<32xf32> to vector<32x1xf32>
    %172 = vector.broadcast %171 : vector<32x1xf32> to vector<32x64xf32>
    %173 = arith.cmpf oeq, %161, %172 : vector<32x64xf32>
    %c64_i32_51 = arith.constant 64 : i32
    %174 = vector.broadcast %c64_i32_51 : i32 to vector<32x64xi32>
    %175 = arith.select %173, %7, %174 : vector<32x64xi1>, vector<32x64xi32>
    %cst_52 = arith.constant dense<2147483647> : vector<32xi32>
    %176 = vector.multi_reduction <minsi>, %175, %cst_52 [1] : vector<32x64xi32> to vector<32xi32>
    %177 = vector.shape_cast %176 : vector<32xi32> to vector<32x1xi32>
    %178 = vector.broadcast %177 : vector<32x1xi32> to vector<32x64xi32>
    %179 = arith.cmpi eq, %7, %178 : vector<32x64xi32>
    %cst_53 = arith.constant 0.000000e+00 : f32
    %180 = vector.broadcast %cst_53 : f32 to vector<32x64xf32>
    %181 = arith.select %179, %22, %180 : vector<32x64xi1>, vector<32x64xf32>
    %cst_54 = arith.constant dense<0.000000e+00> : vector<32xf32>
    %182 = vector.multi_reduction <add>, %181, %cst_54 [1] : vector<32x64xf32> to vector<32xf32>
    %183 = vector.shape_cast %182 : vector<32xf32> to vector<32x1xf32>
    %cst_55 = arith.constant -1.000000e+30 : f32
    %184 = vector.broadcast %cst_55 : f32 to vector<32x64xf32>
    %185 = arith.select %179, %184, %161 : vector<32x64xi1>, vector<32x64xf32>
    %c6_i32 = arith.constant 6 : i32
    %186 = vector.broadcast %c6_i32 : i32 to vector<32x128xi32>
    %187 = arith.cmpi eq, %23, %186 : vector<32x128xi32>
    %188 = vector.shape_cast %177 : vector<32x1xi32> to vector<32x1xi32>
    %189 = vector.broadcast %188 : vector<32x1xi32> to vector<32x128xi32>
    %190 = arith.select %187, %189, %166 : vector<32x128xi1>, vector<32x128xi32>
    %191 = vector.shape_cast %183 : vector<32x1xf32> to vector<32x1xf32>
    %192 = vector.broadcast %191 : vector<32x1xf32> to vector<32x128xf32>
    %193 = arith.select %187, %192, %169 : vector<32x128xi1>, vector<32x128xf32>
    %cst_56 = arith.constant dense<0xFF800000> : vector<32xf32>
    %194 = vector.multi_reduction <maximumf>, %185, %cst_56 [1] : vector<32x64xf32> to vector<32xf32>
    %195 = vector.shape_cast %194 : vector<32xf32> to vector<32x1xf32>
    %196 = vector.broadcast %195 : vector<32x1xf32> to vector<32x64xf32>
    %197 = arith.cmpf oeq, %185, %196 : vector<32x64xf32>
    %c64_i32_57 = arith.constant 64 : i32
    %198 = vector.broadcast %c64_i32_57 : i32 to vector<32x64xi32>
    %199 = arith.select %197, %7, %198 : vector<32x64xi1>, vector<32x64xi32>
    %cst_58 = arith.constant dense<2147483647> : vector<32xi32>
    %200 = vector.multi_reduction <minsi>, %199, %cst_58 [1] : vector<32x64xi32> to vector<32xi32>
    %201 = vector.shape_cast %200 : vector<32xi32> to vector<32x1xi32>
    %202 = vector.broadcast %201 : vector<32x1xi32> to vector<32x64xi32>
    %203 = arith.cmpi eq, %7, %202 : vector<32x64xi32>
    %cst_59 = arith.constant 0.000000e+00 : f32
    %204 = vector.broadcast %cst_59 : f32 to vector<32x64xf32>
    %205 = arith.select %203, %22, %204 : vector<32x64xi1>, vector<32x64xf32>
    %cst_60 = arith.constant dense<0.000000e+00> : vector<32xf32>
    %206 = vector.multi_reduction <add>, %205, %cst_60 [1] : vector<32x64xf32> to vector<32xf32>
    %207 = vector.shape_cast %206 : vector<32xf32> to vector<32x1xf32>
    %c7_i32 = arith.constant 7 : i32
    %208 = vector.broadcast %c7_i32 : i32 to vector<32x128xi32>
    %209 = arith.cmpi eq, %23, %208 : vector<32x128xi32>
    %210 = vector.shape_cast %201 : vector<32x1xi32> to vector<32x1xi32>
    %211 = vector.broadcast %210 : vector<32x1xi32> to vector<32x128xi32>
    %212 = arith.select %209, %211, %190 : vector<32x128xi1>, vector<32x128xi32>
    %213 = vector.shape_cast %207 : vector<32x1xf32> to vector<32x1xf32>
    %214 = vector.broadcast %213 : vector<32x1xf32> to vector<32x128xf32>
    %215 = arith.select %209, %214, %193 : vector<32x128xi1>, vector<32x128xf32>
    %c0_61 = arith.constant 0 : index
    %c0_62 = arith.constant 0 : index
    %216 = vector.load %arg6[%c0_61, %c0_62] : memref<32x128xi32, #tpu.memory_space<vmem>>, vector<32x128xi32>
    tpu.vector_store %arg6[%c0_61, %c0_62], %212 {strides = array<i32>} : memref<32x128xi32, #tpu.memory_space<vmem>>, vector<32x128xi32>,
    %c0_63 = arith.constant 0 : index
    %c0_64 = arith.constant 0 : index
    %217 = vector.load %arg7[%c0_63, %c0_64] : memref<32x128xf32, #tpu.memory_space<vmem>>, vector<32x128xf32>
    tpu.vector_store %arg7[%c0_63, %c0_64], %215 {strides = array<i32>} : memref<32x128xf32, #tpu.memory_space<vmem>>, vector<32x128xf32>,
    return
  }
  func.func @transform_0(%arg0: i32) -> (i32, i32) {
    %c0_i32 = arith.constant 0 : i32
    %c0_i32_0 = arith.constant 0 : i32
    return %arg0, %c0_i32 : i32, i32
  }
  func.func @transform_1(%arg0: i32) -> (i32, i32) {
    %c0_i32 = arith.constant 0 : i32
    %c0_i32_0 = arith.constant 0 : i32
    %c0_i32_1 = arith.constant 0 : i32
    return %c0_i32, %c0_i32_0 : i32, i32
  }
  func.func @transform_2(%arg0: i32) -> (i32, i32) {
    %c0_i32 = arith.constant 0 : i32
    %c0_i32_0 = arith.constant 0 : i32
    return %arg0, %c0_i32 : i32, i32
  }
  func.func @transform_3(%arg0: i32) -> (i32, i32) {
    %c0_i32 = arith.constant 0 : i32
    %c0_i32_0 = arith.constant 0 : i32
    return %arg0, %c0_i32 : i32, i32
  }
  func.func @transform_4(%arg0: i32) -> (i32, i32) {
    %c0_i32 = arith.constant 0 : i32
    %c0_i32_0 = arith.constant 0 : i32
    %c0_i32_1 = arith.constant 0 : i32
    return %c0_i32, %c0_i32_0 : i32, i32
  }
  func.func @transform_5(%arg0: i32) -> (i32, i32) {
    %c0_i32 = arith.constant 0 : i32
    %c0_i32_0 = arith.constant 0 : i32
    return %arg0, %c0_i32 : i32, i32
  }
  func.func @transform_6(%arg0: i32) -> (i32, i32) {
    %c0_i32 = arith.constant 0 : i32
    %c0_i32_0 = arith.constant 0 : i32
    return %arg0, %c0_i32 : i32, i32
  }
}

</mosaic_0001>

<llo_original>
// kernel: tpu_custom_call.1
$region0: #{tpu_custom_call.1}
  #allocation0 [shape = 'u32[]', space=smem, size = 0x4, offset = 0x4, fixed_abs, tag = 'smem constant byte address 0x4 - core index']
  #allocation1 [shape = 'u32[144,128]{1,0:T(1,128)}', space=vmem, size = 0x12000, scoped, tag = 'internal scratch']
  %s0 = inlined_call_operand.hbm [shape: f32[64,32], index: 0, kind: input, shape index: {}]
  %s1 = inlined_call_operand.hbm [shape: f32[32,64], index: 1, kind: input, shape index: {}]
  %s2 = inlined_call_operand.hbm [shape: bf16[64,64], index: 2, kind: input, shape index: {}]
  %s3 = inlined_call_operand.hbm [shape: bf16[64,20], index: 3, kind: input, shape index: {}]
  %s4 = inlined_call_operand.hbm [shape: bf16[20,64], index: 4, kind: input, shape index: {}]
  %s5 = inlined_call_operand.hbm [shape: s32[64,128], index: 5, kind: output, shape index: {0}]
  %s6 = inlined_call_operand.hbm [shape: f32[64,128], index: 6, kind: output, shape index: {1}]
  %7 = xla_tuple %s5, %s6
  %s8 = sld [smem:[#allocation0]]
  $region81: #{tpu_custom_call.1} parent=0
    _
  %s10 = ssub.s32 1, %s8
  %s11 = scalar_select 0, %s10, %s8
  $region1: #{tpu_custom_call.1} parent=0
    #allocation2 [shape = 'u8[32768]{0}', space=vmem, size = 0x8000, scoped, tag = 'input window, operand 0']
    #allocation3 [shape = 's32[2]{0}', space=sflag, size = 0x8, scoped, tag = 'scoped memory for tpu_custom_call.1']
    #allocation4 [shape = 's32[2]{0}', space=sflag, size = 0x8, scoped, tag = 'scoped memory for tpu_custom_call.1']
    #allocation5 [shape = 'u8[16384]{0}', space=vmem, size = 0x4000, scoped, tag = 'input window, operand 1, single buffered']
    #allocation6 [shape = 's32[1]{0}', space=sflag, size = 0x4, scoped, tag = 'scoped memory for tpu_custom_call.1']
    #allocation7 [shape = 'u8[16384]{0}', space=vmem, size = 0x4000, scoped, tag = 'input window, operand 2']
    #allocation8 [shape = 'u8[16384]{0}', space=vmem, size = 0x4000, scoped, tag = 'input window, operand 3']
    #allocation9 [shape = 'u8[6144]{0}', space=vmem, size = 0x1800, scoped, tag = 'input window, operand 4, single buffered']
    #allocation10 [shape = 'u8[32768]{0}', space=vmem, size = 0x8000, scoped, tag = 'output window, operand 0']
    #allocation11 [shape = 'u8[32768]{0}', space=vmem, size = 0x8000, scoped, tag = 'output window, operand 1']
    #allocation12 [shape = 's32[2]{0}', space=sflag, size = 0x8, scoped, tag = 'scoped memory for tpu_custom_call.1']
    %12 = vsyncpa [#allocation3], 0
    %s13 = scalar_lea.sflag [#allocation3], 1
    %14 = vsyncpa %s13, 0
    %15 = vsyncpa [#allocation6], 0
    %16 = vsyncpa [#allocation4], 0
    %s17 = scalar_lea.sflag [#allocation4], 1
    %18 = vsyncpa %s17, 0
    %19 = vsyncpa [#allocation12], 0
    %s20 = scalar_lea.sflag [#allocation12], 1
    %21 = vsyncpa %s20, 0
    loop: start=0, step=1, limit=4
    $region2: #{tpu_custom_call.1} parent=1 // loop_pre_header
      _
    $region3: #{tpu_custom_call.1} parent=1 // loop_header
      %s23 = sphi 0, %s27
      %p24 = scmp.ge.s32.totalorder %s23, 4
      %s33 = sphi 0, %s35
      %s36 = sphi 0, %s33
      %s37 = sphi 0, %s36
      %s53 = sphi 0, %s37
      %s57 = sphi 0, %s57
      %s59 = sphi 0, %s57
      %s60 = sphi 0, %s59
      %s74 = sphi 0, %s60
      %s80 = sphi 0, %s82
      %s83 = sphi 0, %s80
      %s84 = sphi 0, %s83
      %s100 = sphi 0, %s84
      %s106 = sphi 0, %s108
      %s109 = sphi 0, %s106
      %s110 = sphi 0, %s109
      %s126 = sphi 0, %s110
      %s130 = sphi 0, %s130
      %s132 = sphi 0, %s130
      %s133 = sphi 0, %s132
      %s147 = sphi 0, %s133
      %s153 = sphi 0, %s155
      %s156 = sphi 0, %s153
      %s157 = sphi 0, %s156
      %s173 = sphi 0, %s157
      %s179 = sphi 0, %s181
      %s182 = sphi 0, %s179
      %s183 = sphi 0, %s182
      %s199 = sphi 0, %s183
    $region4: #{tpu_custom_call.1} parent=1 // loop_header_branch
      %26 = sbr.rel (%p24) target = $region8
    $region5: #{tpu_custom_call.1} parent=1 // loop_body
      %s28 = ssub.s32 %s23, 1
      %s29 = ssub.s32 %s23, 2
      %s30 = sadd.s32 %s23, 1
      %s31 = ssub.s32 %s23, %s30
      %p32 = scmp.eq.s32.totalorder %s31, 0
      %s34 = sadd.s32 %s33, 1
      %s35 = scalar_select %p32, %s33, %s34
      %p38 = pneg %p32
      %p39 = scmp.eq.s32.totalorder %s23, 1
      %p40 = por %p38, %p39
      %p41 = scmp.ne.s32.totalorder %s33, %s36
      %p42 = scmp.eq.s32.totalorder %s23, 0
      %p43 = por %p41, %p42
      %p44 = scmp.ne.s32.totalorder %s33, %s36
      %p45 = scmp.eq.s32.totalorder %s28, 1
      %p46 = por %p44, %p45
      %p47 = scmp.ne.s32.totalorder %s36, %s37
      %p48 = scmp.eq.s32.totalorder %s28, 0
      %p49 = por %p47, %p48
      %p50 = scmp.ne.s32.totalorder %s36, %s37
      %p51 = scmp.eq.s32.totalorder %s29, 1
      %p52 = por %p50, %p51
      %p54 = scmp.ne.s32.totalorder %s37, %s53
      %p55 = scmp.eq.s32.totalorder %s29, 0
      %p56 = por %p54, %p55
      %s58 = sadd.s32 %s57, 1
      %p61 = scmp.eq.s32.totalorder %s23, 1
      %p62 = scmp.ne.s32.totalorder %s57, %s59
      %p63 = scmp.eq.s32.totalorder %s23, 0
      %p64 = por %p62, %p63
      %p65 = scmp.ne.s32.totalorder %s57, %s59
      %p66 = scmp.eq.s32.totalorder %s28, 1
      %p67 = por %p65, %p66
      %p68 = scmp.ne.s32.totalorder %s59, %s60
      %p69 = scmp.eq.s32.totalorder %s28, 0
      %p70 = por %p68, %p69
      %p71 = scmp.ne.s32.totalorder %s59, %s60
      %p72 = scmp.eq.s32.totalorder %s29, 1
      %p73 = por %p71, %p72
      %p75 = scmp.ne.s32.totalorder %s60, %s74
      %p76 = scmp.eq.s32.totalorder %s29, 0
      %p77 = por %p75, %p76
      %s78 = ssub.s32 %s23, %s30
      %p79 = scmp.eq.s32.totalorder %s78, 0
      %s81 = sadd.s32 %s80, 1
      %s82 = scalar_select %p79, %s80, %s81
      %p85 = pneg %p79
      %p86 = scmp.eq.s32.totalorder %s23, 1
      %p87 = por %p85, %p86
      %p88 = scmp.ne.s32.totalorder %s80, %s83
      %p89 = scmp.eq.s32.totalorder %s23, 0
      %p90 = por %p88, %p89
      %p91 = scmp.ne.s32.totalorder %s80, %s83
      %p92 = scmp.eq.s32.totalorder %s28, 1
      %p93 = por %p91, %p92
      %p94 = scmp.ne.s32.totalorder %s83, %s84
      %p95 = scmp.eq.s32.totalorder %s28, 0
      %p96 = por %p94, %p95
      %p97 = scmp.ne.s32.totalorder %s83, %s84
      %p98 = scmp.eq.s32.totalorder %s29, 1
      %p99 = por %p97, %p98
      %p101 = scmp.ne.s32.totalorder %s84, %s100
      %p102 = scmp.eq.s32.totalorder %s29, 0
      %p103 = por %p101, %p102
      %s104 = ssub.s32 %s23, %s30
      %p105 = scmp.eq.s32.totalorder %s104, 0
      %s107 = sadd.s32 %s106, 1
      %s108 = scalar_select %p105, %s106, %s107
      %p111 = pneg %p105
      %p112 = scmp.eq.s32.totalorder %s23, 1
      %p113 = por %p111, %p112
      %p114 = scmp.ne.s32.totalorder %s106, %s109
      %p115 = scmp.eq.s32.totalorder %s23, 0
      %p116 = por %p114, %p115
      %p117 = scmp.ne.s32.totalorder %s106, %s109
      %p118 = scmp.eq.s32.totalorder %s28, 1
      %p119 = por %p117, %p118
      %p120 = scmp.ne.s32.totalorder %s109, %s110
      %p121 = scmp.eq.s32.totalorder %s28, 0
      %p122 = por %p120, %p121
      %p123 = scmp.ne.s32.totalorder %s109, %s110
      %p124 = scmp.eq.s32.totalorder %s29, 1
      %p125 = por %p123, %p124
      %p127 = scmp.ne.s32.totalorder %s110, %s126
      %p128 = scmp.eq.s32.totalorder %s29, 0
      %p129 = por %p127, %p128
      %s131 = sadd.s32 %s130, 1
      %p134 = scmp.eq.s32.totalorder %s23, 1
      %p135 = scmp.ne.s32.totalorder %s130, %s132
      %p136 = scmp.eq.s32.totalorder %s23, 0
      %p137 = por %p135, %p136
      %p138 = scmp.ne.s32.totalorder %s130, %s132
      %p139 = scmp.eq.s32.totalorder %s28, 1
      %p140 = por %p138, %p139
      %p141 = scmp.ne.s32.totalorder %s132, %s133
      %p142 = scmp.eq.s32.totalorder %s28, 0
      %p143 = por %p141, %p142
      %p144 = scmp.ne.s32.totalorder %s132, %s133
      %p145 = scmp.eq.s32.totalorder %s29, 1
      %p146 = por %p144, %p145
      %p148 = scmp.ne.s32.totalorder %s133, %s147
      %p149 = scmp.eq.s32.totalorder %s29, 0
      %p150 = por %p148, %p149
      %s151 = ssub.s32 %s23, %s30
      %p152 = scmp.eq.s32.totalorder %s151, 0
      %s154 = sadd.s32 %s153, 1
      %s155 = scalar_select %p152, %s153, %s154
      %p158 = pneg %p152
      %p159 = scmp.eq.s32.totalorder %s23, 1
      %p160 = por %p158, %p159
      %p161 = scmp.ne.s32.totalorder %s153, %s156
      %p162 = scmp.eq.s32.totalorder %s23, 0
      %p163 = por %p161, %p162
      %p164 = scmp.ne.s32.totalorder %s153, %s156
      %p165 = scmp.eq.s32.totalorder %s28, 1
      %p166 = por %p164, %p165
      %p167 = scmp.ne.s32.totalorder %s156, %s157
      %p168 = scmp.eq.s32.totalorder %s28, 0
      %p169 = por %p167, %p168
      %p170 = scmp.ne.s32.totalorder %s156, %s157
      %p171 = scmp.eq.s32.totalorder %s29, 1
      %p172 = por %p170, %p171
      %p174 = scmp.ne.s32.totalorder %s157, %s173
      %p175 = scmp.eq.s32.totalorder %s29, 0
      %p176 = por %p174, %p175
      %s177 = ssub.s32 %s23, %s30
      %p178 = scmp.eq.s32.totalorder %s177, 0
      %s180 = sadd.s32 %s179, 1
      %s181 = scalar_select %p178, %s179, %s180
      %p184 = pneg %p178
      %p185 = scmp.eq.s32.totalorder %s23, 1
      %p186 = por %p184, %p185
      %p187 = scmp.ne.s32.totalorder %s179, %s182
      %p188 = scmp.eq.s32.totalorder %s23, 0
      %p189 = por %p187, %p188
      %p190 = scmp.ne.s32.totalorder %s179, %s182
      %p191 = scmp.eq.s32.totalorder %s28, 1
      %p192 = por %p190, %p191
      %p193 = scmp.ne.s32.totalorder %s182, %s183
      %p194 = scmp.eq.s32.totalorder %s28, 0
      %p195 = por %p193, %p194
      %p196 = scmp.ne.s32.totalorder %s182, %s183
      %p197 = scmp.eq.s32.totalorder %s29, 1
      %p198 = por %p196, %p197
      %p200 = scmp.ne.s32.totalorder %s183, %s199
      %p201 = scmp.eq.s32.totalorder %s29, 0
      %p202 = por %p200, %p201
      %p203 = scmp.le.s32.totalorder 1, %s23
      %p204 = scmp.lt.s32.totalorder %s23, 3
      %p205 = pnand %p203, %p204
      %p206 = pneg %p205
      // Predicated region
      $region9: #{tpu_custom_call.1} parent=5 // pred_check
        _
      $region10: #{tpu_custom_call.1} parent=5 // pred_check_branch
        %208 = sbr.rel (%p205) target = $region12
      $region11: #{tpu_custom_call.1} parent=5 // pred_region
        %s209 = ssub.s32 %s23, 1
        // Predicated region
        $region13: #{tpu_custom_call.1} parent=11 // pred_check
          %p210 = pneg %p70
        $region14: #{tpu_custom_call.1} parent=11 // pred_check_branch
          %212 = sbr.rel (%p210) target = $region16
        $region15: #{tpu_custom_call.1} parent=11 // pred_region
          %s214 = ssub.s32 512, 512
          %215 = vsyncadd [#allocation6], %s214
          %s216 = sshll.u32 [#allocation5], 4
          %s217 = int_to_ptr.vmem [resolvable:$true] %s216
          %222 = dma.hbm_to_vmem [thread:$0]  %s1, 512, %s217, [#allocation6], 128, 128, 8
        $region16: #{tpu_custom_call.1} parent=11 // pred_fallthru
          _
        // Predicated region
        $region17: #{tpu_custom_call.1} parent=11 // pred_check
          %p223 = pneg %p143
        $region18: #{tpu_custom_call.1} parent=11 // pred_check_branch
          %225 = sbr.rel (%p223) target = $region20
        $region19: #{tpu_custom_call.1} parent=11 // pred_region
          %s227 = ssub.s32 192, 192
          %228 = vsyncadd [#allocation6], %s227
          %s229 = sshll.u32 [#allocation9], 4
          %s230 = int_to_ptr.vmem [resolvable:$true] %s229
          %235 = dma.hbm_to_vmem [thread:$0]  %s4, 192, %s230, [#allocation6], 64, 64, 4
        $region20: #{tpu_custom_call.1} parent=11 // pred_fallthru
          _
      $region12: #{tpu_custom_call.1} parent=5 // pred_fallthru
        _
      %p236 = scmp.lt.s32.totalorder %s23, 2
      // Predicated region
      $region21: #{tpu_custom_call.1} parent=5 // pred_check
        %p237 = pneg %p236
      $region22: #{tpu_custom_call.1} parent=5 // pred_check_branch
        %239 = sbr.rel (%p237) target = $region24
      $region23: #{tpu_custom_call.1} parent=5 // pred_region
        // Predicated region
        $region25: #{tpu_custom_call.1} parent=23 // pred_check
          %p240 = pneg %p43
        $region26: #{tpu_custom_call.1} parent=23 // pred_check_branch
          %242 = sbr.rel (%p240) target = $region28
        $region27: #{tpu_custom_call.1} parent=23 // pred_region
          %s243 = sand.u32 %s23, 1
          %s244 = scalar_lea.sflag [#allocation3], %s243
          %s245 = sand.u32 %s33, 1
          %s246 = smul.addr %s245, 32
          %s247 = scalar_lea.vmem [#allocation2], %s246
          %s248 = smul.u32 4, %s23
          %s250 = ssub.s32 512, 512
          %251 = vsyncadd %s244, %s250
          %s252 = smul.addr %s248, 128
          %s253 = scalar_lea.hbm %s0, %s252
          %s254 = sshll.u32 %s247, 4
          %s255 = int_to_ptr.vmem [resolvable:$true] %s254
          %260 = dma.hbm_to_vmem [thread:$0]  %s253, 512, %s255, %s244, 128, 128, 8
        $region28: #{tpu_custom_call.1} parent=23 // pred_fallthru
          _
        // Predicated region
        $region29: #{tpu_custom_call.1} parent=23 // pred_check
          %p261 = pneg %p90
        $region30: #{tpu_custom_call.1} parent=23 // pred_check_branch
          %263 = sbr.rel (%p261) target = $region32
        $region31: #{tpu_custom_call.1} parent=23 // pred_region
          %s264 = sand.u32 %s23, 1
          %s265 = scalar_lea.sflag [#allocation3], %s264
          %s266 = sand.u32 %s80, 1
          %s267 = smul.addr %s266, 16
          %s268 = scalar_lea.vmem [#allocation7], %s267
          %s269 = smul.u32 4, %s23
          %s271 = ssub.s32 256, 256
          %272 = vsyncadd %s265, %s271
          %s273 = smul.addr %s269, 64
          %s274 = scalar_lea.hbm %s2, %s273
          %s275 = sshll.u32 %s268, 4
          %s276 = int_to_ptr.vmem [resolvable:$true] %s275
          %281 = dma.hbm_to_vmem [thread:$0]  %s274, 256, %s276, %s265, 64, 64, 4
        $region32: #{tpu_custom_call.1} parent=23 // pred_fallthru
          _
        // Predicated region
        $region33: #{tpu_custom_call.1} parent=23 // pred_check
          %p282 = pneg %p116
        $region34: #{tpu_custom_call.1} parent=23 // pred_check_branch
          %284 = sbr.rel (%p282) target = $region36
        $region35: #{tpu_custom_call.1} parent=23 // pred_region
          %s285 = sand.u32 %s23, 1
          %s286 = scalar_lea.sflag [#allocation3], %s285
          %s287 = sand.u32 %s106, 1
          %s288 = smul.addr %s287, 16
          %s289 = scalar_lea.vmem [#allocation8], %s288
          %s290 = smul.u32 4, %s23
          %s292 = ssub.s32 256, 256
          %293 = vsyncadd %s286, %s292
          %s294 = smul.addr %s290, 64
          %s295 = scalar_lea.hbm %s3, %s294
          %s296 = sshll.u32 %s289, 4
          %s297 = int_to_ptr.vmem [resolvable:$true] %s296
          %302 = dma.hbm_to_vmem [thread:$0]  %s295, 256, %s297, %s286, 64, 64, 4
        $region36: #{tpu_custom_call.1} parent=23 // pred_fallthru
          _
      $region24: #{tpu_custom_call.1} parent=5 // pred_fallthru
        _
      %p303 = scmp.le.s32.totalorder 1, %s23
      %p304 = scmp.lt.s32.totalorder %s23, 3
      %p305 = pnand %p303, %p304
      %p306 = pneg %p305
      // Predicated region
      $region37: #{tpu_custom_call.1} parent=5 // pred_check
        _
      $region38: #{tpu_custom_call.1} parent=5 // pred_check_branch
        %308 = sbr.rel (%p305) target = $region40
      $region39: #{tpu_custom_call.1} parent=5 // pred_region
        %s309 = ssub.s32 %s23, 1
        %s310 = sand.u32 %s28, 1
        %s311 = scalar_lea.sflag [#allocation3], %s310
        %s312 = sand.u32 %s36, 1
        %s313 = smul.addr %s312, 32
        %s314 = scalar_lea.vmem [#allocation2], %s313
        // Predicated region
        $region41: #{tpu_custom_call.1} parent=39 // pred_check
          %p315 = pneg %p49
        $region42: #{tpu_custom_call.1} parent=39 // pred_check_branch
          %317 = sbr.rel (%p315) target = $region44
        $region43: #{tpu_custom_call.1} parent=39 // pred_region
          %318 = dma.done %s311, 512
        $region44: #{tpu_custom_call.1} parent=39 // pred_fallthru
          _
        // Predicated region
        $region45: #{tpu_custom_call.1} parent=39 // pred_check
          %p319 = pneg %p70
        $region46: #{tpu_custom_call.1} parent=39 // pred_check_branch
          %321 = sbr.rel (%p319) target = $region48
        $region47: #{tpu_custom_call.1} parent=39 // pred_region
          %322 = dma.done [#allocation6], 512
        $region48: #{tpu_custom_call.1} parent=39 // pred_fallthru
          _
        %s323 = sand.u32 %s28, 1
        %s324 = scalar_lea.sflag [#allocation3], %s323
        %s325 = sand.u32 %s83, 1
        %s326 = smul.addr %s325, 16
        %s327 = scalar_lea.vmem [#allocation7], %s326
        // Predicated region
        $region49: #{tpu_custom_call.1} parent=39 // pred_check
          %p328 = pneg %p96
        $region50: #{tpu_custom_call.1} parent=39 // pred_check_branch
          %330 = sbr.rel (%p328) target = $region52
        $region51: #{tpu_custom_call.1} parent=39 // pred_region
          %331 = dma.done %s324, 256
        $region52: #{tpu_custom_call.1} parent=39 // pred_fallthru
          _
        %s332 = sand.u32 %s28, 1
        %s333 = scalar_lea.sflag [#allocation3], %s332
        %s334 = sand.u32 %s109, 1
        %s335 = smul.addr %s334, 16
        %s336 = scalar_lea.vmem [#allocation8], %s335
        // Predicated region
        $region53: #{tpu_custom_call.1} parent=39 // pred_check
          %p337 = pneg %p122
        $region54: #{tpu_custom_call.1} parent=39 // pred_check_branch
          %339 = sbr.rel (%p337) target = $region56
        $region55: #{tpu_custom_call.1} parent=39 // pred_region
          %340 = dma.done %s333, 256
        $region56: #{tpu_custom_call.1} parent=39 // pred_fallthru
          _
        // Predicated region
        $region57: #{tpu_custom_call.1} parent=39 // pred_check
          %p341 = pneg %p143
        $region58: #{tpu_custom_call.1} parent=39 // pred_check_branch
          %343 = sbr.rel (%p341) target = $region60
        $region59: #{tpu_custom_call.1} parent=39 // pred_region
          %344 = dma.done [#allocation6], 192
        $region60: #{tpu_custom_call.1} parent=39 // pred_fallthru
          _
        %s345 = sand.u32 %s28, 1
        %s346 = scalar_lea.sflag [#allocation3], %s345
        %s347 = sand.u32 %s36, 1
        %s348 = smul.addr %s347, 32
        %s349 = scalar_lea.vmem [#allocation2], %s348
        %p350 = pneg %p49
        %p351 = pneg %p46
        %p352 = pneg %p70
        %p353 = pneg %p67
        %s354 = sand.u32 %s28, 1
        %s355 = scalar_lea.sflag [#allocation3], %s354
        %s356 = sand.u32 %s83, 1
        %s357 = smul.addr %s356, 16
        %s358 = scalar_lea.vmem [#allocation7], %s357
        %p359 = pneg %p96
        %p360 = pneg %p93
        %s361 = sand.u32 %s28, 1
        %s362 = scalar_lea.sflag [#allocation3], %s361
        %s363 = sand.u32 %s109, 1
        %s364 = smul.addr %s363, 16
        %s365 = scalar_lea.vmem [#allocation8], %s364
        %p366 = pneg %p122
        %p367 = pneg %p119
        %p368 = pneg %p143
        %p369 = pneg %p140
        %p370 = pneg %p169
        %p371 = pneg %p166
        %s372 = sand.u32 %s156, 1
        %s373 = scalar_lea.sflag [#allocation4], %s372
        %s374 = sand.u32 %s156, 1
        %s375 = smul.addr %s374, 32
        %s376 = scalar_lea.vmem [#allocation10], %s375
        %p377 = pneg %p195
        %p378 = pneg %p192
        %s379 = sand.u32 %s182, 1
        %s380 = scalar_lea.sflag [#allocation12], %s379
        %s381 = sand.u32 %s182, 1
        %s382 = smul.addr %s381, 32
        %s383 = scalar_lea.vmem [#allocation11], %s382
        %s384 = smul.u32 4, %s28
        %s385 = smul.u32 4, %s28
        %s386 = smul.u32 4, %s28
        %s387 = smul.u32 4, %s28
        %s388 = smul.u32 4, %s28
        %s390 = smul.u32 %s28, 32
        %v391 = vld [vmem:[%s314] sm:$0xff]
        %v392 = vld [vmem:[%s314 + $0x8] sm:$0xff]
        %v393 = vld [vmem:[%s314 + $0x10] sm:$0xff]
        %v394 = vld [vmem:[%s314 + $0x18] sm:$0xff]
        %v395 = vld [vmem:[#allocation5] sm:$0xff]
        %v396 = vld [vmem:[#allocation5 + $0x8] sm:$0xff]
        %v397 = vld [vmem:[#allocation5 + $0x10] sm:$0xff]
        %v398 = vld [vmem:[#allocation5 + $0x18] sm:$0xff]
        %v399 = vlaneseq
        %v400 = vshrl.u32 %v399, 7
        %v401 = vadd.s32 %v400, 8
        %v402 = vadd.s32 %v400, 16
        %v403 = vadd.s32 %v400, 24
        %v404 = vstv %s390
        %v405 = vadd.s32 %v400, %v404
        %v406 = vadd.s32 %v401, %v404
        %v407 = vadd.s32 %v402, %v404
        %v408 = vadd.s32 %v403, %v404
        %v409 = vlaneseq
        %v410 = vand.u32 %v409, 127
        %vm411 = vcmp.eq.s32.totalorder %v405, %v410
        %vm412 = vcmp.eq.s32.totalorder %v406, %v410
        %vm413 = vcmp.eq.s32.totalorder %v407, %v410
        %vm414 = vcmp.eq.s32.totalorder %v408, %v410
        %v415 = vsel %vm411, 10.0, 0.0
        %v416 = vsel %vm412, 10.0, 0.0
        %v417 = vsel %vm413, 10.0, 0.0
        %v418 = vsel %vm414, 10.0, 0.0
        %vm419 = vcmask 261120
        %v421 = vsel %vm419, %v391, 0
        %v424 = vsel %vm419, %v392, 0
        %v427 = vsel %vm419, %v393, 0
        %v430 = vsel %vm419, %v394, 0
        %432 = vmatprep.subr.mxu0 0.0
        %433 = vmatpush1.msra.mxu0 %v395
        %434 = vmatprep.subr.mxu0 0.0
        %435 = vmatpush1.msra.mxu0 %v396
        %436 = vmatprep.subr.mxu0 0.0
        %437 = vmatpush1.msra.mxu0 %v397
        %438 = vmatprep.subr.mxu0 0.0
        %439 = vmatpush1.msra.mxu0 %v398
        %440 = vmatprep.subr.mxu0 0.0
        %441 = vmatpush1.msra.mxu0 0.0
        %442 = vmatprep.subr.mxu0 0.0
        %443 = vmatpush1.msra.mxu0 0.0
        %444 = vmatprep.subr.mxu0 0.0
        %445 = vmatpush1.msra.mxu0 0.0
        %446 = vmatprep.subr.mxu0 0.0
        %447 = vmatpush1.msra.mxu0 0.0
        %448 = vmatprep.subr.mxu0 0.0
        %449 = vmatpush1.msra.mxu0 0.0
        %450 = vmatprep.subr.mxu0 0.0
        %451 = vmatpush1.msra.mxu0 0.0
        %452 = vmatprep.subr.mxu0 0.0
        %453 = vmatpush1.msra.mxu0 0.0
        %454 = vmatprep.subr.mxu0 0.0
        %455 = vmatpush1.msra.mxu0 0.0
        %456 = vmatprep.subr.mxu0 0.0
        %457 = vmatpush1.msra.mxu0 0.0
        %458 = vmatprep.subr.mxu0 0.0
        %459 = vmatpush1.msra.mxu0 0.0
        %460 = vmatprep.subr.mxu0 0.0
        %461 = vmatpush1.msra.mxu0 0.0
        %462 = vmatprep.subr.mxu0 0.0
        %463 = vmatpush1.msra.mxu0 0.0
        %464 = vmatprep.subr.mxu0 0.0
        %465 = vmatpush1.msra.mxu0 0.0
        %466 = vmatprep.subr.mxu0 0.0
        %467 = vmatpush1.msra.mxu0 0.0
        %468 = vmatprep.subr.mxu0 0.0
        %469 = vmatpush1.msra.mxu0 0.0
        %470 = vmatprep.subr.mxu0 0.0
        %471 = vmatpush1.msra.mxu0 0.0
        %472 = vmatprep.subr.mxu0 0.0
        %473 = vmatpush1.msra.mxu0 0.0
        %474 = vmatprep.subr.mxu0 0.0
        %475 = vmatpush1.msra.mxu0 0.0
        %476 = vmatprep.subr.mxu0 0.0
        %477 = vmatpush1.msra.mxu0 0.0
        %478 = vmatprep.subr.mxu0 0.0
        %479 = vmatpush1.msra.mxu0 0.0
        %480 = vmatprep.subr.mxu0 0.0
        %481 = vmatpush1.msra.mxu0 0.0
        %482 = vmatprep.subr.mxu0 0.0
        %483 = vmatpush1.msra.mxu0 0.0
        %484 = vmatprep.subr.mxu0 0.0
        %485 = vmatpush1.msra.mxu0 0.0
        %486 = vmatprep.subr.mxu0 0.0
        %487 = vmatpush1.msra.mxu0 0.0
        %488 = vmatprep.subr.mxu0 0.0
        %489 = vmatpush1.msra.mxu0 0.0
        %490 = vmatprep.subr.mxu0 0.0
        %491 = vmatpush1.msra.mxu0 0.0
        %492 = vmatprep.subr.mxu0 0.0
        %493 = vmatpush1.msra.mxu0 0.0
        %494 = vmatprep.subr.mxu0 0.0
        %495 = vmatpush1.msra.mxu0 0.0
        %496 = vmatprep.mubr.f32.mxu0 0.0
        %497 = vmatmul.mubr.f32.gmra.mrb[0].mxu0 %v421
        %v498 = vpop.f32.mrb[0].mxu0
        %v499 = vadd.f32 %v415, %v498
        %v500 = vpop.f32.mrb[0].mxu0
        %501 = vmatprep.mubr.f32.mxu0 0.0
        %502 = vmatmul.mubr.f32.gmra.mrb[0].mxu0 %v424
        %v503 = vpop.f32.mrb[0].mxu0
        %v504 = vadd.f32 %v416, %v503
        %v505 = vpop.f32.mrb[0].mxu0
        %506 = vmatprep.mubr.f32.mxu0 0.0
        %507 = vmatmul.mubr.f32.gmra.mrb[0].mxu0 %v427
        %v508 = vpop.f32.mrb[0].mxu0
        %v509 = vadd.f32 %v417, %v508
        %v510 = vpop.f32.mrb[0].mxu0
        %511 = vmatprep.mubr.f32.mxu0 0.0
        %512 = vmatmul.mubr.f32.gmra.mrb[0].mxu0 %v430
        %v513 = vpop.f32.mrb[0].mxu0
        %v514 = vadd.f32 %v418, %v513
        %v515 = vpop.f32.mrb[0].mxu0
        %516 = vdwg.mxu0
        %v517 = vld [vmem:[%s336] sm:$0xf]
        %v518 = vld [vmem:[%s336 + $0x4] sm:$0xf]
        %v519 = vld [vmem:[%s336 + $0x8] sm:$0xf]
        %v520 = vld [vmem:[%s336 + $0xc] sm:$0xf]
        %v521 = vld [vmem:[#allocation9] sm:$0xf]
        %v522 = vld [vmem:[#allocation9 + $0x4] sm:$0xf]
        %v523 = vld [vmem:[#allocation9 + $0x8] sm:$0x3]
        %v528 = vunpack.c.l.b16 %v517
        %v529 = vunpack.c.l.b16 %v518
        %v530 = vunpack.c.l.b16 %v519
        %v531 = vunpack.c.l.b16 %v520
        %v532 = vpack.c.b16 %v529, %v528
        %v533 = vpack.c.b16 %v531, %v530
        %v537 = vunpack.c.l.b16 %v521
        %v538 = vunpack.c.l.b16 %v522
        %v539 = vunpack.c.l.b16 %v523
        %v540 = vpack.c.b16 %v538, %v537
        %v541 = vpack.c.b16 %v539, %v539
        %vm543 = vcmask 162816
        %v545 = vsel %vm543, %v532, 0
        %v548 = vsel %vm543, %v533, 0
        %vm550 = vcmask 1041408
        %v552 = vsel %vm550, %v541, 0
        %554 = vmatprep.subr.bf16.mxu0 0
        %555 = vmatpush1.bf16.msra.mxu0 %v540
        %556 = vmatprep.subr.bf16.mxu0 0
        %557 = vmatpush1.bf16.msra.mxu0 %v552
        %558 = vmatprep.subr.bf16.mxu0 0
        %559 = vmatpush1.bf16.msra.mxu0 0
        %560 = vmatprep.subr.bf16.mxu0 0
        %561 = vmatpush1.bf16.msra.mxu0 0
        %562 = vmatprep.subr.bf16.mxu0 0
        %563 = vmatpush1.bf16.msra.mxu0 0
        %564 = vmatprep.subr.bf16.mxu0 0
        %565 = vmatpush1.bf16.msra.mxu0 0
        %566 = vmatprep.subr.bf16.mxu0 0
        %567 = vmatpush1.bf16.msra.mxu0 0
        %568 = vmatprep.subr.bf16.mxu0 0
        %569 = vmatpush1.bf16.msra.mxu0 0
        %570 = vmatprep.subr.bf16.mxu0 0
        %571 = vmatpush1.bf16.msra.mxu0 0
        %572 = vmatprep.subr.bf16.mxu0 0
        %573 = vmatpush1.bf16.msra.mxu0 0
        %574 = vmatprep.subr.bf16.mxu0 0
        %575 = vmatpush1.bf16.msra.mxu0 0
        %576 = vmatprep.subr.bf16.mxu0 0
        %577 = vmatpush1.bf16.msra.mxu0 0
        %578 = vmatprep.subr.bf16.mxu0 0
        %579 = vmatpush1.bf16.msra.mxu0 0
        %580 = vmatprep.subr.bf16.mxu0 0
        %581 = vmatpush1.bf16.msra.mxu0 0
        %582 = vmatprep.subr.bf16.mxu0 0
        %583 = vmatpush1.bf16.msra.mxu0 0
        %584 = vmatprep.subr.bf16.mxu0 0
        %585 = vmatpush1.bf16.msra.mxu0 0
        %586 = vmatprep.mubr.bf16.mxu0 0
        %587 = vmatmul.mubr.bf16.gmra.mrb[0].mxu0 %v545
        %v588 = vpop.f32.mrb[0].mxu0
        %v589 = vadd.f32 0.0, %v588
        %v590 = vpop.f32.mrb[0].mxu0
        %v591 = vpop.f32.mrb[0].mxu0
        %v592 = vadd.f32 0.0, %v591
        %v593 = vpop.f32.mrb[0].mxu0
        %594 = vmatprep.mubr.bf16.mxu0 0
        %595 = vmatmul.mubr.bf16.gmra.mrb[0].mxu0 %v548
        %v596 = vpop.f32.mrb[0].mxu0
        %v597 = vadd.f32 0.0, %v596
        %v598 = vpop.f32.mrb[0].mxu0
        %v599 = vpop.f32.mrb[0].mxu0
        %v600 = vadd.f32 0.0, %v599
        %v601 = vpop.f32.mrb[0].mxu0
        %602 = vdwg.mxu0
        %v603 = vld [vmem:[%s327] sm:$0xf]
        %v604 = vld [vmem:[%s327 + $0x4] sm:$0xf]
        %v605 = vld [vmem:[%s327 + $0x8] sm:$0xf]
        %v606 = vld [vmem:[%s327 + $0xc] sm:$0xf]
        %v607 = vunpack.c.l.bf16 %v603
        %v608 = vunpack.c.l.bf16 %v604
        %v609 = vunpack.c.l.bf16 %v605
        %v610 = vunpack.c.l.bf16 %v606
        %vm611 = vcmp.gt.f32.partialorder %v589, 0.0
        %vm612 = vcmp.gt.f32.partialorder %v592, 0.0
        %vm613 = vcmp.gt.f32.partialorder %v597, 0.0
        %vm614 = vcmp.gt.f32.partialorder %v600, 0.0
        %v615 = vsel %vm611, 1, 0
        %v616 = vsel %vm612, 1, 0
        %v617 = vsel %vm613, 1, 0
        %v618 = vsel %vm614, 1, 0
        %v619 = vcvt.s32.f32 %v615
        %v620 = vcvt.s32.f32 %v616
        %v621 = vcvt.s32.f32 %v617
        %v622 = vcvt.s32.f32 %v618
        %v623 = vadd.f32 %v607, %v619
        %v624 = vadd.f32 %v608, %v620
        %v625 = vadd.f32 %v609, %v621
        %v626 = vadd.f32 %v610, %v622
        %vm627 = vcmask 523264
        %v628 = vsel %vm627, %v499, -inf
        %629 = vmax.xlane.f32.xlu0 %v628
        %v630 = vpop.xlane.xlu0 %629
        %v631 = vsel %vm627, %v504, -inf
        %632 = vmax.xlane.f32.xlu0 %v631
        %v633 = vpop.xlane.xlu0 %632
        %v634 = vsel %vm627, %v509, -inf
        %635 = vmax.xlane.f32.xlu0 %v634
        %v636 = vpop.xlane.xlu0 %635
        %v637 = vsel %vm627, %v514, -inf
        %638 = vmax.xlane.f32.xlu0 %v637
        %v639 = vpop.xlane.xlu0 %638
        %vm640 = vcmp.eq.f32.partialorder %v499, %v630
        %vm641 = vcmp.eq.f32.partialorder %v504, %v633
        %vm642 = vcmp.eq.f32.partialorder %v509, %v636
        %vm643 = vcmp.eq.f32.partialorder %v514, %v639
        %v644 = vsel %vm640, %v410, 64
        %v645 = vsel %vm641, %v410, 64
        %v646 = vsel %vm642, %v410, 64
        %v647 = vsel %vm643, %v410, 64
        %v648 = vsel %vm627, %v644, 2147483647
        %v649 = vand.u32 %v648, 65535
        %v650 = vshra.s32 %v648, 16
        %v651 = vcvt.s32.f32 %v649
        %v652 = vcvt.s32.f32 %v650
        %653 = vmin.xlane.f32.xlu0 %v652
        %v654 = vpop.xlane.xlu0 %653
        %vm655 = vcmp.eq.f32.partialorder %v652, %v654
        %v656 = vsel %vm655, %v651, inf
        %657 = vmin.xlane.f32.xlu0 %v656
        %v658 = vpop.xlane.xlu0 %657
        %v659 = vcvt.f32.s32 %v658
        %v660 = vcvt.f32.s32 %v654
        %v661 = vshll.u32 %v660, 16
        %v662 = vadd.s32 %v661, %v659
        %v663 = vsel %vm627, %v645, 2147483647
        %v664 = vand.u32 %v663, 65535
        %v665 = vshra.s32 %v663, 16
        %v666 = vcvt.s32.f32 %v664
        %v667 = vcvt.s32.f32 %v665
        %668 = vmin.xlane.f32.xlu0 %v667
        %v669 = vpop.xlane.xlu0 %668
        %vm670 = vcmp.eq.f32.partialorder %v667, %v669
        %v671 = vsel %vm670, %v666, inf
        %672 = vmin.xlane.f32.xlu0 %v671
        %v673 = vpop.xlane.xlu0 %672
        %v674 = vcvt.f32.s32 %v673
        %v675 = vcvt.f32.s32 %v669
        %v676 = vshll.u32 %v675, 16
        %v677 = vadd.s32 %v676, %v674
        %v678 = vsel %vm627, %v646, 2147483647
        %v679 = vand.u32 %v678, 65535
        %v680 = vshra.s32 %v678, 16
        %v681 = vcvt.s32.f32 %v679
        %v682 = vcvt.s32.f32 %v680
        %683 = vmin.xlane.f32.xlu0 %v682
        %v684 = vpop.xlane.xlu0 %683
        %vm685 = vcmp.eq.f32.partialorder %v682, %v684
        %v686 = vsel %vm685, %v681, inf
        %687 = vmin.xlane.f32.xlu0 %v686
        %v688 = vpop.xlane.xlu0 %687
        %v689 = vcvt.f32.s32 %v688
        %v690 = vcvt.f32.s32 %v684
        %v691 = vshll.u32 %v690, 16
        %v692 = vadd.s32 %v691, %v689
        %v693 = vsel %vm627, %v647, 2147483647
        %v694 = vand.u32 %v693, 65535
        %v695 = vshra.s32 %v693, 16
        %v696 = vcvt.s32.f32 %v694
        %v697 = vcvt.s32.f32 %v695
        %698 = vmin.xlane.f32.xlu0 %v697
        %v699 = vpop.xlane.xlu0 %698
        %vm700 = vcmp.eq.f32.partialorder %v697, %v699
        %v701 = vsel %vm700, %v696, inf
        %702 = vmin.xlane.f32.xlu0 %v701
        %v703 = vpop.xlane.xlu0 %702
        %v704 = vcvt.f32.s32 %v703
        %v705 = vcvt.f32.s32 %v699
        %v706 = vshll.u32 %v705, 16
        %v707 = vadd.s32 %v706, %v704
        %vm708 = vcmp.eq.s32.totalorder %v410, %v662
        %vm709 = vcmp.eq.s32.totalorder %v410, %v677
        %vm710 = vcmp.eq.s32.totalorder %v410, %v692
        %vm711 = vcmp.eq.s32.totalorder %v410, %v707
        %v712 = vsel %vm708, %v623, 0.0
        %v713 = vsel %vm709, %v624, 0.0
        %v714 = vsel %vm710, %v625, 0.0
        %v715 = vsel %vm711, %v626, 0.0
        %v716 = vsel %vm627, %v712, 0.0
        %717 = vadd.xlane.f32.xlu0 %v716
        %v718 = vpop.xlane.xlu0 %717
        %v719 = vsel %vm627, %v713, 0.0
        %720 = vadd.xlane.f32.xlu0 %v719
        %v721 = vpop.xlane.xlu0 %720
        %v722 = vsel %vm627, %v714, 0.0
        %723 = vadd.xlane.f32.xlu0 %v722
        %v724 = vpop.xlane.xlu0 %723
        %v725 = vsel %vm627, %v715, 0.0
        %726 = vadd.xlane.f32.xlu0 %v725
        %v727 = vpop.xlane.xlu0 %726
        %v728 = vsel %vm708, -1e+30, %v499
        %v729 = vsel %vm709, -1e+30, %v504
        %v730 = vsel %vm710, -1e+30, %v509
        %v731 = vsel %vm711, -1e+30, %v514
        %vm732 = vcmp.eq.s32.totalorder %v410, 0
        %v733 = vsel %vm732, %v662, 0
        %v734 = vsel %vm732, %v677, 0
        %v735 = vsel %vm732, %v692, 0
        %v736 = vsel %vm732, %v707, 0
        %v737 = vsel %vm732, %v718, 0.0
        %v738 = vsel %vm732, %v721, 0.0
        %v739 = vsel %vm732, %v724, 0.0
        %v740 = vsel %vm732, %v727, 0.0
        %v741 = vsel %vm627, %v728, -inf
        %742 = vmax.xlane.f32.xlu0 %v741
        %v743 = vpop.xlane.xlu0 %742
        %v744 = vsel %vm627, %v729, -inf
        %745 = vmax.xlane.f32.xlu0 %v744
        %v746 = vpop.xlane.xlu0 %745
        %v747 = vsel %vm627, %v730, -inf
        %748 = vmax.xlane.f32.xlu0 %v747
        %v749 = vpop.xlane.xlu0 %748
        %v750 = vsel %vm627, %v731, -inf
        %751 = vmax.xlane.f32.xlu0 %v750
        %v752 = vpop.xlane.xlu0 %751
        %vm753 = vcmp.eq.f32.partialorder %v728, %v743
        %vm754 = vcmp.eq.f32.partialorder %v729, %v746
        %vm755 = vcmp.eq.f32.partialorder %v730, %v749
        %vm756 = vcmp.eq.f32.partialorder %v731, %v752
        %v757 = vsel %vm753, %v410, 64
        %v758 = vsel %vm754, %v410, 64
        %v759 = vsel %vm755, %v410, 64
        %v760 = vsel %vm756, %v410, 64
        %v761 = vsel %vm627, %v757, 2147483647
        %v762 = vand.u32 %v761, 65535
        %v763 = vshra.s32 %v761, 16
        %v764 = vcvt.s32.f32 %v762
        %v765 = vcvt.s32.f32 %v763
        %766 = vmin.xlane.f32.xlu0 %v765
        %v767 = vpop.xlane.xlu0 %766
        %vm768 = vcmp.eq.f32.partialorder %v765, %v767
        %v769 = vsel %vm768, %v764, inf
        %770 = vmin.xlane.f32.xlu0 %v769
        %v771 = vpop.xlane.xlu0 %770
        %v772 = vcvt.f32.s32 %v771
        %v773 = vcvt.f32.s32 %v767
        %v774 = vshll.u32 %v773, 16
        %v775 = vadd.s32 %v774, %v772
        %v776 = vsel %vm627, %v758, 2147483647
        %v777 = vand.u32 %v776, 65535
        %v778 = vshra.s32 %v776, 16
        %v779 = vcvt.s32.f32 %v777
        %v780 = vcvt.s32.f32 %v778
        %781 = vmin.xlane.f32.xlu0 %v780
        %v782 = vpop.xlane.xlu0 %781
        %vm783 = vcmp.eq.f32.partialorder %v780, %v782
        %v784 = vsel %vm783, %v779, inf
        %785 = vmin.xlane.f32.xlu0 %v784
        %v786 = vpop.xlane.xlu0 %785
        %v787 = vcvt.f32.s32 %v786
        %v788 = vcvt.f32.s32 %v782
        %v789 = vshll.u32 %v788, 16
        %v790 = vadd.s32 %v789, %v787
        %v791 = vsel %vm627, %v759, 2147483647
        %v792 = vand.u32 %v791, 65535
        %v793 = vshra.s32 %v791, 16
        %v794 = vcvt.s32.f32 %v792
        %v795 = vcvt.s32.f32 %v793
        %796 = vmin.xlane.f32.xlu0 %v795
        %v797 = vpop.xlane.xlu0 %796
        %vm798 = vcmp.eq.f32.partialorder %v795, %v797
        %v799 = vsel %vm798, %v794, inf
        %800 = vmin.xlane.f32.xlu0 %v799
        %v801 = vpop.xlane.xlu0 %800
        %v802 = vcvt.f32.s32 %v801
        %v803 = vcvt.f32.s32 %v797
        %v804 = vshll.u32 %v803, 16
        %v805 = vadd.s32 %v804, %v802
        %v806 = vsel %vm627, %v760, 2147483647
        %v807 = vand.u32 %v806, 65535
        %v808 = vshra.s32 %v806, 16
        %v809 = vcvt.s32.f32 %v807
        %v810 = vcvt.s32.f32 %v808
        %811 = vmin.xlane.f32.xlu0 %v810
        %v812 = vpop.xlane.xlu0 %811
        %vm813 = vcmp.eq.f32.partialorder %v810, %v812
        %v814 = vsel %vm813, %v809, inf
        %815 = vmin.xlane.f32.xlu0 %v814
        %v816 = vpop.xlane.xlu0 %815
        %v817 = vcvt.f32.s32 %v816
        %v818 = vcvt.f32.s32 %v812
        %v819 = vshll.u32 %v818, 16
        %v820 = vadd.s32 %v819, %v817
        %vm821 = vcmp.eq.s32.totalorder %v410, %v775
        %vm822 = vcmp.eq.s32.totalorder %v410, %v790
        %vm823 = vcmp.eq.s32.totalorder %v410, %v805
        %vm824 = vcmp.eq.s32.totalorder %v410, %v820
        %v825 = vsel %vm821, %v623, 0.0
        %v826 = vsel %vm822, %v624, 0.0
        %v827 = vsel %vm823, %v625, 0.0
        %v828 = vsel %vm824, %v626, 0.0
        %v829 = vsel %vm627, %v825, 0.0
        %830 = vadd.xlane.f32.xlu0 %v829
        %v831 = vpop.xlane.xlu0 %830
        %v832 = vsel %vm627, %v826, 0.0
        %833 = vadd.xlane.f32.xlu0 %v832
        %v834 = vpop.xlane.xlu0 %833
        %v835 = vsel %vm627, %v827, 0.0
        %836 = vadd.xlane.f32.xlu0 %v835
        %v837 = vpop.xlane.xlu0 %836
        %v838 = vsel %vm627, %v828, 0.0
        %839 = vadd.xlane.f32.xlu0 %v838
        %v840 = vpop.xlane.xlu0 %839
        %v841 = vsel %vm821, -1e+30, %v728
        %v842 = vsel %vm822, -1e+30, %v729
        %v843 = vsel %vm823, -1e+30, %v730
        %v844 = vsel %vm824, -1e+30, %v731
        %vm845 = vcmp.eq.s32.totalorder %v410, 1
        %v846 = vsel %vm845, %v775, %v733
        %v847 = vsel %vm845, %v790, %v734
        %v848 = vsel %vm845, %v805, %v735
        %v849 = vsel %vm845, %v820, %v736
        %v850 = vsel %vm845, %v831, %v737
        %v851 = vsel %vm845, %v834, %v738
        %v852 = vsel %vm845, %v837, %v739
        %v853 = vsel %vm845, %v840, %v740
        %v854 = vsel %vm627, %v841, -inf
        %855 = vmax.xlane.f32.xlu0 %v854
        %v856 = vpop.xlane.xlu0 %855
        %v857 = vsel %vm627, %v842, -inf
        %858 = vmax.xlane.f32.xlu0 %v857
        %v859 = vpop.xlane.xlu0 %858
        %v860 = vsel %vm627, %v843, -inf
        %861 = vmax.xlane.f32.xlu0 %v860
        %v862 = vpop.xlane.xlu0 %861
        %v863 = vsel %vm627, %v844, -inf
        %864 = vmax.xlane.f32.xlu0 %v863
        %v865 = vpop.xlane.xlu0 %864
        %vm866 = vcmp.eq.f32.partialorder %v841, %v856
        %vm867 = vcmp.eq.f32.partialorder %v842, %v859
        %vm868 = vcmp.eq.f32.partialorder %v843, %v862
        %vm869 = vcmp.eq.f32.partialorder %v844, %v865
        %v870 = vsel %vm866, %v410, 64
        %v871 = vsel %vm867, %v410, 64
        %v872 = vsel %vm868, %v410, 64
        %v873 = vsel %vm869, %v410, 64
        %v874 = vsel %vm627, %v870, 2147483647
        %v875 = vand.u32 %v874, 65535
        %v876 = vshra.s32 %v874, 16
        %v877 = vcvt.s32.f32 %v875
        %v878 = vcvt.s32.f32 %v876
        %879 = vmin.xlane.f32.xlu0 %v878
        %v880 = vpop.xlane.xlu0 %879
        %vm881 = vcmp.eq.f32.partialorder %v878, %v880
        %v882 = vsel %vm881, %v877, inf
        %883 = vmin.xlane.f32.xlu0 %v882
        %v884 = vpop.xlane.xlu0 %883
        %v885 = vcvt.f32.s32 %v884
        %v886 = vcvt.f32.s32 %v880
        %v887 = vshll.u32 %v886, 16
        %v888 = vadd.s32 %v887, %v885
        %v889 = vsel %vm627, %v871, 2147483647
        %v890 = vand.u32 %v889, 65535
        %v891 = vshra.s32 %v889, 16
        %v892 = vcvt.s32.f32 %v890
        %v893 = vcvt.s32.f32 %v891
        %894 = vmin.xlane.f32.xlu0 %v893
        %v895 = vpop.xlane.xlu0 %894
        %vm896 = vcmp.eq.f32.partialorder %v893, %v895
        %v897 = vsel %vm896, %v892, inf
        %898 = vmin.xlane.f32.xlu0 %v897
        %v899 = vpop.xlane.xlu0 %898
        %v900 = vcvt.f32.s32 %v899
        %v901 = vcvt.f32.s32 %v895
        %v902 = vshll.u32 %v901, 16
        %v903 = vadd.s32 %v902, %v900
        %v904 = vsel %vm627, %v872, 2147483647
        %v905 = vand.u32 %v904, 65535
        %v906 = vshra.s32 %v904, 16
        %v907 = vcvt.s32.f32 %v905
        %v908 = vcvt.s32.f32 %v906
        %909 = vmin.xlane.f32.xlu0 %v908
        %v910 = vpop.xlane.xlu0 %909
        %vm911 = vcmp.eq.f32.partialorder %v908, %v910
        %v912 = vsel %vm911, %v907, inf
        %913 = vmin.xlane.f32.xlu0 %v912
        %v914 = vpop.xlane.xlu0 %913
        %v915 = vcvt.f32.s32 %v914
        %v916 = vcvt.f32.s32 %v910
        %v917 = vshll.u32 %v916, 16
        %v918 = vadd.s32 %v917, %v915
        %v919 = vsel %vm627, %v873, 2147483647
        %v920 = vand.u32 %v919, 65535
        %v921 = vshra.s32 %v919, 16
        %v922 = vcvt.s32.f32 %v920
        %v923 = vcvt.s32.f32 %v921
        %924 = vmin.xlane.f32.xlu0 %v923
        %v925 = vpop.xlane.xlu0 %924
        %vm926 = vcmp.eq.f32.partialorder %v923, %v925
        %v927 = vsel %vm926, %v922, inf
        %928 = vmin.xlane.f32.xlu0 %v927
        %v929 = vpop.xlane.xlu0 %928
        %v930 = vcvt.f32.s32 %v929
        %v931 = vcvt.f32.s32 %v925
        %v932 = vshll.u32 %v931, 16
        %v933 = vadd.s32 %v932, %v930
        %vm934 = vcmp.eq.s32.totalorder %v410, %v888
        %vm935 = vcmp.eq.s32.totalorder %v410, %v903
        %vm936 = vcmp.eq.s32.totalorder %v410, %v918
        %vm937 = vcmp.eq.s32.totalorder %v410, %v933
        %v938 = vsel %vm934, %v623, 0.0
        %v939 = vsel %vm935, %v624, 0.0
        %v940 = vsel %vm936, %v625, 0.0
        %v941 = vsel %vm937, %v626, 0.0
        %v942 = vsel %vm627, %v938, 0.0
        %943 = vadd.xlane.f32.xlu0 %v942
        %v944 = vpop.xlane.xlu0 %943
        %v945 = vsel %vm627, %v939, 0.0
        %946 = vadd.xlane.f32.xlu0 %v945
        %v947 = vpop.xlane.xlu0 %946
        %v948 = vsel %vm627, %v940, 0.0
        %949 = vadd.xlane.f32.xlu0 %v948
        %v950 = vpop.xlane.xlu0 %949
        %v951 = vsel %vm627, %v941, 0.0
        %952 = vadd.xlane.f32.xlu0 %v951
        %v953 = vpop.xlane.xlu0 %952
        %v954 = vsel %vm934, -1e+30, %v841
        %v955 = vsel %vm935, -1e+30, %v842
        %v956 = vsel %vm936, -1e+30, %v843
        %v957 = vsel %vm937, -1e+30, %v844
        %vm958 = vcmp.eq.s32.totalorder %v410, 2
        %v959 = vsel %vm958, %v888, %v846
        %v960 = vsel %vm958, %v903, %v847
        %v961 = vsel %vm958, %v918, %v848
        %v962 = vsel %vm958, %v933, %v849
        %v963 = vsel %vm958, %v944, %v850
        %v964 = vsel %vm958, %v947, %v851
        %v965 = vsel %vm958, %v950, %v852
        %v966 = vsel %vm958, %v953, %v853
        %v967 = vsel %vm627, %v954, -inf
        %968 = vmax.xlane.f32.xlu0 %v967
        %v969 = vpop.xlane.xlu0 %968
        %v970 = vsel %vm627, %v955, -inf
        %971 = vmax.xlane.f32.xlu0 %v970
        %v972 = vpop.xlane.xlu0 %971
        %v973 = vsel %vm627, %v956, -inf
        %974 = vmax.xlane.f32.xlu0 %v973
        %v975 = vpop.xlane.xlu0 %974
        %v976 = vsel %vm627, %v957, -inf
        %977 = vmax.xlane.f32.xlu0 %v976
        %v978 = vpop.xlane.xlu0 %977
        %vm979 = vcmp.eq.f32.partialorder %v954, %v969
        %vm980 = vcmp.eq.f32.partialorder %v955, %v972
        %vm981 = vcmp.eq.f32.partialorder %v956, %v975
        %vm982 = vcmp.eq.f32.partialorder %v957, %v978
        %v983 = vsel %vm979, %v410, 64
        %v984 = vsel %vm980, %v410, 64
        %v985 = vsel %vm981, %v410, 64
        %v986 = vsel %vm982, %v410, 64
        %v987 = vsel %vm627, %v983, 2147483647
        %v988 = vand.u32 %v987, 65535
        %v989 = vshra.s32 %v987, 16
        %v990 = vcvt.s32.f32 %v988
        %v991 = vcvt.s32.f32 %v989
        %992 = vmin.xlane.f32.xlu0 %v991
        %v993 = vpop.xlane.xlu0 %992
        %vm994 = vcmp.eq.f32.partialorder %v991, %v993
        %v995 = vsel %vm994, %v990, inf
        %996 = vmin.xlane.f32.xlu0 %v995
        %v997 = vpop.xlane.xlu0 %996
        %v998 = vcvt.f32.s32 %v997
        %v999 = vcvt.f32.s32 %v993
        %v1000 = vshll.u32 %v999, 16
        %v1001 = vadd.s32 %v1000, %v998
        %v1002 = vsel %vm627, %v984, 2147483647
        %v1003 = vand.u32 %v1002, 65535
        %v1004 = vshra.s32 %v1002, 16
        %v1005 = vcvt.s32.f32 %v1003
        %v1006 = vcvt.s32.f32 %v1004
        %1007 = vmin.xlane.f32.xlu0 %v1006
        %v1008 = vpop.xlane.xlu0 %1007
        %vm1009 = vcmp.eq.f32.partialorder %v1006, %v1008
        %v1010 = vsel %vm1009, %v1005, inf
        %1011 = vmin.xlane.f32.xlu0 %v1010
        %v1012 = vpop.xlane.xlu0 %1011
        %v1013 = vcvt.f32.s32 %v1012
        %v1014 = vcvt.f32.s32 %v1008
        %v1015 = vshll.u32 %v1014, 16
        %v1016 = vadd.s32 %v1015, %v1013
        %v1017 = vsel %vm627, %v985, 2147483647
        %v1018 = vand.u32 %v1017, 65535
        %v1019 = vshra.s32 %v1017, 16
        %v1020 = vcvt.s32.f32 %v1018
        %v1021 = vcvt.s32.f32 %v1019
        %1022 = vmin.xlane.f32.xlu0 %v1021
        %v1023 = vpop.xlane.xlu0 %1022
        %vm1024 = vcmp.eq.f32.partialorder %v1021, %v1023
        %v1025 = vsel %vm1024, %v1020, inf
        %1026 = vmin.xlane.f32.xlu0 %v1025
        %v1027 = vpop.xlane.xlu0 %1026
        %v1028 = vcvt.f32.s32 %v1027
        %v1029 = vcvt.f32.s32 %v1023
        %v1030 = vshll.u32 %v1029, 16
        %v1031 = vadd.s32 %v1030, %v1028
        %v1032 = vsel %vm627, %v986, 2147483647
        %v1033 = vand.u32 %v1032, 65535
        %v1034 = vshra.s32 %v1032, 16
        %v1035 = vcvt.s32.f32 %v1033
        %v1036 = vcvt.s32.f32 %v1034
        %1037 = vmin.xlane.f32.xlu0 %v1036
        %v1038 = vpop.xlane.xlu0 %1037
        %vm1039 = vcmp.eq.f32.partialorder %v1036, %v1038
        %v1040 = vsel %vm1039, %v1035, inf
        %1041 = vmin.xlane.f32.xlu0 %v1040
        %v1042 = vpop.xlane.xlu0 %1041
        %v1043 = vcvt.f32.s32 %v1042
        %v1044 = vcvt.f32.s32 %v1038
        %v1045 = vshll.u32 %v1044, 16
        %v1046 = vadd.s32 %v1045, %v1043
        %vm1047 = vcmp.eq.s32.totalorder %v410, %v1001
        %vm1048 = vcmp.eq.s32.totalorder %v410, %v1016
        %vm1049 = vcmp.eq.s32.totalorder %v410, %v1031
        %vm1050 = vcmp.eq.s32.totalorder %v410, %v1046
        %v1051 = vsel %vm1047, %v623, 0.0
        %v1052 = vsel %vm1048, %v624, 0.0
        %v1053 = vsel %vm1049, %v625, 0.0
        %v1054 = vsel %vm1050, %v626, 0.0
        %v1055 = vsel %vm627, %v1051, 0.0
        %1056 = vadd.xlane.f32.xlu0 %v1055
        %v1057 = vpop.xlane.xlu0 %1056
        %v1058 = vsel %vm627, %v1052, 0.0
        %1059 = vadd.xlane.f32.xlu0 %v1058
        %v1060 = vpop.xlane.xlu0 %1059
        %v1061 = vsel %vm627, %v1053, 0.0
        %1062 = vadd.xlane.f32.xlu0 %v1061
        %v1063 = vpop.xlane.xlu0 %1062
        %v1064 = vsel %vm627, %v1054, 0.0
        %1065 = vadd.xlane.f32.xlu0 %v1064
        %v1066 = vpop.xlane.xlu0 %1065
        %v1067 = vsel %vm1047, -1e+30, %v954
        %v1068 = vsel %vm1048, -1e+30, %v955
        %v1069 = vsel %vm1049, -1e+30, %v956
        %v1070 = vsel %vm1050, -1e+30, %v957
        %vm1071 = vcmp.eq.s32.totalorder %v410, 3
        %v1072 = vsel %vm1071, %v1001, %v959
        %v1073 = vsel %vm1071, %v1016, %v960
        %v1074 = vsel %vm1071, %v1031, %v961
        %v1075 = vsel %vm1071, %v1046, %v962
        %v1076 = vsel %vm1071, %v1057, %v963
        %v1077 = vsel %vm1071, %v1060, %v964
        %v1078 = vsel %vm1071, %v1063, %v965
        %v1079 = vsel %vm1071, %v1066, %v966
        %v1080 = vsel %vm627, %v1067, -inf
        %1081 = vmax.xlane.f32.xlu0 %v1080
        %v1082 = vpop.xlane.xlu0 %1081
        %v1083 = vsel %vm627, %v1068, -inf
        %1084 = vmax.xlane.f32.xlu0 %v1083
        %v1085 = vpop.xlane.xlu0 %1084
        %v1086 = vsel %vm627, %v1069, -inf
        %1087 = vmax.xlane.f32.xlu0 %v1086
        %v1088 = vpop.xlane.xlu0 %1087
        %v1089 = vsel %vm627, %v1070, -inf
        %1090 = vmax.xlane.f32.xlu0 %v1089
        %v1091 = vpop.xlane.xlu0 %1090
        %vm1092 = vcmp.eq.f32.partialorder %v1067, %v1082
        %vm1093 = vcmp.eq.f32.partialorder %v1068, %v1085
        %vm1094 = vcmp.eq.f32.partialorder %v1069, %v1088
        %vm1095 = vcmp.eq.f32.partialorder %v1070, %v1091
        %v1096 = vsel %vm1092, %v410, 64
        %v1097 = vsel %vm1093, %v410, 64
        %v1098 = vsel %vm1094, %v410, 64
        %v1099 = vsel %vm1095, %v410, 64
        %v1100 = vsel %vm627, %v1096, 2147483647
        %v1101 = vand.u32 %v1100, 65535
        %v1102 = vshra.s32 %v1100, 16
        %v1103 = vcvt.s32.f32 %v1101
        %v1104 = vcvt.s32.f32 %v1102
        %1105 = vmin.xlane.f32.xlu0 %v1104
        %v1106 = vpop.xlane.xlu0 %1105
        %vm1107 = vcmp.eq.f32.partialorder %v1104, %v1106
        %v1108 = vsel %vm1107, %v1103, inf
        %1109 = vmin.xlane.f32.xlu0 %v1108
        %v1110 = vpop.xlane.xlu0 %1109
        %v1111 = vcvt.f32.s32 %v1110
        %v1112 = vcvt.f32.s32 %v1106
        %v1113 = vshll.u32 %v1112, 16
        %v1114 = vadd.s32 %v1113, %v1111
        %v1115 = vsel %vm627, %v1097, 2147483647
        %v1116 = vand.u32 %v1115, 65535
        %v1117 = vshra.s32 %v1115, 16
        %v1118 = vcvt.s32.f32 %v1116
        %v1119 = vcvt.s32.f32 %v1117
        %1120 = vmin.xlane.f32.xlu0 %v1119
        %v1121 = vpop.xlane.xlu0 %1120
        %vm1122 = vcmp.eq.f32.partialorder %v1119, %v1121
        %v1123 = vsel %vm1122, %v1118, inf
        %1124 = vmin.xlane.f32.xlu0 %v1123
        %v1125 = vpop.xlane.xlu0 %1124
        %v1126 = vcvt.f32.s32 %v1125
        %v1127 = vcvt.f32.s32 %v1121
        %v1128 = vshll.u32 %v1127, 16
        %v1129 = vadd.s32 %v1128, %v1126
        %v1130 = vsel %vm627, %v1098, 2147483647
        %v1131 = vand.u32 %v1130, 65535
        %v1132 = vshra.s32 %v1130, 16
        %v1133 = vcvt.s32.f32 %v1131
        %v1134 = vcvt.s32.f32 %v1132
        %1135 = vmin.xlane.f32.xlu0 %v1134
        %v1136 = vpop.xlane.xlu0 %1135
        %vm1137 = vcmp.eq.f32.partialorder %v1134, %v1136
        %v1138 = vsel %vm1137, %v1133, inf
        %1139 = vmin.xlane.f32.xlu0 %v1138
        %v1140 = vpop.xlane.xlu0 %1139
        %v1141 = vcvt.f32.s32 %v1140
        %v1142 = vcvt.f32.s32 %v1136
        %v1143 = vshll.u32 %v1142, 16
        %v1144 = vadd.s32 %v1143, %v1141
        %v1145 = vsel %vm627, %v1099, 2147483647
        %v1146 = vand.u32 %v1145, 65535
        %v1147 = vshra.s32 %v1145, 16
        %v1148 = vcvt.s32.f32 %v1146
        %v1149 = vcvt.s32.f32 %v1147
        %1150 = vmin.xlane.f32.xlu0 %v1149
        %v1151 = vpop.xlane.xlu0 %1150
        %vm1152 = vcmp.eq.f32.partialorder %v1149, %v1151
        %v1153 = vsel %vm1152, %v1148, inf
        %1154 = vmin.xlane.f32.xlu0 %v1153
        %v1155 = vpop.xlane.xlu0 %1154
        %v1156 = vcvt.f32.s32 %v1155
        %v1157 = vcvt.f32.s32 %v1151
        %v1158 = vshll.u32 %v1157, 16
        %v1159 = vadd.s32 %v1158, %v1156
        %vm1160 = vcmp.eq.s32.totalorder %v410, %v1114
        %vm1161 = vcmp.eq.s32.totalorder %v410, %v1129
        %vm1162 = vcmp.eq.s32.totalorder %v410, %v1144
        %vm1163 = vcmp.eq.s32.totalorder %v410, %v1159
        %v1164 = vsel %vm1160, %v623, 0.0
        %v1165 = vsel %vm1161, %v624, 0.0
        %v1166 = vsel %vm1162, %v625, 0.0
        %v1167 = vsel %vm1163, %v626, 0.0
        %v1168 = vsel %vm627, %v1164, 0.0
        %1169 = vadd.xlane.f32.xlu0 %v1168
        %v1170 = vpop.xlane.xlu0 %1169
        %v1171 = vsel %vm627, %v1165, 0.0
        %1172 = vadd.xlane.f32.xlu0 %v1171
        %v1173 = vpop.xlane.xlu0 %1172
        %v1174 = vsel %vm627, %v1166, 0.0
        %1175 = vadd.xlane.f32.xlu0 %v1174
        %v1176 = vpop.xlane.xlu0 %1175
        %v1177 = vsel %vm627, %v1167, 0.0
        %1178 = vadd.xlane.f32.xlu0 %v1177
        %v1179 = vpop.xlane.xlu0 %1178
        %v1180 = vsel %vm1160, -1e+30, %v1067
        %v1181 = vsel %vm1161, -1e+30, %v1068
        %v1182 = vsel %vm1162, -1e+30, %v1069
        %v1183 = vsel %vm1163, -1e+30, %v1070
        %vm1184 = vcmp.eq.s32.totalorder %v410, 4
        %v1185 = vsel %vm1184, %v1114, %v1072
        %v1186 = vsel %vm1184, %v1129, %v1073
        %v1187 = vsel %vm1184, %v1144, %v1074
        %v1188 = vsel %vm1184, %v1159, %v1075
        %v1189 = vsel %vm1184, %v1170, %v1076
        %v1190 = vsel %vm1184, %v1173, %v1077
        %v1191 = vsel %vm1184, %v1176, %v1078
        %v1192 = vsel %vm1184, %v1179, %v1079
        %v1193 = vsel %vm627, %v1180, -inf
        %1194 = vmax.xlane.f32.xlu0 %v1193
        %v1195 = vpop.xlane.xlu0 %1194
        %v1196 = vsel %vm627, %v1181, -inf
        %1197 = vmax.xlane.f32.xlu0 %v1196
        %v1198 = vpop.xlane.xlu0 %1197
        %v1199 = vsel %vm627, %v1182, -inf
        %1200 = vmax.xlane.f32.xlu0 %v1199
        %v1201 = vpop.xlane.xlu0 %1200
        %v1202 = vsel %vm627, %v1183, -inf
        %1203 = vmax.xlane.f32.xlu0 %v1202
        %v1204 = vpop.xlane.xlu0 %1203
        %vm1205 = vcmp.eq.f32.partialorder %v1180, %v1195
        %vm1206 = vcmp.eq.f32.partialorder %v1181, %v1198
        %vm1207 = vcmp.eq.f32.partialorder %v1182, %v1201
        %vm1208 = vcmp.eq.f32.partialorder %v1183, %v1204
        %v1209 = vsel %vm1205, %v410, 64
        %v1210 = vsel %vm1206, %v410, 64
        %v1211 = vsel %vm1207, %v410, 64
        %v1212 = vsel %vm1208, %v410, 64
        %v1213 = vsel %vm627, %v1209, 2147483647
        %v1214 = vand.u32 %v1213, 65535
        %v1215 = vshra.s32 %v1213, 16
        %v1216 = vcvt.s32.f32 %v1214
        %v1217 = vcvt.s32.f32 %v1215
        %1218 = vmin.xlane.f32.xlu0 %v1217
        %v1219 = vpop.xlane.xlu0 %1218
        %vm1220 = vcmp.eq.f32.partialorder %v1217, %v1219
        %v1221 = vsel %vm1220, %v1216, inf
        %1222 = vmin.xlane.f32.xlu0 %v1221
        %v1223 = vpop.xlane.xlu0 %1222
        %v1224 = vcvt.f32.s32 %v1223
        %v1225 = vcvt.f32.s32 %v1219
        %v1226 = vshll.u32 %v1225, 16
        %v1227 = vadd.s32 %v1226, %v1224
        %v1228 = vsel %vm627, %v1210, 2147483647
        %v1229 = vand.u32 %v1228, 65535
        %v1230 = vshra.s32 %v1228, 16
        %v1231 = vcvt.s32.f32 %v1229
        %v1232 = vcvt.s32.f32 %v1230
        %1233 = vmin.xlane.f32.xlu0 %v1232
        %v1234 = vpop.xlane.xlu0 %1233
        %vm1235 = vcmp.eq.f32.partialorder %v1232, %v1234
        %v1236 = vsel %vm1235, %v1231, inf
        %1237 = vmin.xlane.f32.xlu0 %v1236
        %v1238 = vpop.xlane.xlu0 %1237
        %v1239 = vcvt.f32.s32 %v1238
        %v1240 = vcvt.f32.s32 %v1234
        %v1241 = vshll.u32 %v1240, 16
        %v1242 = vadd.s32 %v1241, %v1239
        %v1243 = vsel %vm627, %v1211, 2147483647
        %v1244 = vand.u32 %v1243, 65535
        %v1245 = vshra.s32 %v1243, 16
        %v1246 = vcvt.s32.f32 %v1244
        %v1247 = vcvt.s32.f32 %v1245
        %1248 = vmin.xlane.f32.xlu0 %v1247
        %v1249 = vpop.xlane.xlu0 %1248
        %vm1250 = vcmp.eq.f32.partialorder %v1247, %v1249
        %v1251 = vsel %vm1250, %v1246, inf
        %1252 = vmin.xlane.f32.xlu0 %v1251
        %v1253 = vpop.xlane.xlu0 %1252
        %v1254 = vcvt.f32.s32 %v1253
        %v1255 = vcvt.f32.s32 %v1249
        %v1256 = vshll.u32 %v1255, 16
        %v1257 = vadd.s32 %v1256, %v1254
        %v1258 = vsel %vm627, %v1212, 2147483647
        %v1259 = vand.u32 %v1258, 65535
        %v1260 = vshra.s32 %v1258, 16
        %v1261 = vcvt.s32.f32 %v1259
        %v1262 = vcvt.s32.f32 %v1260
        %1263 = vmin.xlane.f32.xlu0 %v1262
        %v1264 = vpop.xlane.xlu0 %1263
        %vm1265 = vcmp.eq.f32.partialorder %v1262, %v1264
        %v1266 = vsel %vm1265, %v1261, inf
        %1267 = vmin.xlane.f32.xlu0 %v1266
        %v1268 = vpop.xlane.xlu0 %1267
        %v1269 = vcvt.f32.s32 %v1268
        %v1270 = vcvt.f32.s32 %v1264
        %v1271 = vshll.u32 %v1270, 16
        %v1272 = vadd.s32 %v1271, %v1269
        %vm1273 = vcmp.eq.s32.totalorder %v410, %v1227
        %vm1274 = vcmp.eq.s32.totalorder %v410, %v1242
        %vm1275 = vcmp.eq.s32.totalorder %v410, %v1257
        %vm1276 = vcmp.eq.s32.totalorder %v410, %v1272
        %v1277 = vsel %vm1273, %v623, 0.0
        %v1278 = vsel %vm1274, %v624, 0.0
        %v1279 = vsel %vm1275, %v625, 0.0
        %v1280 = vsel %vm1276, %v626, 0.0
        %v1281 = vsel %vm627, %v1277, 0.0
        %1282 = vadd.xlane.f32.xlu0 %v1281
        %v1283 = vpop.xlane.xlu0 %1282
        %v1284 = vsel %vm627, %v1278, 0.0
        %1285 = vadd.xlane.f32.xlu0 %v1284
        %v1286 = vpop.xlane.xlu0 %1285
        %v1287 = vsel %vm627, %v1279, 0.0
        %1288 = vadd.xlane.f32.xlu0 %v1287
        %v1289 = vpop.xlane.xlu0 %1288
        %v1290 = vsel %vm627, %v1280, 0.0
        %1291 = vadd.xlane.f32.xlu0 %v1290
        %v1292 = vpop.xlane.xlu0 %1291
        %v1293 = vsel %vm1273, -1e+30, %v1180
        %v1294 = vsel %vm1274, -1e+30, %v1181
        %v1295 = vsel %vm1275, -1e+30, %v1182
        %v1296 = vsel %vm1276, -1e+30, %v1183
        %vm1297 = vcmp.eq.s32.totalorder %v410, 5
        %v1298 = vsel %vm1297, %v1227, %v1185
        %v1299 = vsel %vm1297, %v1242, %v1186
        %v1300 = vsel %vm1297, %v1257, %v1187
        %v1301 = vsel %vm1297, %v1272, %v1188
        %v1302 = vsel %vm1297, %v1283, %v1189
        %v1303 = vsel %vm1297, %v1286, %v1190
        %v1304 = vsel %vm1297, %v1289, %v1191
        %v1305 = vsel %vm1297, %v1292, %v1192
        %v1306 = vsel %vm627, %v1293, -inf
        %1307 = vmax.xlane.f32.xlu0 %v1306
        %v1308 = vpop.xlane.xlu0 %1307
        %v1309 = vsel %vm627, %v1294, -inf
        %1310 = vmax.xlane.f32.xlu0 %v1309
        %v1311 = vpop.xlane.xlu0 %1310
        %v1312 = vsel %vm627, %v1295, -inf
        %1313 = vmax.xlane.f32.xlu0 %v1312
        %v1314 = vpop.xlane.xlu0 %1313
        %v1315 = vsel %vm627, %v1296, -inf
        %1316 = vmax.xlane.f32.xlu0 %v1315
        %v1317 = vpop.xlane.xlu0 %1316
        %vm1318 = vcmp.eq.f32.partialorder %v1293, %v1308
        %vm1319 = vcmp.eq.f32.partialorder %v1294, %v1311
        %vm1320 = vcmp.eq.f32.partialorder %v1295, %v1314
        %vm1321 = vcmp.eq.f32.partialorder %v1296, %v1317
        %v1322 = vsel %vm1318, %v410, 64
        %v1323 = vsel %vm1319, %v410, 64
        %v1324 = vsel %vm1320, %v410, 64
        %v1325 = vsel %vm1321, %v410, 64
        %v1326 = vsel %vm627, %v1322, 2147483647
        %v1327 = vand.u32 %v1326, 65535
        %v1328 = vshra.s32 %v1326, 16
        %v1329 = vcvt.s32.f32 %v1327
        %v1330 = vcvt.s32.f32 %v1328
        %1331 = vmin.xlane.f32.xlu0 %v1330
        %v1332 = vpop.xlane.xlu0 %1331
        %vm1333 = vcmp.eq.f32.partialorder %v1330, %v1332
        %v1334 = vsel %vm1333, %v1329, inf
        %1335 = vmin.xlane.f32.xlu0 %v1334
        %v1336 = vpop.xlane.xlu0 %1335
        %v1337 = vcvt.f32.s32 %v1336
        %v1338 = vcvt.f32.s32 %v1332
        %v1339 = vshll.u32 %v1338, 16
        %v1340 = vadd.s32 %v1339, %v1337
        %v1341 = vsel %vm627, %v1323, 2147483647
        %v1342 = vand.u32 %v1341, 65535
        %v1343 = vshra.s32 %v1341, 16
        %v1344 = vcvt.s32.f32 %v1342
        %v1345 = vcvt.s32.f32 %v1343
        %1346 = vmin.xlane.f32.xlu0 %v1345
        %v1347 = vpop.xlane.xlu0 %1346
        %vm1348 = vcmp.eq.f32.partialorder %v1345, %v1347
        %v1349 = vsel %vm1348, %v1344, inf
        %1350 = vmin.xlane.f32.xlu0 %v1349
        %v1351 = vpop.xlane.xlu0 %1350
        %v1352 = vcvt.f32.s32 %v1351
        %v1353 = vcvt.f32.s32 %v1347
        %v1354 = vshll.u32 %v1353, 16
        %v1355 = vadd.s32 %v1354, %v1352
        %v1356 = vsel %vm627, %v1324, 2147483647
        %v1357 = vand.u32 %v1356, 65535
        %v1358 = vshra.s32 %v1356, 16
        %v1359 = vcvt.s32.f32 %v1357
        %v1360 = vcvt.s32.f32 %v1358
        %1361 = vmin.xlane.f32.xlu0 %v1360
        %v1362 = vpop.xlane.xlu0 %1361
        %vm1363 = vcmp.eq.f32.partialorder %v1360, %v1362
        %v1364 = vsel %vm1363, %v1359, inf
        %1365 = vmin.xlane.f32.xlu0 %v1364
        %v1366 = vpop.xlane.xlu0 %1365
        %v1367 = vcvt.f32.s32 %v1366
        %v1368 = vcvt.f32.s32 %v1362
        %v1369 = vshll.u32 %v1368, 16
        %v1370 = vadd.s32 %v1369, %v1367
        %v1371 = vsel %vm627, %v1325, 2147483647
        %v1372 = vand.u32 %v1371, 65535
        %v1373 = vshra.s32 %v1371, 16
        %v1374 = vcvt.s32.f32 %v1372
        %v1375 = vcvt.s32.f32 %v1373
        %1376 = vmin.xlane.f32.xlu0 %v1375
        %v1377 = vpop.xlane.xlu0 %1376
        %vm1378 = vcmp.eq.f32.partialorder %v1375, %v1377
        %v1379 = vsel %vm1378, %v1374, inf
        %1380 = vmin.xlane.f32.xlu0 %v1379
        %v1381 = vpop.xlane.xlu0 %1380
        %v1382 = vcvt.f32.s32 %v1381
        %v1383 = vcvt.f32.s32 %v1377
        %v1384 = vshll.u32 %v1383, 16
        %v1385 = vadd.s32 %v1384, %v1382
        %vm1386 = vcmp.eq.s32.totalorder %v410, %v1340
        %vm1387 = vcmp.eq.s32.totalorder %v410, %v1355
        %vm1388 = vcmp.eq.s32.totalorder %v410, %v1370
        %vm1389 = vcmp.eq.s32.totalorder %v410, %v1385
        %v1390 = vsel %vm1386, %v623, 0.0
        %v1391 = vsel %vm1387, %v624, 0.0
        %v1392 = vsel %vm1388, %v625, 0.0
        %v1393 = vsel %vm1389, %v626, 0.0
        %v1394 = vsel %vm627, %v1390, 0.0
        %1395 = vadd.xlane.f32.xlu0 %v1394
        %v1396 = vpop.xlane.xlu0 %1395
        %v1397 = vsel %vm627, %v1391, 0.0
        %1398 = vadd.xlane.f32.xlu0 %v1397
        %v1399 = vpop.xlane.xlu0 %1398
        %v1400 = vsel %vm627, %v1392, 0.0
        %1401 = vadd.xlane.f32.xlu0 %v1400
        %v1402 = vpop.xlane.xlu0 %1401
        %v1403 = vsel %vm627, %v1393, 0.0
        %1404 = vadd.xlane.f32.xlu0 %v1403
        %v1405 = vpop.xlane.xlu0 %1404
        %v1406 = vsel %vm1386, -1e+30, %v1293
        %v1407 = vsel %vm1387, -1e+30, %v1294
        %v1408 = vsel %vm1388, -1e+30, %v1295
        %v1409 = vsel %vm1389, -1e+30, %v1296
        %vm1410 = vcmp.eq.s32.totalorder %v410, 6
        %v1411 = vsel %vm1410, %v1340, %v1298
        %v1412 = vsel %vm1410, %v1355, %v1299
        %v1413 = vsel %vm1410, %v1370, %v1300
        %v1414 = vsel %vm1410, %v1385, %v1301
        %v1415 = vsel %vm1410, %v1396, %v1302
        %v1416 = vsel %vm1410, %v1399, %v1303
        %v1417 = vsel %vm1410, %v1402, %v1304
        %v1418 = vsel %vm1410, %v1405, %v1305
        %v1419 = vsel %vm627, %v1406, -inf
        %1420 = vmax.xlane.f32.xlu0 %v1419
        %v1421 = vpop.xlane.xlu0 %1420
        %v1422 = vsel %vm627, %v1407, -inf
        %1423 = vmax.xlane.f32.xlu0 %v1422
        %v1424 = vpop.xlane.xlu0 %1423
        %v1425 = vsel %vm627, %v1408, -inf
        %1426 = vmax.xlane.f32.xlu0 %v1425
        %v1427 = vpop.xlane.xlu0 %1426
        %v1428 = vsel %vm627, %v1409, -inf
        %1429 = vmax.xlane.f32.xlu0 %v1428
        %v1430 = vpop.xlane.xlu0 %1429
        %vm1431 = vcmp.eq.f32.partialorder %v1406, %v1421
        %vm1432 = vcmp.eq.f32.partialorder %v1407, %v1424
        %vm1433 = vcmp.eq.f32.partialorder %v1408, %v1427
        %vm1434 = vcmp.eq.f32.partialorder %v1409, %v1430
        %v1435 = vsel %vm1431, %v410, 64
        %v1436 = vsel %vm1432, %v410, 64
        %v1437 = vsel %vm1433, %v410, 64
        %v1438 = vsel %vm1434, %v410, 64
        %v1439 = vsel %vm627, %v1435, 2147483647
        %v1440 = vand.u32 %v1439, 65535
        %v1441 = vshra.s32 %v1439, 16
        %v1442 = vcvt.s32.f32 %v1440
        %v1443 = vcvt.s32.f32 %v1441
        %1444 = vmin.xlane.f32.xlu0 %v1443
        %v1445 = vpop.xlane.xlu0 %1444
        %vm1446 = vcmp.eq.f32.partialorder %v1443, %v1445
        %v1447 = vsel %vm1446, %v1442, inf
        %1448 = vmin.xlane.f32.xlu0 %v1447
        %v1449 = vpop.xlane.xlu0 %1448
        %v1450 = vcvt.f32.s32 %v1449
        %v1451 = vcvt.f32.s32 %v1445
        %v1452 = vshll.u32 %v1451, 16
        %v1453 = vadd.s32 %v1452, %v1450
        %v1454 = vsel %vm627, %v1436, 2147483647
        %v1455 = vand.u32 %v1454, 65535
        %v1456 = vshra.s32 %v1454, 16
        %v1457 = vcvt.s32.f32 %v1455
        %v1458 = vcvt.s32.f32 %v1456
        %1459 = vmin.xlane.f32.xlu0 %v1458
        %v1460 = vpop.xlane.xlu0 %1459
        %vm1461 = vcmp.eq.f32.partialorder %v1458, %v1460
        %v1462 = vsel %vm1461, %v1457, inf
        %1463 = vmin.xlane.f32.xlu0 %v1462
        %v1464 = vpop.xlane.xlu0 %1463
        %v1465 = vcvt.f32.s32 %v1464
        %v1466 = vcvt.f32.s32 %v1460
        %v1467 = vshll.u32 %v1466, 16
        %v1468 = vadd.s32 %v1467, %v1465
        %v1469 = vsel %vm627, %v1437, 2147483647
        %v1470 = vand.u32 %v1469, 65535
        %v1471 = vshra.s32 %v1469, 16
        %v1472 = vcvt.s32.f32 %v1470
        %v1473 = vcvt.s32.f32 %v1471
        %1474 = vmin.xlane.f32.xlu0 %v1473
        %v1475 = vpop.xlane.xlu0 %1474
        %vm1476 = vcmp.eq.f32.partialorder %v1473, %v1475
        %v1477 = vsel %vm1476, %v1472, inf
        %1478 = vmin.xlane.f32.xlu0 %v1477
        %v1479 = vpop.xlane.xlu0 %1478
        %v1480 = vcvt.f32.s32 %v1479
        %v1481 = vcvt.f32.s32 %v1475
        %v1482 = vshll.u32 %v1481, 16
        %v1483 = vadd.s32 %v1482, %v1480
        %v1484 = vsel %vm627, %v1438, 2147483647
        %v1485 = vand.u32 %v1484, 65535
        %v1486 = vshra.s32 %v1484, 16
        %v1487 = vcvt.s32.f32 %v1485
        %v1488 = vcvt.s32.f32 %v1486
        %1489 = vmin.xlane.f32.xlu0 %v1488
        %v1490 = vpop.xlane.xlu0 %1489
        %vm1491 = vcmp.eq.f32.partialorder %v1488, %v1490
        %v1492 = vsel %vm1491, %v1487, inf
        %1493 = vmin.xlane.f32.xlu0 %v1492
        %v1494 = vpop.xlane.xlu0 %1493
        %v1495 = vcvt.f32.s32 %v1494
        %v1496 = vcvt.f32.s32 %v1490
        %v1497 = vshll.u32 %v1496, 16
        %v1498 = vadd.s32 %v1497, %v1495
        %vm1499 = vcmp.eq.s32.totalorder %v410, %v1453
        %vm1500 = vcmp.eq.s32.totalorder %v410, %v1468
        %vm1501 = vcmp.eq.s32.totalorder %v410, %v1483
        %vm1502 = vcmp.eq.s32.totalorder %v410, %v1498
        %v1503 = vsel %vm1499, %v623, 0.0
        %v1504 = vsel %vm1500, %v624, 0.0
        %v1505 = vsel %vm1501, %v625, 0.0
        %v1506 = vsel %vm1502, %v626, 0.0
        %v1507 = vsel %vm627, %v1503, 0.0
        %1508 = vadd.xlane.f32.xlu0 %v1507
        %v1509 = vpop.xlane.xlu0 %1508
        %v1510 = vsel %vm627, %v1504, 0.0
        %1511 = vadd.xlane.f32.xlu0 %v1510
        %v1512 = vpop.xlane.xlu0 %1511
        %v1513 = vsel %vm627, %v1505, 0.0
        %1514 = vadd.xlane.f32.xlu0 %v1513
        %v1515 = vpop.xlane.xlu0 %1514
        %v1516 = vsel %vm627, %v1506, 0.0
        %1517 = vadd.xlane.f32.xlu0 %v1516
        %v1518 = vpop.xlane.xlu0 %1517
        %vm1519 = vcmp.eq.s32.totalorder %v410, 7
        %v1520 = vsel %vm1519, %v1453, %v1411
        %v1521 = vsel %vm1519, %v1468, %v1412
        %v1522 = vsel %vm1519, %v1483, %v1413
        %v1523 = vsel %vm1519, %v1498, %v1414
        %v1524 = vsel %vm1519, %v1509, %v1415
        %v1525 = vsel %vm1519, %v1512, %v1416
        %v1526 = vsel %vm1519, %v1515, %v1417
        %v1527 = vsel %vm1519, %v1518, %v1418
        %1528 = vst [vmem:[%s376] sm:$0xff] %v1520
        %1529 = vst [vmem:[%s376 + $0x8] sm:$0xff] %v1521
        %1530 = vst [vmem:[%s376 + $0x10] sm:$0xff] %v1522
        %1531 = vst [vmem:[%s376 + $0x18] sm:$0xff] %v1523
        %1532 = vst [vmem:[%s383] sm:$0xff] %v1524
        %1533 = vst [vmem:[%s383 + $0x8] sm:$0xff] %v1525
        %1534 = vst [vmem:[%s383 + $0x10] sm:$0xff] %v1526
        %1535 = vst [vmem:[%s383 + $0x18] sm:$0xff] %v1527
        %s1536 = sand.u32 %s156, 1
        %s1537 = scalar_lea.sflag [#allocation4], %s1536
        %s1538 = sand.u32 %s156, 1
        %s1539 = smul.addr %s1538, 32
        %s1540 = scalar_lea.vmem [#allocation10], %s1539
        %s1541 = sand.u32 %s182, 1
        %s1542 = scalar_lea.sflag [#allocation12], %s1541
        %s1543 = sand.u32 %s182, 1
        %s1544 = smul.addr %s1543, 32
        %s1545 = scalar_lea.vmem [#allocation11], %s1544
        // Predicated region
        $region61: #{tpu_custom_call.1} parent=39 // pred_check
          %p1546 = pneg %p166
        $region62: #{tpu_custom_call.1} parent=39 // pred_check_branch
          %1548 = sbr.rel (%p1546) target = $region64
        $region63: #{tpu_custom_call.1} parent=39 // pred_region
          %s1549 = smul.u32 4, %s28
          %s1551 = ssub.s32 512, 512
          %1552 = vsyncadd %s1537, %s1551
          %s1553 = smul.addr %s1549, 128
          %s1554 = scalar_lea.hbm %s5, %s1553
          %s1555 = sshll.u32 %s1540, 4
          %s1556 = int_to_ptr.vmem [resolvable:$true] %s1555
          %1561 = dma.vmem_to_hbm [thread:$0]  %s1556, 512, %s1554, %s1537, 128, 128, 8
        $region64: #{tpu_custom_call.1} parent=39 // pred_fallthru
          _
        // Predicated region
        $region65: #{tpu_custom_call.1} parent=39 // pred_check
          %p1562 = pneg %p192
        $region66: #{tpu_custom_call.1} parent=39 // pred_check_branch
          %1564 = sbr.rel (%p1562) target = $region68
        $region67: #{tpu_custom_call.1} parent=39 // pred_region
          %s1565 = smul.u32 4, %s28
          %s1567 = ssub.s32 512, 512
          %1568 = vsyncadd %s1542, %s1567
          %s1569 = smul.addr %s1565, 128
          %s1570 = scalar_lea.hbm %s6, %s1569
          %s1571 = sshll.u32 %s1545, 4
          %s1572 = int_to_ptr.vmem [resolvable:$true] %s1571
          %1577 = dma.vmem_to_hbm [thread:$0]  %s1572, 512, %s1570, %s1542, 128, 128, 8
        $region68: #{tpu_custom_call.1} parent=39 // pred_fallthru
          _
      $region40: #{tpu_custom_call.1} parent=5 // pred_fallthru
        _
      %p1578 = scmp.le.s32.totalorder 2, %s23
      // Predicated region
      $region69: #{tpu_custom_call.1} parent=5 // pred_check
        %p1579 = pneg %p1578
      $region70: #{tpu_custom_call.1} parent=5 // pred_check_branch
        %1581 = sbr.rel (%p1579) target = $region72
      $region71: #{tpu_custom_call.1} parent=5 // pred_region
        %s1582 = ssub.s32 %s23, 2
        // Predicated region
        $region73: #{tpu_custom_call.1} parent=71 // pred_check
          %p1583 = pneg %p172
        $region74: #{tpu_custom_call.1} parent=71 // pred_check_branch
          %1585 = sbr.rel (%p1583) target = $region76
        $region75: #{tpu_custom_call.1} parent=71 // pred_region
          %s1586 = sand.u32 %s157, 1
          %s1587 = scalar_lea.sflag [#allocation4], %s1586
          %s1588 = sand.u32 %s157, 1
          %s1589 = smul.addr %s1588, 32
          %s1590 = scalar_lea.vmem [#allocation10], %s1589
          %1591 = dma.done %s1587, 512
        $region76: #{tpu_custom_call.1} parent=71 // pred_fallthru
          _
        // Predicated region
        $region77: #{tpu_custom_call.1} parent=71 // pred_check
          %p1592 = pneg %p198
        $region78: #{tpu_custom_call.1} parent=71 // pred_check_branch
          %1594 = sbr.rel (%p1592) target = $region80
        $region79: #{tpu_custom_call.1} parent=71 // pred_region
          %s1595 = sand.u32 %s183, 1
          %s1596 = scalar_lea.sflag [#allocation12], %s1595
          %s1597 = sand.u32 %s183, 1
          %s1598 = smul.addr %s1597, 32
          %s1599 = scalar_lea.vmem [#allocation11], %s1598
          %1600 = dma.done %s1596, 512
        $region80: #{tpu_custom_call.1} parent=71 // pred_fallthru
          _
      $region72: #{tpu_custom_call.1} parent=5 // pred_fallthru
        _
    $region6: #{tpu_custom_call.1} parent=1 // loop_footer
      %s27 = sadd.s32 1, %s23
    $region7: #{tpu_custom_call.1} parent=1 // loop_footer_branch
      %22 = sbr.rel target = $region3
    $region8: #{tpu_custom_call.1} parent=1 // loop_exit
      _
    %1601 = vsyncpa [#allocation3], 1
    %s1602 = scalar_lea.sflag [#allocation3], 1
    %1603 = vsyncpa %s1602, 1
    %1604 = vsyncpa [#allocation6], 1
    %1605 = vsyncpa [#allocation4], 1
    %s1606 = scalar_lea.sflag [#allocation4], 1
    %1607 = vsyncpa %s1606, 1
    %1608 = vsyncpa [#allocation12], 1
    %s1609 = scalar_lea.sflag [#allocation12], 1
    %1610 = vsyncpa %s1609, 1

// kernel: tpu_custom_call.1
$region0: #{tpu_custom_call.1}
  #allocation0 [shape = 'u32[]', space=smem, size = 0x4, offset = 0x4, fixed_abs, tag = 'smem constant byte address 0x4 - core index']
  #allocation1 [shape = 'u32[144,128]{1,0:T(1,128)}', space=vmem, size = 0x12000, scoped, tag = 'internal scratch']
  %s0 = inlined_call_operand.hbm [shape: f32[64,32], index: 0, kind: input, shape index: {}]
  %s1 = inlined_call_operand.hbm [shape: f32[32,64], index: 1, kind: input, shape index: {}]
  %s2 = inlined_call_operand.hbm [shape: bf16[64,64], index: 2, kind: input, shape index: {}]
  %s3 = inlined_call_operand.hbm [shape: bf16[64,20], index: 3, kind: input, shape index: {}]
  %s4 = inlined_call_operand.hbm [shape: bf16[20,64], index: 4, kind: input, shape index: {}]
  %s5 = inlined_call_operand.hbm [shape: s32[64,128], index: 5, kind: output, shape index: {0}]
  %s6 = inlined_call_operand.hbm [shape: f32[64,128], index: 6, kind: output, shape index: {1}]
  %7 = xla_tuple %s5, %s6
  %s8 = sld [smem:[#allocation0]]
  $region81: #{tpu_custom_call.1} parent=0
    _
  %s10 = ssub.s32 1, %s8
  %s11 = scalar_select 0, %s10, %s8
  $region1: #{tpu_custom_call.1} parent=0
    #allocation2 [shape = 'u8[32768]{0}', space=vmem, size = 0x8000, scoped, tag = 'input window, operand 0']
    #allocation3 [shape = 's32[2]{0}', space=sflag, size = 0x8, scoped, tag = 'scoped memory for tpu_custom_call.1']
    #allocation4 [shape = 's32[2]{0}', space=sflag, size = 0x8, scoped, tag = 'scoped memory for tpu_custom_call.1']
    #allocation5 [shape = 'u8[16384]{0}', space=vmem, size = 0x4000, scoped, tag = 'input window, operand 1, single buffered']
    #allocation6 [shape = 's32[1]{0}', space=sflag, size = 0x4, scoped, tag = 'scoped memory for tpu_custom_call.1']
    #allocation7 [shape = 'u8[16384]{0}', space=vmem, size = 0x4000, scoped, tag = 'input window, operand 2']
    #allocation8 [shape = 'u8[16384]{0}', space=vmem, size = 0x4000, scoped, tag = 'input window, operand 3']
    #allocation9 [shape = 'u8[6144]{0}', space=vmem, size = 0x1800, scoped, tag = 'input window, operand 4, single buffered']
    #allocation10 [shape = 'u8[32768]{0}', space=vmem, size = 0x8000, scoped, tag = 'output window, operand 0']
    #allocation11 [shape = 'u8[32768]{0}', space=vmem, size = 0x8000, scoped, tag = 'output window, operand 1']
    #allocation12 [shape = 's32[2]{0}', space=sflag, size = 0x8, scoped, tag = 'scoped memory for tpu_custom_call.1']
    %12 = vsyncpa [#allocation3], 0
    %s13 = scalar_lea.sflag [#allocation3], 1
    %14 = vsyncpa %s13, 0
    %15 = vsyncpa [#allocation6], 0
    %16 = vsyncpa [#allocation4], 0
    %s17 = scalar_lea.sflag [#allocation4], 1
    %18 = vsyncpa %s17, 0
    %19 = vsyncpa [#allocation12], 0
    %s20 = scalar_lea.sflag [#allocation12], 1
    %21 = vsyncpa %s20, 0
    loop: start=0, step=1, limit=4
    $region2: #{tpu_custom_call.1} parent=1 // loop_pre_header
      _
    $region3: #{tpu_custom_call.1} parent=1 // loop_header
      %s23 = sphi 0, %s27
      %p24 = scmp.ge.s32.totalorder %s23, 4
      %s33 = sphi 0, %s35
      %s36 = sphi 0, %s33
      %s37 = sphi 0, %s36
      %s53 = sphi 0, %s37
      %s57 = sphi 0, %s57
      %s59 = sphi 0, %s57
      %s60 = sphi 0, %s59
      %s74 = sphi 0, %s60
      %s80 = sphi 0, %s82
      %s83 = sphi 0, %s80
      %s84 = sphi 0, %s83
      %s100 = sphi 0, %s84
      %s106 = sphi 0, %s108
      %s109 = sphi 0, %s106
      %s110 = sphi 0, %s109
      %s126 = sphi 0, %s110
      %s130 = sphi 0, %s130
      %s132 = sphi 0, %s130
      %s133 = sphi 0, %s132
      %s147 = sphi 0, %s133
      %s153 = sphi 0, %s155
      %s156 = sphi 0, %s153
      %s157 = sphi 0, %s156
      %s173 = sphi 0, %s157
      %s179 = sphi 0, %s181
      %s182 = sphi 0, %s179
      %s183 = sphi 0, %s182
      %s199 = sphi 0, %s183
    $region4: #{tpu_custom_call.1} parent=1 // loop_header_branch
      %26 = sbr.rel (%p24) target = $region8
    $region5: #{tpu_custom_call.1} parent=1 // loop_body
      %s28 = ssub.s32 %s23, 1
      %s29 = ssub.s32 %s23, 2
      %s30 = sadd.s32 %s23, 1
      %s31 = ssub.s32 %s23, %s30
      %p32 = scmp.eq.s32.totalorder %s31, 0
      %s34 = sadd.s32 %s33, 1
      %s35 = scalar_select %p32, %s33, %s34
      %p38 = pneg %p32
      %p39 = scmp.eq.s32.totalorder %s23, 1
      %p40 = por %p38, %p39
      %p41 = scmp.ne.s32.totalorder %s33, %s36
      %p42 = scmp.eq.s32.totalorder %s23, 0
      %p43 = por %p41, %p42
      %p44 = scmp.ne.s32.totalorder %s33, %s36
      %p45 = scmp.eq.s32.totalorder %s28, 1
      %p46 = por %p44, %p45
      %p47 = scmp.ne.s32.totalorder %s36, %s37
      %p48 = scmp.eq.s32.totalorder %s28, 0
      %p49 = por %p47, %p48
      %p50 = scmp.ne.s32.totalorder %s36, %s37
      %p51 = scmp.eq.s32.totalorder %s29, 1
      %p52 = por %p50, %p51
      %p54 = scmp.ne.s32.totalorder %s37, %s53
      %p55 = scmp.eq.s32.totalorder %s29, 0
      %p56 = por %p54, %p55
      %s58 = sadd.s32 %s57, 1
      %p61 = scmp.eq.s32.totalorder %s23, 1
      %p62 = scmp.ne.s32.totalorder %s57, %s59
      %p63 = scmp.eq.s32.totalorder %s23, 0
      %p64 = por %p62, %p63
      %p65 = scmp.ne.s32.totalorder %s57, %s59
      %p66 = scmp.eq.s32.totalorder %s28, 1
      %p67 = por %p65, %p66
      %p68 = scmp.ne.s32.totalorder %s59, %s60
      %p69 = scmp.eq.s32.totalorder %s28, 0
      %p70 = por %p68, %p69
      %p71 = scmp.ne.s32.totalorder %s59, %s60
      %p72 = scmp.eq.s32.totalorder %s29, 1
      %p73 = por %p71, %p72
      %p75 = scmp.ne.s32.totalorder %s60, %s74
      %p76 = scmp.eq.s32.totalorder %s29, 0
      %p77 = por %p75, %p76
      %s78 = ssub.s32 %s23, %s30
      %p79 = scmp.eq.s32.totalorder %s78, 0
      %s81 = sadd.s32 %s80, 1
      %s82 = scalar_select %p79, %s80, %s81
      %p85 = pneg %p79
      %p86 = scmp.eq.s32.totalorder %s23, 1
      %p87 = por %p85, %p86
      %p88 = scmp.ne.s32.totalorder %s80, %s83
      %p89 = scmp.eq.s32.totalorder %s23, 0
      %p90 = por %p88, %p89
      %p91 = scmp.ne.s32.totalorder %s80, %s83
      %p92 = scmp.eq.s32.totalorder %s28, 1
      %p93 = por %p91, %p92
      %p94 = scmp.ne.s32.totalorder %s83, %s84
      %p95 = scmp.eq.s32.totalorder %s28, 0
      %p96 = por %p94, %p95
      %p97 = scmp.ne.s32.totalorder %s83, %s84
      %p98 = scmp.eq.s32.totalorder %s29, 1
      %p99 = por %p97, %p98
      %p101 = scmp.ne.s32.totalorder %s84, %s100
      %p102 = scmp.eq.s32.totalorder %s29, 0
      %p103 = por %p101, %p102
      %s104 = ssub.s32 %s23, %s30
      %p105 = scmp.eq.s32.totalorder %s104, 0
      %s107 = sadd.s32 %s106, 1
      %s108 = scalar_select %p105, %s106, %s107
      %p111 = pneg %p105
      %p112 = scmp.eq.s32.totalorder %s23, 1
      %p113 = por %p111, %p112
      %p114 = scmp.ne.s32.totalorder %s106, %s109
      %p115 = scmp.eq.s32.totalorder %s23, 0
      %p116 = por %p114, %p115
      %p117 = scmp.ne.s32.totalorder %s106, %s109
      %p118 = scmp.eq.s32.totalorder %s28, 1
      %p119 = por %p117, %p118
      %p120 = scmp.ne.s32.totalorder %s109, %s110
      %p121 = scmp.eq.s32.totalorder %s28, 0
      %p122 = por %p120, %p121
      %p123 = scmp.ne.s32.totalorder %s109, %s110
      %p124 = scmp.eq.s32.totalorder %s29, 1
      %p125 = por %p123, %p124
      %p127 = scmp.ne.s32.totalorder %s110, %s126
      %p128 = scmp.eq.s32.totalorder %s29, 0
      %p129 = por %p127, %p128
      %s131 = sadd.s32 %s130, 1
      %p134 = scmp.eq.s32.totalorder %s23, 1
      %p135 = scmp.ne.s32.totalorder %s130, %s132
      %p136 = scmp.eq.s32.totalorder %s23, 0
      %p137 = por %p135, %p136
      %p138 = scmp.ne.s32.totalorder %s130, %s132
      %p139 = scmp.eq.s32.totalorder %s28, 1
      %p140 = por %p138, %p139
      %p141 = scmp.ne.s32.totalorder %s132, %s133
      %p142 = scmp.eq.s32.totalorder %s28, 0
      %p143 = por %p141, %p142
      %p144 = scmp.ne.s32.totalorder %s132, %s133
      %p145 = scmp.eq.s32.totalorder %s29, 1
      %p146 = por %p144, %p145
      %p148 = scmp.ne.s32.totalorder %s133, %s147
      %p149 = scmp.eq.s32.totalorder %s29, 0
      %p150 = por %p148, %p149
      %s151 = ssub.s32 %s23, %s30
      %p152 = scmp.eq.s32.totalorder %s151, 0
      %s154 = sadd.s32 %s153, 1
      %s155 = scalar_select %p152, %s153, %s154
      %p158 = pneg %p152
      %p159 = scmp.eq.s32.totalorder %s23, 1
      %p160 = por %p158, %p159
      %p161 = scmp.ne.s32.totalorder %s153, %s156
      %p162 = scmp.eq.s32.totalorder %s23, 0
      %p163 = por %p161, %p162
      %p164 = scmp.ne.s32.totalorder %s153, %s156
      %p165 = scmp.eq.s32.totalorder %s28, 1
      %p166 = por %p164, %p165
      %p167 = scmp.ne.s32.totalorder %s156, %s157
      %p168 = scmp.eq.s32.totalorder %s28, 0
      %p169 = por %p167, %p168
      %p170 = scmp.ne.s32.totalorder %s156, %s157
      %p171 = scmp.eq.s32.totalorder %s29, 1
      %p172 = por %p170, %p171
      %p174 = scmp.ne.s32.totalorder %s157, %s173
      %p175 = scmp.eq.s32.totalorder %s29, 0
      %p176 = por %p174, %p175
      %s177 = ssub.s32 %s23, %s30
      %p178 = scmp.eq.s32.totalorder %s177, 0
      %s180 = sadd.s32 %s179, 1
      %s181 = scalar_select %p178, %s179, %s180
      %p184 = pneg %p178
      %p185 = scmp.eq.s32.totalorder %s23, 1
      %p186 = por %p184, %p185
      %p187 = scmp.ne.s32.totalorder %s179, %s182
      %p188 = scmp.eq.s32.totalorder %s23, 0
      %p189 = por %p187, %p188
      %p190 = scmp.ne.s32.totalorder %s179, %s182
      %p191 = scmp.eq.s32.totalorder %s28, 1
      %p192 = por %p190, %p191
      %p193 = scmp.ne.s32.totalorder %s182, %s183
      %p194 = scmp.eq.s32.totalorder %s28, 0
      %p195 = por %p193, %p194
      %p196 = scmp.ne.s32.totalorder %s182, %s183
      %p197 = scmp.eq.s32.totalorder %s29, 1
      %p198 = por %p196, %p197
      %p200 = scmp.ne.s32.totalorder %s183, %s199
      %p201 = scmp.eq.s32.totalorder %s29, 0
      %p202 = por %p200, %p201
      %p203 = scmp.le.s32.totalorder 1, %s23
      %p204 = scmp.lt.s32.totalorder %s23, 3
      %p205 = pnand %p203, %p204
      %p206 = pneg %p205
      // Predicated region
      $region9: #{tpu_custom_call.1} parent=5 // pred_check
        _
      $region10: #{tpu_custom_call.1} parent=5 // pred_check_branch
        %208 = sbr.rel (%p205) target = $region12
      $region11: #{tpu_custom_call.1} parent=5 // pred_region
        %s209 = ssub.s32 %s23, 1
        // Predicated region
        $region13: #{tpu_custom_call.1} parent=11 // pred_check
          %p210 = pneg %p70
        $region14: #{tpu_custom_call.1} parent=11 // pred_check_branch
          %212 = sbr.rel (%p210) target = $region16
        $region15: #{tpu_custom_call.1} parent=11 // pred_region
          %s214 = ssub.s32 512, 512
          %215 = vsyncadd [#allocation6], %s214
          %s216 = sshll.u32 [#allocation5], 4
          %s217 = int_to_ptr.vmem [resolvable:$true] %s216
          %222 = dma.hbm_to_vmem [thread:$0]  %s1, 512, %s217, [#allocation6], 128, 128, 8
        $region16: #{tpu_custom_call.1} parent=11 // pred_fallthru
          _
        // Predicated region
        $region17: #{tpu_custom_call.1} parent=11 // pred_check
          %p223 = pneg %p143
        $region18: #{tpu_custom_call.1} parent=11 // pred_check_branch
          %225 = sbr.rel (%p223) target = $region20
        $region19: #{tpu_custom_call.1} parent=11 // pred_region
          %s227 = ssub.s32 192, 192
          %228 = vsyncadd [#allocation6], %s227
          %s229 = sshll.u32 [#allocation9], 4
          %s230 = int_to_ptr.vmem [resolvable:$true] %s229
          %235 = dma.hbm_to_vmem [thread:$0]  %s4, 192, %s230, [#allocation6], 64, 64, 4
        $region20: #{tpu_custom_call.1} parent=11 // pred_fallthru
          _
      $region12: #{tpu_custom_call.1} parent=5 // pred_fallthru
        _
      %p236 = scmp.lt.s32.totalorder %s23, 2
      // Predicated region
      $region21: #{tpu_custom_call.1} parent=5 // pred_check
        %p237 = pneg %p236
      $region22: #{tpu_custom_call.1} parent=5 // pred_check_branch
        %239 = sbr.rel (%p237) target = $region24
      $region23: #{tpu_custom_call.1} parent=5 // pred_region
        // Predicated region
        $region25: #{tpu_custom_call.1} parent=23 // pred_check
          %p240 = pneg %p43
        $region26: #{tpu_custom_call.1} parent=23 // pred_check_branch
          %242 = sbr.rel (%p240) target = $region28
        $region27: #{tpu_custom_call.1} parent=23 // pred_region
          %s243 = sand.u32 %s23, 1
          %s244 = scalar_lea.sflag [#allocation3], %s243
          %s245 = sand.u32 %s33, 1
          %s246 = smul.addr %s245, 32
          %s247 = scalar_lea.vmem [#allocation2], %s246
          %s248 = smul.u32 4, %s23
          %s250 = ssub.s32 512, 512
          %251 = vsyncadd %s244, %s250
          %s252 = smul.addr %s248, 128
          %s253 = scalar_lea.hbm %s0, %s252
          %s254 = sshll.u32 %s247, 4
          %s255 = int_to_ptr.vmem [resolvable:$true] %s254
          %260 = dma.hbm_to_vmem [thread:$0]  %s253, 512, %s255, %s244, 128, 128, 8
        $region28: #{tpu_custom_call.1} parent=23 // pred_fallthru
          _
        // Predicated region
        $region29: #{tpu_custom_call.1} parent=23 // pred_check
          %p261 = pneg %p90
        $region30: #{tpu_custom_call.1} parent=23 // pred_check_branch
          %263 = sbr.rel (%p261) target = $region32
        $region31: #{tpu_custom_call.1} parent=23 // pred_region
          %s264 = sand.u32 %s23, 1
          %s265 = scalar_lea.sflag [#allocation3], %s264
          %s266 = sand.u32 %s80, 1
          %s267 = smul.addr %s266, 16
          %s268 = scalar_lea.vmem [#allocation7], %s267
          %s269 = smul.u32 4, %s23
          %s271 = ssub.s32 256, 256
          %272 = vsyncadd %s265, %s271
          %s273 = smul.addr %s269, 64
          %s274 = scalar_lea.hbm %s2, %s273
          %s275 = sshll.u32 %s268, 4
          %s276 = int_to_ptr.vmem [resolvable:$true] %s275
          %281 = dma.hbm_to_vmem [thread:$0]  %s274, 256, %s276, %s265, 64, 64, 4
        $region32: #{tpu_custom_call.1} parent=23 // pred_fallthru
          _
        // Predicated region
        $region33: #{tpu_custom_call.1} parent=23 // pred_check
          %p282 = pneg %p116
        $region34: #{tpu_custom_call.1} parent=23 // pred_check_branch
          %284 = sbr.rel (%p282) target = $region36
        $region35: #{tpu_custom_call.1} parent=23 // pred_region
          %s285 = sand.u32 %s23, 1
          %s286 = scalar_lea.sflag [#allocation3], %s285
          %s287 = sand.u32 %s106, 1
          %s288 = smul.addr %s287, 16
          %s289 = scalar_lea.vmem [#allocation8], %s288
          %s290 = smul.u32 4, %s23
          %s292 = ssub.s32 256, 256
          %293 = vsyncadd %s286, %s292
          %s294 = smul.addr %s290, 64
          %s295 = scalar_lea.hbm %s3, %s294
          %s296 = sshll.u32 %s289, 4
          %s297 = int_to_ptr.vmem [resolvable:$true] %s296
          %302 = dma.hbm_to_vmem [thread:$0]  %s295, 256, %s297, %s286, 64, 64, 4
        $region36: #{tpu_custom_call.1} parent=23 // pred_fallthru
          _
      $region24: #{tpu_custom_call.1} parent=5 // pred_fallthru
        _
      %p303 = scmp.le.s32.totalorder 1, %s23
      %p304 = scmp.lt.s32.totalorder %s23, 3
      %p305 = pnand %p303, %p304
      %p306 = pneg %p305
      // Predicated region
      $region37: #{tpu_custom_call.1} parent=5 // pred_check
        _
      $region38: #{tpu_custom_call.1} parent=5 // pred_check_branch
        %308 = sbr.rel (%p305) target = $region40
      $region39: #{tpu_custom_call.1} parent=5 // pred_region
        %s309 = ssub.s32 %s23, 1
        %s310 = sand.u32 %s28, 1
        %s311 = scalar_lea.sflag [#allocation3], %s310
        %s312 = sand.u32 %s36, 1
        %s313 = smul.addr %s312, 32
        %s314 = scalar_lea.vmem [#allocation2], %s313
        // Predicated region
        $region41: #{tpu_custom_call.1} parent=39 // pred_check
          %p315 = pneg %p49
        $region42: #{tpu_custom_call.1} parent=39 // pred_check_branch
          %317 = sbr.rel (%p315) target = $region44
        $region43: #{tpu_custom_call.1} parent=39 // pred_region
          %318 = dma.done %s311, 512
        $region44: #{tpu_custom_call.1} parent=39 // pred_fallthru
          _
        // Predicated region
        $region45: #{tpu_custom_call.1} parent=39 // pred_check
          %p319 = pneg %p70
        $region46: #{tpu_custom_call.1} parent=39 // pred_check_branch
          %321 = sbr.rel (%p319) target = $region48
        $region47: #{tpu_custom_call.1} parent=39 // pred_region
          %322 = dma.done [#allocation6], 512
        $region48: #{tpu_custom_call.1} parent=39 // pred_fallthru
          _
        %s323 = sand.u32 %s28, 1
        %s324 = scalar_lea.sflag [#allocation3], %s323
        %s325 = sand.u32 %s83, 1
        %s326 = smul.addr %s325, 16
        %s327 = scalar_lea.vmem [#allocation7], %s326
        // Predicated region
        $region49: #{tpu_custom_call.1} parent=39 // pred_check
          %p328 = pneg %p96
        $region50: #{tpu_custom_call.1} parent=39 // pred_check_branch
          %330 = sbr.rel (%p328) target = $region52
        $region51: #{tpu_custom_call.1} parent=39 // pred_region
          %331 = dma.done %s324, 256
        $region52: #{tpu_custom_call.1} parent=39 // pred_fallthru
          _
        %s332 = sand.u32 %s28, 1
        %s333 = scalar_lea.sflag [#allocation3], %s332
        %s334 = sand.u32 %s109, 1
        %s335 = smul.addr %s334, 16
        %s336 = scalar_lea.vmem [#allocation8], %s335
        // Predicated region
        $region53: #{tpu_custom_call.1} parent=39 // pred_check
          %p337 = pneg %p122
        $region54: #{tpu_custom_call.1} parent=39 // pred_check_branch
          %339 = sbr.rel (%p337) target = $region56
        $region55: #{tpu_custom_call.1} parent=39 // pred_region
          %340 = dma.done %s333, 256
        $region56: #{tpu_custom_call.1} parent=39 // pred_fallthru
          _
        // Predicated region
        $region57: #{tpu_custom_call.1} parent=39 // pred_check
          %p341 = pneg %p143
        $region58: #{tpu_custom_call.1} parent=39 // pred_check_branch
          %343 = sbr.rel (%p341) target = $region60
        $region59: #{tpu_custom_call.1} parent=39 // pred_region
          %344 = dma.done [#allocation6], 192
        $region60: #{tpu_custom_call.1} parent=39 // pred_fallthru
          _
        %s345 = sand.u32 %s28, 1
        %s346 = scalar_lea.sflag [#allocation3], %s345
        %s347 = sand.u32 %s36, 1
        %s348 = smul.addr %s347, 32
        %s349 = scalar_lea.vmem [#allocation2], %s348
        %p350 = pneg %p49
        %p351 = pneg %p46
        %p352 = pneg %p70
        %p353 = pneg %p67
        %s354 = sand.u32 %s28, 1
        %s355 = scalar_lea.sflag [#allocation3], %s354
        %s356 = sand.u32 %s83, 1
        %s357 = smul.addr %s356, 16
        %s358 = scalar_lea.vmem [#allocation7], %s357
        %p359 = pneg %p96
        %p360 = pneg %p93
        %s361 = sand.u32 %s28, 1
        %s362 = scalar_lea.sflag [#allocation3], %s361
        %s363 = sand.u32 %s109, 1
        %s364 = smul.addr %s363, 16
        %s365 = scalar_lea.vmem [#allocation8], %s364
        %p366 = pneg %p122
        %p367 = pneg %p119
        %p368 = pneg %p143
        %p369 = pneg %p140
        %p370 = pneg %p169
        %p371 = pneg %p166
        %s372 = sand.u32 %s156, 1
        %s373 = scalar_lea.sflag [#allocation4], %s372
        %s374 = sand.u32 %s156, 1
        %s375 = smul.addr %s374, 32
        %s376 = scalar_lea.vmem [#allocation10], %s375
        %p377 = pneg %p195
        %p378 = pneg %p192
        %s379 = sand.u32 %s182, 1
        %s380 = scalar_lea.sflag [#allocation12], %s379
        %s381 = sand.u32 %s182, 1
        %s382 = smul.addr %s381, 32
        %s383 = scalar_lea.vmem [#allocation11], %s382
        %s384 = smul.u32 4, %s28
        %s385 = smul.u32 4, %s28
        %s386 = smul.u32 4, %s28
        %s387 = smul.u32 4, %s28
        %s388 = smul.u32 4, %s28
        %s390 = smul.u32 %s28, 32
        %v391 = vld [vmem:[%s314] sm:$0xff]
        %v392 = vld [vmem:[%s314 + $0x8] sm:$0xff]
        %v393 = vld [vmem:[%s314 + $0x10] sm:$0xff]
        %v394 = vld [vmem:[%s314 + $0x18] sm:$0xff]
        %v395 = vld [vmem:[#allocation5] sm:$0xff]
        %v396 = vld [vmem:[#allocation5 + $0x8] sm:$0xff]
        %v397 = vld [vmem:[#allocation5 + $0x10] sm:$0xff]
        %v398 = vld [vmem:[#allocation5 + $0x18] sm:$0xff]
        %v399 = vlaneseq
        %v400 = vshrl.u32 %v399, 7
        %v401 = vadd.s32 %v400, 8
        %v402 = vadd.s32 %v400, 16
        %v403 = vadd.s32 %v400, 24
        %v404 = vstv %s390
        %v405 = vadd.s32 %v400, %v404
        %v406 = vadd.s32 %v401, %v404
        %v407 = vadd.s32 %v402, %v404
        %v408 = vadd.s32 %v403, %v404
        %v409 = vlaneseq
        %v410 = vand.u32 %v409, 127
        %vm411 = vcmp.eq.s32.totalorder %v405, %v410
        %vm412 = vcmp.eq.s32.totalorder %v406, %v410
        %vm413 = vcmp.eq.s32.totalorder %v407, %v410
        %vm414 = vcmp.eq.s32.totalorder %v408, %v410
        %v415 = vsel %vm411, 10.0, 0.0
        %v416 = vsel %vm412, 10.0, 0.0
        %v417 = vsel %vm413, 10.0, 0.0
        %v418 = vsel %vm414, 10.0, 0.0
        %vm419 = vcmask 261120
        %v421 = vsel %vm419, %v391, 0
        %v424 = vsel %vm419, %v392, 0
        %v427 = vsel %vm419, %v393, 0
        %v430 = vsel %vm419, %v394, 0
        %432 = vmatprep.subr.mxu0 0.0
        %433 = vmatpush1.msra.mxu0 %v395
        %434 = vmatprep.subr.mxu0 0.0
        %435 = vmatpush1.msra.mxu0 %v396
        %436 = vmatprep.subr.mxu0 0.0
        %437 = vmatpush1.msra.mxu0 %v397
        %438 = vmatprep.subr.mxu0 0.0
        %439 = vmatpush1.msra.mxu0 %v398
        %440 = vmatprep.subr.mxu0 0.0
        %441 = vmatpush1.msra.mxu0 0.0
        %442 = vmatprep.subr.mxu0 0.0
        %443 = vmatpush1.msra.mxu0 0.0
        %444 = vmatprep.subr.mxu0 0.0
        %445 = vmatpush1.msra.mxu0 0.0
        %446 = vmatprep.subr.mxu0 0.0
        %447 = vmatpush1.msra.mxu0 0.0
        %448 = vmatprep.subr.mxu0 0.0
        %449 = vmatpush1.msra.mxu0 0.0
        %450 = vmatprep.subr.mxu0 0.0
        %451 = vmatpush1.msra.mxu0 0.0
        %452 = vmatprep.subr.mxu0 0.0
        %453 = vmatpush1.msra.mxu0 0.0
        %454 = vmatprep.subr.mxu0 0.0
        %455 = vmatpush1.msra.mxu0 0.0
        %456 = vmatprep.subr.mxu0 0.0
        %457 = vmatpush1.msra.mxu0 0.0
        %458 = vmatprep.subr.mxu0 0.0
        %459 = vmatpush1.msra.mxu0 0.0
        %460 = vmatprep.subr.mxu0 0.0
        %461 = vmatpush1.msra.mxu0 0.0
        %462 = vmatprep.subr.mxu0 0.0
        %463 = vmatpush1.msra.mxu0 0.0
        %464 = vmatprep.subr.mxu0 0.0
        %465 = vmatpush1.msra.mxu0 0.0
        %466 = vmatprep.subr.mxu0 0.0
        %467 = vmatpush1.msra.mxu0 0.0
        %468 = vmatprep.subr.mxu0 0.0
        %469 = vmatpush1.msra.mxu0 0.0
        %470 = vmatprep.subr.mxu0 0.0
        %471 = vmatpush1.msra.mxu0 0.0
        %472 = vmatprep.subr.mxu0 0.0
        %473 = vmatpush1.msra.mxu0 0.0
        %474 = vmatprep.subr.mxu0 0.0
        %475 = vmatpush1.msra.mxu0 0.0
        %476 = vmatprep.subr.mxu0 0.0
        %477 = vmatpush1.msra.mxu0 0.0
        %478 = vmatprep.subr.mxu0 0.0
        %479 = vmatpush1.msra.mxu0 0.0
        %480 = vmatprep.subr.mxu0 0.0
        %481 = vmatpush1.msra.mxu0 0.0
        %482 = vmatprep.subr.mxu0 0.0
        %483 = vmatpush1.msra.mxu0 0.0
        %484 = vmatprep.subr.mxu0 0.0
        %485 = vmatpush1.msra.mxu0 0.0
        %486 = vmatprep.subr.mxu0 0.0
        %487 = vmatpush1.msra.mxu0 0.0
        %488 = vmatprep.subr.mxu0 0.0
        %489 = vmatpush1.msra.mxu0 0.0
        %490 = vmatprep.subr.mxu0 0.0
        %491 = vmatpush1.msra.mxu0 0.0
        %492 = vmatprep.subr.mxu0 0.0
        %493 = vmatpush1.msra.mxu0 0.0
        %494 = vmatprep.subr.mxu0 0.0
        %495 = vmatpush1.msra.mxu0 0.0
        %496 = vmatprep.mubr.f32.mxu0 0.0
        %497 = vmatmul.mubr.f32.gmra.mrb[0].mxu0 %v421
        %v498 = vpop.f32.mrb[0].mxu0
        %v499 = vadd.f32 %v415, %v498
        %v500 = vpop.f32.mrb[0].mxu0
        %501 = vmatprep.mubr.f32.mxu0 0.0
        %502 = vmatmul.mubr.f32.gmra.mrb[0].mxu0 %v424
        %v503 = vpop.f32.mrb[0].mxu0
        %v504 = vadd.f32 %v416, %v503
        %v505 = vpop.f32.mrb[0].mxu0
        %506 = vmatprep.mubr.f32.mxu0 0.0
        %507 = vmatmul.mubr.f32.gmra.mrb[0].mxu0 %v427
        %v508 = vpop.f32.mrb[0].mxu0
        %v509 = vadd.f32 %v417, %v508
        %v510 = vpop.f32.mrb[0].mxu0
        %511 = vmatprep.mubr.f32.mxu0 0.0
        %512 = vmatmul.mubr.f32.gmra.mrb[0].mxu0 %v430
        %v513 = vpop.f32.mrb[0].mxu0
        %v514 = vadd.f32 %v418, %v513
        %v515 = vpop.f32.mrb[0].mxu0
        %516 = vdwg.mxu0
        %v517 = vld [vmem:[%s336] sm:$0xf]
        %v518 = vld [vmem:[%s336 + $0x4] sm:$0xf]
        %v519 = vld [vmem:[%s336 + $0x8] sm:$0xf]
        %v520 = vld [vmem:[%s336 + $0xc] sm:$0xf]
        %v521 = vld [vmem:[#allocation9] sm:$0xf]
        %v522 = vld [vmem:[#allocation9 + $0x4] sm:$0xf]
        %v523 = vld [vmem:[#allocation9 + $0x8] sm:$0x3]
        %v528 = vunpack.c.l.b16 %v517
        %v529 = vunpack.c.l.b16 %v518
        %v530 = vunpack.c.l.b16 %v519
        %v531 = vunpack.c.l.b16 %v520
        %v532 = vpack.c.b16 %v529, %v528
        %v533 = vpack.c.b16 %v531, %v530
        %v537 = vunpack.c.l.b16 %v521
        %v538 = vunpack.c.l.b16 %v522
        %v539 = vunpack.c.l.b16 %v523
        %v540 = vpack.c.b16 %v538, %v537
        %v541 = vpack.c.b16 %v539, %v539
        %vm543 = vcmask 162816
        %v545 = vsel %vm543, %v532, 0
        %v548 = vsel %vm543, %v533, 0
        %vm550 = vcmask 1041408
        %v552 = vsel %vm550, %v541, 0
        %554 = vmatprep.subr.bf16.mxu0 0
        %555 = vmatpush1.bf16.msra.mxu0 %v540
        %556 = vmatprep.subr.bf16.mxu0 0
        %557 = vmatpush1.bf16.msra.mxu0 %v552
        %558 = vmatprep.subr.bf16.mxu0 0
        %559 = vmatpush1.bf16.msra.mxu0 0
        %560 = vmatprep.subr.bf16.mxu0 0
        %561 = vmatpush1.bf16.msra.mxu0 0
        %562 = vmatprep.subr.bf16.mxu0 0
        %563 = vmatpush1.bf16.msra.mxu0 0
        %564 = vmatprep.subr.bf16.mxu0 0
        %565 = vmatpush1.bf16.msra.mxu0 0
        %566 = vmatprep.subr.bf16.mxu0 0
        %567 = vmatpush1.bf16.msra.mxu0 0
        %568 = vmatprep.subr.bf16.mxu0 0
        %569 = vmatpush1.bf16.msra.mxu0 0
        %570 = vmatprep.subr.bf16.mxu0 0
        %571 = vmatpush1.bf16.msra.mxu0 0
        %572 = vmatprep.subr.bf16.mxu0 0
        %573 = vmatpush1.bf16.msra.mxu0 0
        %574 = vmatprep.subr.bf16.mxu0 0
        %575 = vmatpush1.bf16.msra.mxu0 0
        %576 = vmatprep.subr.bf16.mxu0 0
        %577 = vmatpush1.bf16.msra.mxu0 0
        %578 = vmatprep.subr.bf16.mxu0 0
        %579 = vmatpush1.bf16.msra.mxu0 0
        %580 = vmatprep.subr.bf16.mxu0 0
        %581 = vmatpush1.bf16.msra.mxu0 0
        %582 = vmatprep.subr.bf16.mxu0 0
        %583 = vmatpush1.bf16.msra.mxu0 0
        %584 = vmatprep.subr.bf16.mxu0 0
        %585 = vmatpush1.bf16.msra.mxu0 0
        %586 = vmatprep.mubr.bf16.mxu0 0
        %587 = vmatmul.mubr.bf16.gmra.mrb[0].mxu0 %v545
        %v588 = vpop.f32.mrb[0].mxu0
        %v589 = vadd.f32 0.0, %v588
        %v590 = vpop.f32.mrb[0].mxu0
        %v591 = vpop.f32.mrb[0].mxu0
        %v592 = vadd.f32 0.0, %v591
        %v593 = vpop.f32.mrb[0].mxu0
        %594 = vmatprep.mubr.bf16.mxu0 0
        %595 = vmatmul.mubr.bf16.gmra.mrb[0].mxu0 %v548
        %v596 = vpop.f32.mrb[0].mxu0
        %v597 = vadd.f32 0.0, %v596
        %v598 = vpop.f32.mrb[0].mxu0
        %v599 = vpop.f32.mrb[0].mxu0
        %v600 = vadd.f32 0.0, %v599
        %v601 = vpop.f32.mrb[0].mxu0
        %602 = vdwg.mxu0
        %v603 = vld [vmem:[%s327] sm:$0xf]
        %v604 = vld [vmem:[%s327 + $0x4] sm:$0xf]
        %v605 = vld [vmem:[%s327 + $0x8] sm:$0xf]
        %v606 = vld [vmem:[%s327 + $0xc] sm:$0xf]
        %v607 = vunpack.c.l.bf16 %v603
        %v608 = vunpack.c.l.bf16 %v604
        %v609 = vunpack.c.l.bf16 %v605
        %v610 = vunpack.c.l.bf16 %v606
        %vm611 = vcmp.gt.f32.partialorder %v589, 0.0
        %vm612 = vcmp.gt.f32.partialorder %v592, 0.0
        %vm613 = vcmp.gt.f32.partialorder %v597, 0.0
        %vm614 = vcmp.gt.f32.partialorder %v600, 0.0
        %v615 = vsel %vm611, 1, 0
        %v616 = vsel %vm612, 1, 0
        %v617 = vsel %vm613, 1, 0
        %v618 = vsel %vm614, 1, 0
        %v619 = vcvt.s32.f32 %v615
        %v620 = vcvt.s32.f32 %v616
        %v621 = vcvt.s32.f32 %v617
        %v622 = vcvt.s32.f32 %v618
        %v623 = vadd.f32 %v607, %v619
        %v624 = vadd.f32 %v608, %v620
        %v625 = vadd.f32 %v609, %v621
        %v626 = vadd.f32 %v610, %v622
        %vm627 = vcmask 523264
        %v628 = vsel %vm627, %v499, -inf
        %629 = vmax.xlane.f32.xlu0 %v628
        %v630 = vpop.xlane.xlu0 %629
        %v631 = vsel %vm627, %v504, -inf
        %632 = vmax.xlane.f32.xlu0 %v631
        %v633 = vpop.xlane.xlu0 %632
        %v634 = vsel %vm627, %v509, -inf
        %635 = vmax.xlane.f32.xlu0 %v634
        %v636 = vpop.xlane.xlu0 %635
        %v637 = vsel %vm627, %v514, -inf
        %638 = vmax.xlane.f32.xlu0 %v637
        %v639 = vpop.xlane.xlu0 %638
        %vm640 = vcmp.eq.f32.partialorder %v499, %v630
        %vm641 = vcmp.eq.f32.partialorder %v504, %v633
        %vm642 = vcmp.eq.f32.partialorder %v509, %v636
        %vm643 = vcmp.eq.f32.partialorder %v514, %v639
        %v644 = vsel %vm640, %v410, 64
        %v645 = vsel %vm641, %v410, 64
        %v646 = vsel %vm642, %v410, 64
        %v647 = vsel %vm643, %v410, 64
        %v648 = vsel %vm627, %v644, 2147483647
        %v649 = vand.u32 %v648, 65535
        %v650 = vshra.s32 %v648, 16
        %v651 = vcvt.s32.f32 %v649
        %v652 = vcvt.s32.f32 %v650
        %653 = vmin.xlane.f32.xlu0 %v652
        %v654 = vpop.xlane.xlu0 %653
        %vm655 = vcmp.eq.f32.partialorder %v652, %v654
        %v656 = vsel %vm655, %v651, inf
        %657 = vmin.xlane.f32.xlu0 %v656
        %v658 = vpop.xlane.xlu0 %657
        %v659 = vcvt.f32.s32 %v658
        %v660 = vcvt.f32.s32 %v654
        %v661 = vshll.u32 %v660, 16
        %v662 = vadd.s32 %v661, %v659
        %v663 = vsel %vm627, %v645, 2147483647
        %v664 = vand.u32 %v663, 65535
        %v665 = vshra.s32 %v663, 16
        %v666 = vcvt.s32.f32 %v664
        %v667 = vcvt.s32.f32 %v665
        %668 = vmin.xlane.f32.xlu0 %v667
        %v669 = vpop.xlane.xlu0 %668
        %vm670 = vcmp.eq.f32.partialorder %v667, %v669
        %v671 = vsel %vm670, %v666, inf
        %672 = vmin.xlane.f32.xlu0 %v671
        %v673 = vpop.xlane.xlu0 %672
        %v674 = vcvt.f32.s32 %v673
        %v675 = vcvt.f32.s32 %v669
        %v676 = vshll.u32 %v675, 16
        %v677 = vadd.s32 %v676, %v674
        %v678 = vsel %vm627, %v646, 2147483647
        %v679 = vand.u32 %v678, 65535
        %v680 = vshra.s32 %v678, 16
        %v681 = vcvt.s32.f32 %v679
        %v682 = vcvt.s32.f32 %v680
        %683 = vmin.xlane.f32.xlu0 %v682
        %v684 = vpop.xlane.xlu0 %683
        %vm685 = vcmp.eq.f32.partialorder %v682, %v684
        %v686 = vsel %vm685, %v681, inf
        %687 = vmin.xlane.f32.xlu0 %v686
        %v688 = vpop.xlane.xlu0 %687
        %v689 = vcvt.f32.s32 %v688
        %v690 = vcvt.f32.s32 %v684
        %v691 = vshll.u32 %v690, 16
        %v692 = vadd.s32 %v691, %v689
        %v693 = vsel %vm627, %v647, 2147483647
        %v694 = vand.u32 %v693, 65535
        %v695 = vshra.s32 %v693, 16
        %v696 = vcvt.s32.f32 %v694
        %v697 = vcvt.s32.f32 %v695
        %698 = vmin.xlane.f32.xlu0 %v697
        %v699 = vpop.xlane.xlu0 %698
        %vm700 = vcmp.eq.f32.partialorder %v697, %v699
        %v701 = vsel %vm700, %v696, inf
        %702 = vmin.xlane.f32.xlu0 %v701
        %v703 = vpop.xlane.xlu0 %702
        %v704 = vcvt.f32.s32 %v703
        %v705 = vcvt.f32.s32 %v699
        %v706 = vshll.u32 %v705, 16
        %v707 = vadd.s32 %v706, %v704
        %vm708 = vcmp.eq.s32.totalorder %v410, %v662
        %vm709 = vcmp.eq.s32.totalorder %v410, %v677
        %vm710 = vcmp.eq.s32.totalorder %v410, %v692
        %vm711 = vcmp.eq.s32.totalorder %v410, %v707
        %v712 = vsel %vm708, %v623, 0.0
        %v713 = vsel %vm709, %v624, 0.0
        %v714 = vsel %vm710, %v625, 0.0
        %v715 = vsel %vm711, %v626, 0.0
        %v716 = vsel %vm627, %v712, 0.0
        %717 = vadd.xlane.f32.xlu0 %v716
        %v718 = vpop.xlane.xlu0 %717
        %v719 = vsel %vm627, %v713, 0.0
        %720 = vadd.xlane.f32.xlu0 %v719
        %v721 = vpop.xlane.xlu0 %720
        %v722 = vsel %vm627, %v714, 0.0
        %723 = vadd.xlane.f32.xlu0 %v722
        %v724 = vpop.xlane.xlu0 %723
        %v725 = vsel %vm627, %v715, 0.0
        %726 = vadd.xlane.f32.xlu0 %v725
        %v727 = vpop.xlane.xlu0 %726
        %v728 = vsel %vm708, -1e+30, %v499
        %v729 = vsel %vm709, -1e+30, %v504
        %v730 = vsel %vm710, -1e+30, %v509
        %v731 = vsel %vm711, -1e+30, %v514
        %vm732 = vcmp.eq.s32.totalorder %v410, 0
        %v733 = vsel %vm732, %v662, 0
        %v734 = vsel %vm732, %v677, 0
        %v735 = vsel %vm732, %v692, 0
        %v736 = vsel %vm732, %v707, 0
        %v737 = vsel %vm732, %v718, 0.0
        %v738 = vsel %vm732, %v721, 0.0
        %v739 = vsel %vm732, %v724, 0.0
        %v740 = vsel %vm732, %v727, 0.0
        %v741 = vsel %vm627, %v728, -inf
        %742 = vmax.xlane.f32.xlu0 %v741
        %v743 = vpop.xlane.xlu0 %742
        %v744 = vsel %vm627, %v729, -inf
        %745 = vmax.xlane.f32.xlu0 %v744
        %v746 = vpop.xlane.xlu0 %745
        %v747 = vsel %vm627, %v730, -inf
        %748 = vmax.xlane.f32.xlu0 %v747
        %v749 = vpop.xlane.xlu0 %748
        %v750 = vsel %vm627, %v731, -inf
        %751 = vmax.xlane.f32.xlu0 %v750
        %v752 = vpop.xlane.xlu0 %751
        %vm753 = vcmp.eq.f32.partialorder %v728, %v743
        %vm754 = vcmp.eq.f32.partialorder %v729, %v746
        %vm755 = vcmp.eq.f32.partialorder %v730, %v749
        %vm756 = vcmp.eq.f32.partialorder %v731, %v752
        %v757 = vsel %vm753, %v410, 64
        %v758 = vsel %vm754, %v410, 64
        %v759 = vsel %vm755, %v410, 64
        %v760 = vsel %vm756, %v410, 64
        %v761 = vsel %vm627, %v757, 2147483647
        %v762 = vand.u32 %v761, 65535
        %v763 = vshra.s32 %v761, 16
        %v764 = vcvt.s32.f32 %v762
        %v765 = vcvt.s32.f32 %v763
        %766 = vmin.xlane.f32.xlu0 %v765
        %v767 = vpop.xlane.xlu0 %766
        %vm768 = vcmp.eq.f32.partialorder %v765, %v767
        %v769 = vsel %vm768, %v764, inf
        %770 = vmin.xlane.f32.xlu0 %v769
        %v771 = vpop.xlane.xlu0 %770
        %v772 = vcvt.f32.s32 %v771
        %v773 = vcvt.f32.s32 %v767
        %v774 = vshll.u32 %v773, 16
        %v775 = vadd.s32 %v774, %v772
        %v776 = vsel %vm627, %v758, 2147483647
        %v777 = vand.u32 %v776, 65535
        %v778 = vshra.s32 %v776, 16
        %v779 = vcvt.s32.f32 %v777
        %v780 = vcvt.s32.f32 %v778
        %781 = vmin.xlane.f32.xlu0 %v780
        %v782 = vpop.xlane.xlu0 %781
        %vm783 = vcmp.eq.f32.partialorder %v780, %v782
        %v784 = vsel %vm783, %v779, inf
        %785 = vmin.xlane.f32.xlu0 %v784
        %v786 = vpop.xlane.xlu0 %785
        %v787 = vcvt.f32.s32 %v786
        %v788 = vcvt.f32.s32 %v782
        %v789 = vshll.u32 %v788, 16
        %v790 = vadd.s32 %v789, %v787
        %v791 = vsel %vm627, %v759, 2147483647
        %v792 = vand.u32 %v791, 65535
        %v793 = vshra.s32 %v791, 16
        %v794 = vcvt.s32.f32 %v792
        %v795 = vcvt.s32.f32 %v793
        %796 = vmin.xlane.f32.xlu0 %v795
        %v797 = vpop.xlane.xlu0 %796
        %vm798 = vcmp.eq.f32.partialorder %v795, %v797
        %v799 = vsel %vm798, %v794, inf
        %800 = vmin.xlane.f32.xlu0 %v799
        %v801 = vpop.xlane.xlu0 %800
        %v802 = vcvt.f32.s32 %v801
        %v803 = vcvt.f32.s32 %v797
        %v804 = vshll.u32 %v803, 16
        %v805 = vadd.s32 %v804, %v802
        %v806 = vsel %vm627, %v760, 2147483647
        %v807 = vand.u32 %v806, 65535
        %v808 = vshra.s32 %v806, 16
        %v809 = vcvt.s32.f32 %v807
        %v810 = vcvt.s32.f32 %v808
        %811 = vmin.xlane.f32.xlu0 %v810
        %v812 = vpop.xlane.xlu0 %811
        %vm813 = vcmp.eq.f32.partialorder %v810, %v812
        %v814 = vsel %vm813, %v809, inf
        %815 = vmin.xlane.f32.xlu0 %v814
        %v816 = vpop.xlane.xlu0 %815
        %v817 = vcvt.f32.s32 %v816
        %v818 = vcvt.f32.s32 %v812
        %v819 = vshll.u32 %v818, 16
        %v820 = vadd.s32 %v819, %v817
        %vm821 = vcmp.eq.s32.totalorder %v410, %v775
        %vm822 = vcmp.eq.s32.totalorder %v410, %v790
        %vm823 = vcmp.eq.s32.totalorder %v410, %v805
        %vm824 = vcmp.eq.s32.totalorder %v410, %v820
        %v825 = vsel %vm821, %v623, 0.0
        %v826 = vsel %vm822, %v624, 0.0
        %v827 = vsel %vm823, %v625, 0.0
        %v828 = vsel %vm824, %v626, 0.0
        %v829 = vsel %vm627, %v825, 0.0
        %830 = vadd.xlane.f32.xlu0 %v829
        %v831 = vpop.xlane.xlu0 %830
        %v832 = vsel %vm627, %v826, 0.0
        %833 = vadd.xlane.f32.xlu0 %v832
        %v834 = vpop.xlane.xlu0 %833
        %v835 = vsel %vm627, %v827, 0.0
        %836 = vadd.xlane.f32.xlu0 %v835
        %v837 = vpop.xlane.xlu0 %836
        %v838 = vsel %vm627, %v828, 0.0
        %839 = vadd.xlane.f32.xlu0 %v838
        %v840 = vpop.xlane.xlu0 %839
        %v841 = vsel %vm821, -1e+30, %v728
        %v842 = vsel %vm822, -1e+30, %v729
        %v843 = vsel %vm823, -1e+30, %v730
        %v844 = vsel %vm824, -1e+30, %v731
        %vm845 = vcmp.eq.s32.totalorder %v410, 1
        %v846 = vsel %vm845, %v775, %v733
        %v847 = vsel %vm845, %v790, %v734
        %v848 = vsel %vm845, %v805, %v735
        %v849 = vsel %vm845, %v820, %v736
        %v850 = vsel %vm845, %v831, %v737
        %v851 = vsel %vm845, %v834, %v738
        %v852 = vsel %vm845, %v837, %v739
        %v853 = vsel %vm845, %v840, %v740
        %v854 = vsel %vm627, %v841, -inf
        %855 = vmax.xlane.f32.xlu0 %v854
        %v856 = vpop.xlane.xlu0 %855
        %v857 = vsel %vm627, %v842, -inf
        %858 = vmax.xlane.f32.xlu0 %v857
        %v859 = vpop.xlane.xlu0 %858
        %v860 = vsel %vm627, %v843, -inf
        %861 = vmax.xlane.f32.xlu0 %v860
        %v862 = vpop.xlane.xlu0 %861
        %v863 = vsel %vm627, %v844, -inf
        %864 = vmax.xlane.f32.xlu0 %v863
        %v865 = vpop.xlane.xlu0 %864
        %vm866 = vcmp.eq.f32.partialorder %v841, %v856
        %vm867 = vcmp.eq.f32.partialorder %v842, %v859
        %vm868 = vcmp.eq.f32.partialorder %v843, %v862
        %vm869 = vcmp.eq.f32.partialorder %v844, %v865
        %v870 = vsel %vm866, %v410, 64
        %v871 = vsel %vm867, %v410, 64
        %v872 = vsel %vm868, %v410, 64
        %v873 = vsel %vm869, %v410, 64
        %v874 = vsel %vm627, %v870, 2147483647
        %v875 = vand.u32 %v874, 65535
        %v876 = vshra.s32 %v874, 16
        %v877 = vcvt.s32.f32 %v875
        %v878 = vcvt.s32.f32 %v876
        %879 = vmin.xlane.f32.xlu0 %v878
        %v880 = vpop.xlane.xlu0 %879
        %vm881 = vcmp.eq.f32.partialorder %v878, %v880
        %v882 = vsel %vm881, %v877, inf
        %883 = vmin.xlane.f32.xlu0 %v882
        %v884 = vpop.xlane.xlu0 %883
        %v885 = vcvt.f32.s32 %v884
        %v886 = vcvt.f32.s32 %v880
        %v887 = vshll.u32 %v886, 16
        %v888 = vadd.s32 %v887, %v885
        %v889 = vsel %vm627, %v871, 2147483647
        %v890 = vand.u32 %v889, 65535
        %v891 = vshra.s32 %v889, 16
        %v892 = vcvt.s32.f32 %v890
        %v893 = vcvt.s32.f32 %v891
        %894 = vmin.xlane.f32.xlu0 %v893
        %v895 = vpop.xlane.xlu0 %894
        %vm896 = vcmp.eq.f32.partialorder %v893, %v895
        %v897 = vsel %vm896, %v892, inf
        %898 = vmin.xlane.f32.xlu0 %v897
        %v899 = vpop.xlane.xlu0 %898
        %v900 = vcvt.f32.s32 %v899
        %v901 = vcvt.f32.s32 %v895
        %v902 = vshll.u32 %v901, 16
        %v903 = vadd.s32 %v902, %v900
        %v904 = vsel %vm627, %v872, 2147483647
        %v905 = vand.u32 %v904, 65535
        %v906 = vshra.s32 %v904, 16
        %v907 = vcvt.s32.f32 %v905
        %v908 = vcvt.s32.f32 %v906
        %909 = vmin.xlane.f32.xlu0 %v908
        %v910 = vpop.xlane.xlu0 %909
        %vm911 = vcmp.eq.f32.partialorder %v908, %v910
        %v912 = vsel %vm911, %v907, inf
        %913 = vmin.xlane.f32.xlu0 %v912
        %v914 = vpop.xlane.xlu0 %913
        %v915 = vcvt.f32.s32 %v914
        %v916 = vcvt.f32.s32 %v910
        %v917 = vshll.u32 %v916, 16
        %v918 = vadd.s32 %v917, %v915
        %v919 = vsel %vm627, %v873, 2147483647
        %v920 = vand.u32 %v919, 65535
        %v921 = vshra.s32 %v919, 16
        %v922 = vcvt.s32.f32 %v920
        %v923 = vcvt.s32.f32 %v921
        %924 = vmin.xlane.f32.xlu0 %v923
        %v925 = vpop.xlane.xlu0 %924
        %vm926 = vcmp.eq.f32.partialorder %v923, %v925
        %v927 = vsel %vm926, %v922, inf
        %928 = vmin.xlane.f32.xlu0 %v927
        %v929 = vpop.xlane.xlu0 %928
        %v930 = vcvt.f32.s32 %v929
        %v931 = vcvt.f32.s32 %v925
        %v932 = vshll.u32 %v931, 16
        %v933 = vadd.s32 %v932, %v930
        %vm934 = vcmp.eq.s32.totalorder %v410, %v888
        %vm935 = vcmp.eq.s32.totalorder %v410, %v903
        %vm936 = vcmp.eq.s32.totalorder %v410, %v918
        %vm937 = vcmp.eq.s32.totalorder %v410, %v933
        %v938 = vsel %vm934, %v623, 0.0
        %v939 = vsel %vm935, %v624, 0.0
        %v940 = vsel %vm936, %v625, 0.0
        %v941 = vsel %vm937, %v626, 0.0
        %v942 = vsel %vm627, %v938, 0.0
        %943 = vadd.xlane.f32.xlu0 %v942
        %v944 = vpop.xlane.xlu0 %943
        %v945 = vsel %vm627, %v939, 0.0
        %946 = vadd.xlane.f32.xlu0 %v945
        %v947 = vpop.xlane.xlu0 %946
        %v948 = vsel %vm627, %v940, 0.0
        %949 = vadd.xlane.f32.xlu0 %v948
        %v950 = vpop.xlane.xlu0 %949
        %v951 = vsel %vm627, %v941, 0.0
        %952 = vadd.xlane.f32.xlu0 %v951
        %v953 = vpop.xlane.xlu0 %952
        %v954 = vsel %vm934, -1e+30, %v841
        %v955 = vsel %vm935, -1e+30, %v842
        %v956 = vsel %vm936, -1e+30, %v843
        %v957 = vsel %vm937, -1e+30, %v844
        %vm958 = vcmp.eq.s32.totalorder %v410, 2
        %v959 = vsel %vm958, %v888, %v846
        %v960 = vsel %vm958, %v903, %v847
        %v961 = vsel %vm958, %v918, %v848
        %v962 = vsel %vm958, %v933, %v849
        %v963 = vsel %vm958, %v944, %v850
        %v964 = vsel %vm958, %v947, %v851
        %v965 = vsel %vm958, %v950, %v852
        %v966 = vsel %vm958, %v953, %v853
        %v967 = vsel %vm627, %v954, -inf
        %968 = vmax.xlane.f32.xlu0 %v967
        %v969 = vpop.xlane.xlu0 %968
        %v970 = vsel %vm627, %v955, -inf
        %971 = vmax.xlane.f32.xlu0 %v970
        %v972 = vpop.xlane.xlu0 %971
        %v973 = vsel %vm627, %v956, -inf
        %974 = vmax.xlane.f32.xlu0 %v973
        %v975 = vpop.xlane.xlu0 %974
        %v976 = vsel %vm627, %v957, -inf
        %977 = vmax.xlane.f32.xlu0 %v976
        %v978 = vpop.xlane.xlu0 %977
        %vm979 = vcmp.eq.f32.partialorder %v954, %v969
        %vm980 = vcmp.eq.f32.partialorder %v955, %v972
        %vm981 = vcmp.eq.f32.partialorder %v956, %v975
        %vm982 = vcmp.eq.f32.partialorder %v957, %v978
        %v983 = vsel %vm979, %v410, 64
        %v984 = vsel %vm980, %v410, 64
        %v985 = vsel %vm981, %v410, 64
        %v986 = vsel %vm982, %v410, 64
        %v987 = vsel %vm627, %v983, 2147483647
        %v988 = vand.u32 %v987, 65535
        %v989 = vshra.s32 %v987, 16
        %v990 = vcvt.s32.f32 %v988
        %v991 = vcvt.s32.f32 %v989
        %992 = vmin.xlane.f32.xlu0 %v991
        %v993 = vpop.xlane.xlu0 %992
        %vm994 = vcmp.eq.f32.partialorder %v991, %v993
        %v995 = vsel %vm994, %v990, inf
        %996 = vmin.xlane.f32.xlu0 %v995
        %v997 = vpop.xlane.xlu0 %996
        %v998 = vcvt.f32.s32 %v997
        %v999 = vcvt.f32.s32 %v993
        %v1000 = vshll.u32 %v999, 16
        %v1001 = vadd.s32 %v1000, %v998
        %v1002 = vsel %vm627, %v984, 2147483647
        %v1003 = vand.u32 %v1002, 65535
        %v1004 = vshra.s32 %v1002, 16
        %v1005 = vcvt.s32.f32 %v1003
        %v1006 = vcvt.s32.f32 %v1004
        %1007 = vmin.xlane.f32.xlu0 %v1006
        %v1008 = vpop.xlane.xlu0 %1007
        %vm1009 = vcmp.eq.f32.partialorder %v1006, %v1008
        %v1010 = vsel %vm1009, %v1005, inf
        %1011 = vmin.xlane.f32.xlu0 %v1010
        %v1012 = vpop.xlane.xlu0 %1011
        %v1013 = vcvt.f32.s32 %v1012
        %v1014 = vcvt.f32.s32 %v1008
        %v1015 = vshll.u32 %v1014, 16
        %v1016 = vadd.s32 %v1015, %v1013
        %v1017 = vsel %vm627, %v985, 2147483647
        %v1018 = vand.u32 %v1017, 65535
        %v1019 = vshra.s32 %v1017, 16
        %v1020 = vcvt.s32.f32 %v1018
        %v1021 = vcvt.s32.f32 %v1019
        %1022 = vmin.xlane.f32.xlu0 %v1021
        %v1023 = vpop.xlane.xlu0 %1022
        %vm1024 = vcmp.eq.f32.partialorder %v1021, %v1023
        %v1025 = vsel %vm1024, %v1020, inf
        %1026 = vmin.xlane.f32.xlu0 %v1025
        %v1027 = vpop.xlane.xlu0 %1026
        %v1028 = vcvt.f32.s32 %v1027
        %v1029 = vcvt.f32.s32 %v1023
        %v1030 = vshll.u32 %v1029, 16
        %v1031 = vadd.s32 %v1030, %v1028
        %v1032 = vsel %vm627, %v986, 2147483647
        %v1033 = vand.u32 %v1032, 65535
        %v1034 = vshra.s32 %v1032, 16
        %v1035 = vcvt.s32.f32 %v1033
        %v1036 = vcvt.s32.f32 %v1034
        %1037 = vmin.xlane.f32.xlu0 %v1036
        %v1038 = vpop.xlane.xlu0 %1037
        %vm1039 = vcmp.eq.f32.partialorder %v1036, %v1038
        %v1040 = vsel %vm1039, %v1035, inf
        %1041 = vmin.xlane.f32.xlu0 %v1040
        %v1042 = vpop.xlane.xlu0 %1041
        %v1043 = vcvt.f32.s32 %v1042
        %v1044 = vcvt.f32.s32 %v1038
        %v1045 = vshll.u32 %v1044, 16
        %v1046 = vadd.s32 %v1045, %v1043
        %vm1047 = vcmp.eq.s32.totalorder %v410, %v1001
        %vm1048 = vcmp.eq.s32.totalorder %v410, %v1016
        %vm1049 = vcmp.eq.s32.totalorder %v410, %v1031
        %vm1050 = vcmp.eq.s32.totalorder %v410, %v1046
        %v1051 = vsel %vm1047, %v623, 0.0
        %v1052 = vsel %vm1048, %v624, 0.0
        %v1053 = vsel %vm1049, %v625, 0.0
        %v1054 = vsel %vm1050, %v626, 0.0
        %v1055 = vsel %vm627, %v1051, 0.0
        %1056 = vadd.xlane.f32.xlu0 %v1055
        %v1057 = vpop.xlane.xlu0 %1056
        %v1058 = vsel %vm627, %v1052, 0.0
        %1059 = vadd.xlane.f32.xlu0 %v1058
        %v1060 = vpop.xlane.xlu0 %1059
        %v1061 = vsel %vm627, %v1053, 0.0
        %1062 = vadd.xlane.f32.xlu0 %v1061
        %v1063 = vpop.xlane.xlu0 %1062
        %v1064 = vsel %vm627, %v1054, 0.0
        %1065 = vadd.xlane.f32.xlu0 %v1064
        %v1066 = vpop.xlane.xlu0 %1065
        %v1067 = vsel %vm1047, -1e+30, %v954
        %v1068 = vsel %vm1048, -1e+30, %v955
        %v1069 = vsel %vm1049, -1e+30, %v956
        %v1070 = vsel %vm1050, -1e+30, %v957
        %vm1071 = vcmp.eq.s32.totalorder %v410, 3
        %v1072 = vsel %vm1071, %v1001, %v959
        %v1073 = vsel %vm1071, %v1016, %v960
        %v1074 = vsel %vm1071, %v1031, %v961
        %v1075 = vsel %vm1071, %v1046, %v962
        %v1076 = vsel %vm1071, %v1057, %v963
        %v1077 = vsel %vm1071, %v1060, %v964
        %v1078 = vsel %vm1071, %v1063, %v965
        %v1079 = vsel %vm1071, %v1066, %v966
        %v1080 = vsel %vm627, %v1067, -inf
        %1081 = vmax.xlane.f32.xlu0 %v1080
        %v1082 = vpop.xlane.xlu0 %1081
        %v1083 = vsel %vm627, %v1068, -inf
        %1084 = vmax.xlane.f32.xlu0 %v1083
        %v1085 = vpop.xlane.xlu0 %1084
        %v1086 = vsel %vm627, %v1069, -inf
        %1087 = vmax.xlane.f32.xlu0 %v1086
        %v1088 = vpop.xlane.xlu0 %1087
        %v1089 = vsel %vm627, %v1070, -inf
        %1090 = vmax.xlane.f32.xlu0 %v1089
        %v1091 = vpop.xlane.xlu0 %1090
        %vm1092 = vcmp.eq.f32.partialorder %v1067, %v1082
        %vm1093 = vcmp.eq.f32.partialorder %v1068, %v1085
        %vm1094 = vcmp.eq.f32.partialorder %v1069, %v1088
        %vm1095 = vcmp.eq.f32.partialorder %v1070, %v1091
        %v1096 = vsel %vm1092, %v410, 64
        %v1097 = vsel %vm1093, %v410, 64
        %v1098 = vsel %vm1094, %v410, 64
        %v1099 = vsel %vm1095, %v410, 64
        %v1100 = vsel %vm627, %v1096, 2147483647
        %v1101 = vand.u32 %v1100, 65535
        %v1102 = vshra.s32 %v1100, 16
        %v1103 = vcvt.s32.f32 %v1101
        %v1104 = vcvt.s32.f32 %v1102
        %1105 = vmin.xlane.f32.xlu0 %v1104
        %v1106 = vpop.xlane.xlu0 %1105
        %vm1107 = vcmp.eq.f32.partialorder %v1104, %v1106
        %v1108 = vsel %vm1107, %v1103, inf
        %1109 = vmin.xlane.f32.xlu0 %v1108
        %v1110 = vpop.xlane.xlu0 %1109
        %v1111 = vcvt.f32.s32 %v1110
        %v1112 = vcvt.f32.s32 %v1106
        %v1113 = vshll.u32 %v1112, 16
        %v1114 = vadd.s32 %v1113, %v1111
        %v1115 = vsel %vm627, %v1097, 2147483647
        %v1116 = vand.u32 %v1115, 65535
        %v1117 = vshra.s32 %v1115, 16
        %v1118 = vcvt.s32.f32 %v1116
        %v1119 = vcvt.s32.f32 %v1117
        %1120 = vmin.xlane.f32.xlu0 %v1119
        %v1121 = vpop.xlane.xlu0 %1120
        %vm1122 = vcmp.eq.f32.partialorder %v1119, %v1121
        %v1123 = vsel %vm1122, %v1118, inf
        %1124 = vmin.xlane.f32.xlu0 %v1123
        %v1125 = vpop.xlane.xlu0 %1124
        %v1126 = vcvt.f32.s32 %v1125
        %v1127 = vcvt.f32.s32 %v1121
        %v1128 = vshll.u32 %v1127, 16
        %v1129 = vadd.s32 %v1128, %v1126
        %v1130 = vsel %vm627, %v1098, 2147483647
        %v1131 = vand.u32 %v1130, 65535
        %v1132 = vshra.s32 %v1130, 16
        %v1133 = vcvt.s32.f32 %v1131
        %v1134 = vcvt.s32.f32 %v1132
        %1135 = vmin.xlane.f32.xlu0 %v1134
        %v1136 = vpop.xlane.xlu0 %1135
        %vm1137 = vcmp.eq.f32.partialorder %v1134, %v1136
        %v1138 = vsel %vm1137, %v1133, inf
        %1139 = vmin.xlane.f32.xlu0 %v1138
        %v1140 = vpop.xlane.xlu0 %1139
        %v1141 = vcvt.f32.s32 %v1140
        %v1142 = vcvt.f32.s32 %v1136
        %v1143 = vshll.u32 %v1142, 16
        %v1144 = vadd.s32 %v1143, %v1141
        %v1145 = vsel %vm627, %v1099, 2147483647
        %v1146 = vand.u32 %v1145, 65535
        %v1147 = vshra.s32 %v1145, 16
        %v1148 = vcvt.s32.f32 %v1146
        %v1149 = vcvt.s32.f32 %v1147
        %1150 = vmin.xlane.f32.xlu0 %v1149
        %v1151 = vpop.xlane.xlu0 %1150
        %vm1152 = vcmp.eq.f32.partialorder %v1149, %v1151
        %v1153 = vsel %vm1152, %v1148, inf
        %1154 = vmin.xlane.f32.xlu0 %v1153
        %v1155 = vpop.xlane.xlu0 %1154
        %v1156 = vcvt.f32.s32 %v1155
        %v1157 = vcvt.f32.s32 %v1151
        %v1158 = vshll.u32 %v1157, 16
        %v1159 = vadd.s32 %v1158, %v1156
        %vm1160 = vcmp.eq.s32.totalorder %v410, %v1114
        %vm1161 = vcmp.eq.s32.totalorder %v410, %v1129
        %vm1162 = vcmp.eq.s32.totalorder %v410, %v1144
        %vm1163 = vcmp.eq.s32.totalorder %v410, %v1159
        %v1164 = vsel %vm1160, %v623, 0.0
        %v1165 = vsel %vm1161, %v624, 0.0
        %v1166 = vsel %vm1162, %v625, 0.0
        %v1167 = vsel %vm1163, %v626, 0.0
        %v1168 = vsel %vm627, %v1164, 0.0
        %1169 = vadd.xlane.f32.xlu0 %v1168
        %v1170 = vpop.xlane.xlu0 %1169
        %v1171 = vsel %vm627, %v1165, 0.0
        %1172 = vadd.xlane.f32.xlu0 %v1171
        %v1173 = vpop.xlane.xlu0 %1172
        %v1174 = vsel %vm627, %v1166, 0.0
        %1175 = vadd.xlane.f32.xlu0 %v1174
        %v1176 = vpop.xlane.xlu0 %1175
        %v1177 = vsel %vm627, %v1167, 0.0
        %1178 = vadd.xlane.f32.xlu0 %v1177
        %v1179 = vpop.xlane.xlu0 %1178
        %v1180 = vsel %vm1160, -1e+30, %v1067
        %v1181 = vsel %vm1161, -1e+30, %v1068
        %v1182 = vsel %vm1162, -1e+30, %v1069
        %v1183 = vsel %vm1163, -1e+30, %v1070
        %vm1184 = vcmp.eq.s32.totalorder %v410, 4
        %v1185 = vsel %vm1184, %v1114, %v1072
        %v1186 = vsel %vm1184, %v1129, %v1073
        %v1187 = vsel %vm1184, %v1144, %v1074
        %v1188 = vsel %vm1184, %v1159, %v1075
        %v1189 = vsel %vm1184, %v1170, %v1076
        %v1190 = vsel %vm1184, %v1173, %v1077
        %v1191 = vsel %vm1184, %v1176, %v1078
        %v1192 = vsel %vm1184, %v1179, %v1079
        %v1193 = vsel %vm627, %v1180, -inf
        %1194 = vmax.xlane.f32.xlu0 %v1193
        %v1195 = vpop.xlane.xlu0 %1194
        %v1196 = vsel %vm627, %v1181, -inf
        %1197 = vmax.xlane.f32.xlu0 %v1196
        %v1198 = vpop.xlane.xlu0 %1197
        %v1199 = vsel %vm627, %v1182, -inf
        %1200 = vmax.xlane.f32.xlu0 %v1199
        %v1201 = vpop.xlane.xlu0 %1200
        %v1202 = vsel %vm627, %v1183, -inf
        %1203 = vmax.xlane.f32.xlu0 %v1202
        %v1204 = vpop.xlane.xlu0 %1203
        %vm1205 = vcmp.eq.f32.partialorder %v1180, %v1195
        %vm1206 = vcmp.eq.f32.partialorder %v1181, %v1198
        %vm1207 = vcmp.eq.f32.partialorder %v1182, %v1201
        %vm1208 = vcmp.eq.f32.partialorder %v1183, %v1204
        %v1209 = vsel %vm1205, %v410, 64
        %v1210 = vsel %vm1206, %v410, 64
        %v1211 = vsel %vm1207, %v410, 64
        %v1212 = vsel %vm1208, %v410, 64
        %v1213 = vsel %vm627, %v1209, 2147483647
        %v1214 = vand.u32 %v1213, 65535
        %v1215 = vshra.s32 %v1213, 16
        %v1216 = vcvt.s32.f32 %v1214
        %v1217 = vcvt.s32.f32 %v1215
        %1218 = vmin.xlane.f32.xlu0 %v1217
        %v1219 = vpop.xlane.xlu0 %1218
        %vm1220 = vcmp.eq.f32.partialorder %v1217, %v1219
        %v1221 = vsel %vm1220, %v1216, inf
        %1222 = vmin.xlane.f32.xlu0 %v1221
        %v1223 = vpop.xlane.xlu0 %1222
        %v1224 = vcvt.f32.s32 %v1223
        %v1225 = vcvt.f32.s32 %v1219
        %v1226 = vshll.u32 %v1225, 16
        %v1227 = vadd.s32 %v1226, %v1224
        %v1228 = vsel %vm627, %v1210, 2147483647
        %v1229 = vand.u32 %v1228, 65535
        %v1230 = vshra.s32 %v1228, 16
        %v1231 = vcvt.s32.f32 %v1229
        %v1232 = vcvt.s32.f32 %v1230
        %1233 = vmin.xlane.f32.xlu0 %v1232
        %v1234 = vpop.xlane.xlu0 %1233
        %vm1235 = vcmp.eq.f32.partialorder %v1232, %v1234
        %v1236 = vsel %vm1235, %v1231, inf
        %1237 = vmin.xlane.f32.xlu0 %v1236
        %v1238 = vpop.xlane.xlu0 %1237
        %v1239 = vcvt.f32.s32 %v1238
        %v1240 = vcvt.f32.s32 %v1234
        %v1241 = vshll.u32 %v1240, 16
        %v1242 = vadd.s32 %v1241, %v1239
        %v1243 = vsel %vm627, %v1211, 2147483647
        %v1244 = vand.u32 %v1243, 65535
        %v1245 = vshra.s32 %v1243, 16
        %v1246 = vcvt.s32.f32 %v1244
        %v1247 = vcvt.s32.f32 %v1245
        %1248 = vmin.xlane.f32.xlu0 %v1247
        %v1249 = vpop.xlane.xlu0 %1248
        %vm1250 = vcmp.eq.f32.partialorder %v1247, %v1249
        %v1251 = vsel %vm1250, %v1246, inf
        %1252 = vmin.xlane.f32.xlu0 %v1251
        %v1253 = vpop.xlane.xlu0 %1252
        %v1254 = vcvt.f32.s32 %v1253
        %v1255 = vcvt.f32.s32 %v1249
        %v1256 = vshll.u32 %v1255, 16
        %v1257 = vadd.s32 %v1256, %v1254
        %v1258 = vsel %vm627, %v1212, 2147483647
        %v1259 = vand.u32 %v1258, 65535
        %v1260 = vshra.s32 %v1258, 16
        %v1261 = vcvt.s32.f32 %v1259
        %v1262 = vcvt.s32.f32 %v1260
        %1263 = vmin.xlane.f32.xlu0 %v1262
        %v1264 = vpop.xlane.xlu0 %1263
        %vm1265 = vcmp.eq.f32.partialorder %v1262, %v1264
        %v1266 = vsel %vm1265, %v1261, inf
        %1267 = vmin.xlane.f32.xlu0 %v1266
        %v1268 = vpop.xlane.xlu0 %1267
        %v1269 = vcvt.f32.s32 %v1268
        %v1270 = vcvt.f32.s32 %v1264
        %v1271 = vshll.u32 %v1270, 16
        %v1272 = vadd.s32 %v1271, %v1269
        %vm1273 = vcmp.eq.s32.totalorder %v410, %v1227
        %vm1274 = vcmp.eq.s32.totalorder %v410, %v1242
        %vm1275 = vcmp.eq.s32.totalorder %v410, %v1257
        %vm1276 = vcmp.eq.s32.totalorder %v410, %v1272
        %v1277 = vsel %vm1273, %v623, 0.0
        %v1278 = vsel %vm1274, %v624, 0.0
        %v1279 = vsel %vm1275, %v625, 0.0
        %v1280 = vsel %vm1276, %v626, 0.0
        %v1281 = vsel %vm627, %v1277, 0.0
        %1282 = vadd.xlane.f32.xlu0 %v1281
        %v1283 = vpop.xlane.xlu0 %1282
        %v1284 = vsel %vm627, %v1278, 0.0
        %1285 = vadd.xlane.f32.xlu0 %v1284
        %v1286 = vpop.xlane.xlu0 %1285
        %v1287 = vsel %vm627, %v1279, 0.0
        %1288 = vadd.xlane.f32.xlu0 %v1287
        %v1289 = vpop.xlane.xlu0 %1288
        %v1290 = vsel %vm627, %v1280, 0.0
        %1291 = vadd.xlane.f32.xlu0 %v1290
        %v1292 = vpop.xlane.xlu0 %1291
        %v1293 = vsel %vm1273, -1e+30, %v1180
        %v1294 = vsel %vm1274, -1e+30, %v1181
        %v1295 = vsel %vm1275, -1e+30, %v1182
        %v1296 = vsel %vm1276, -1e+30, %v1183
        %vm1297 = vcmp.eq.s32.totalorder %v410, 5
        %v1298 = vsel %vm1297, %v1227, %v1185
        %v1299 = vsel %vm1297, %v1242, %v1186
        %v1300 = vsel %vm1297, %v1257, %v1187
        %v1301 = vsel %vm1297, %v1272, %v1188
        %v1302 = vsel %vm1297, %v1283, %v1189
        %v1303 = vsel %vm1297, %v1286, %v1190
        %v1304 = vsel %vm1297, %v1289, %v1191
        %v1305 = vsel %vm1297, %v1292, %v1192
        %v1306 = vsel %vm627, %v1293, -inf
        %1307 = vmax.xlane.f32.xlu0 %v1306
        %v1308 = vpop.xlane.xlu0 %1307
        %v1309 = vsel %vm627, %v1294, -inf
        %1310 = vmax.xlane.f32.xlu0 %v1309
        %v1311 = vpop.xlane.xlu0 %1310
        %v1312 = vsel %vm627, %v1295, -inf
        %1313 = vmax.xlane.f32.xlu0 %v1312
        %v1314 = vpop.xlane.xlu0 %1313
        %v1315 = vsel %vm627, %v1296, -inf
        %1316 = vmax.xlane.f32.xlu0 %v1315
        %v1317 = vpop.xlane.xlu0 %1316
        %vm1318 = vcmp.eq.f32.partialorder %v1293, %v1308
        %vm1319 = vcmp.eq.f32.partialorder %v1294, %v1311
        %vm1320 = vcmp.eq.f32.partialorder %v1295, %v1314
        %vm1321 = vcmp.eq.f32.partialorder %v1296, %v1317
        %v1322 = vsel %vm1318, %v410, 64
        %v1323 = vsel %vm1319, %v410, 64
        %v1324 = vsel %vm1320, %v410, 64
        %v1325 = vsel %vm1321, %v410, 64
        %v1326 = vsel %vm627, %v1322, 2147483647
        %v1327 = vand.u32 %v1326, 65535
        %v1328 = vshra.s32 %v1326, 16
        %v1329 = vcvt.s32.f32 %v1327
        %v1330 = vcvt.s32.f32 %v1328
        %1331 = vmin.xlane.f32.xlu0 %v1330
        %v1332 = vpop.xlane.xlu0 %1331
        %vm1333 = vcmp.eq.f32.partialorder %v1330, %v1332
        %v1334 = vsel %vm1333, %v1329, inf
        %1335 = vmin.xlane.f32.xlu0 %v1334
        %v1336 = vpop.xlane.xlu0 %1335
        %v1337 = vcvt.f32.s32 %v1336
        %v1338 = vcvt.f32.s32 %v1332
        %v1339 = vshll.u32 %v1338, 16
        %v1340 = vadd.s32 %v1339, %v1337
        %v1341 = vsel %vm627, %v1323, 2147483647
        %v1342 = vand.u32 %v1341, 65535
        %v1343 = vshra.s32 %v1341, 16
        %v1344 = vcvt.s32.f32 %v1342
        %v1345 = vcvt.s32.f32 %v1343
        %1346 = vmin.xlane.f32.xlu0 %v1345
        %v1347 = vpop.xlane.xlu0 %1346
        %vm1348 = vcmp.eq.f32.partialorder %v1345, %v1347
        %v1349 = vsel %vm1348, %v1344, inf
        %1350 = vmin.xlane.f32.xlu0 %v1349
        %v1351 = vpop.xlane.xlu0 %1350
        %v1352 = vcvt.f32.s32 %v1351
        %v1353 = vcvt.f32.s32 %v1347
        %v1354 = vshll.u32 %v1353, 16
        %v1355 = vadd.s32 %v1354, %v1352
        %v1356 = vsel %vm627, %v1324, 2147483647
        %v1357 = vand.u32 %v1356, 65535
        %v1358 = vshra.s32 %v1356, 16
        %v1359 = vcvt.s32.f32 %v1357
        %v1360 = vcvt.s32.f32 %v1358
        %1361 = vmin.xlane.f32.xlu0 %v1360
        %v1362 = vpop.xlane.xlu0 %1361
        %vm1363 = vcmp.eq.f32.partialorder %v1360, %v1362
        %v1364 = vsel %vm1363, %v1359, inf
        %1365 = vmin.xlane.f32.xlu0 %v1364
        %v1366 = vpop.xlane.xlu0 %1365
        %v1367 = vcvt.f32.s32 %v1366
        %v1368 = vcvt.f32.s32 %v1362
        %v1369 = vshll.u32 %v1368, 16
        %v1370 = vadd.s32 %v1369, %v1367
        %v1371 = vsel %vm627, %v1325, 2147483647
        %v1372 = vand.u32 %v1371, 65535
        %v1373 = vshra.s32 %v1371, 16
        %v1374 = vcvt.s32.f32 %v1372
        %v1375 = vcvt.s32.f32 %v1373
        %1376 = vmin.xlane.f32.xlu0 %v1375
        %v1377 = vpop.xlane.xlu0 %1376
        %vm1378 = vcmp.eq.f32.partialorder %v1375, %v1377
        %v1379 = vsel %vm1378, %v1374, inf
        %1380 = vmin.xlane.f32.xlu0 %v1379
        %v1381 = vpop.xlane.xlu0 %1380
        %v1382 = vcvt.f32.s32 %v1381
        %v1383 = vcvt.f32.s32 %v1377
        %v1384 = vshll.u32 %v1383, 16
        %v1385 = vadd.s32 %v1384, %v1382
        %vm1386 = vcmp.eq.s32.totalorder %v410, %v1340
        %vm1387 = vcmp.eq.s32.totalorder %v410, %v1355
        %vm1388 = vcmp.eq.s32.totalorder %v410, %v1370
        %vm1389 = vcmp.eq.s32.totalorder %v410, %v1385
        %v1390 = vsel %vm1386, %v623, 0.0
        %v1391 = vsel %vm1387, %v624, 0.0
        %v1392 = vsel %vm1388, %v625, 0.0
        %v1393 = vsel %vm1389, %v626, 0.0
        %v1394 = vsel %vm627, %v1390, 0.0
        %1395 = vadd.xlane.f32.xlu0 %v1394
        %v1396 = vpop.xlane.xlu0 %1395
        %v1397 = vsel %vm627, %v1391, 0.0
        %1398 = vadd.xlane.f32.xlu0 %v1397
        %v1399 = vpop.xlane.xlu0 %1398
        %v1400 = vsel %vm627, %v1392, 0.0
        %1401 = vadd.xlane.f32.xlu0 %v1400
        %v1402 = vpop.xlane.xlu0 %1401
        %v1403 = vsel %vm627, %v1393, 0.0
        %1404 = vadd.xlane.f32.xlu0 %v1403
        %v1405 = vpop.xlane.xlu0 %1404
        %v1406 = vsel %vm1386, -1e+30, %v1293
        %v1407 = vsel %vm1387, -1e+30, %v1294
        %v1408 = vsel %vm1388, -1e+30, %v1295
        %v1409 = vsel %vm1389, -1e+30, %v1296
        %vm1410 = vcmp.eq.s32.totalorder %v410, 6
        %v1411 = vsel %vm1410, %v1340, %v1298
        %v1412 = vsel %vm1410, %v1355, %v1299
        %v1413 = vsel %vm1410, %v1370, %v1300
        %v1414 = vsel %vm1410, %v1385, %v1301
        %v1415 = vsel %vm1410, %v1396, %v1302
        %v1416 = vsel %vm1410, %v1399, %v1303
        %v1417 = vsel %vm1410, %v1402, %v1304
        %v1418 = vsel %vm1410, %v1405, %v1305
        %v1419 = vsel %vm627, %v1406, -inf
        %1420 = vmax.xlane.f32.xlu0 %v1419
        %v1421 = vpop.xlane.xlu0 %1420
        %v1422 = vsel %vm627, %v1407, -inf
        %1423 = vmax.xlane.f32.xlu0 %v1422
        %v1424 = vpop.xlane.xlu0 %1423
        %v1425 = vsel %vm627, %v1408, -inf
        %1426 = vmax.xlane.f32.xlu0 %v1425
        %v1427 = vpop.xlane.xlu0 %1426
        %v1428 = vsel %vm627, %v1409, -inf
        %1429 = vmax.xlane.f32.xlu0 %v1428
        %v1430 = vpop.xlane.xlu0 %1429
        %vm1431 = vcmp.eq.f32.partialorder %v1406, %v1421
        %vm1432 = vcmp.eq.f32.partialorder %v1407, %v1424
        %vm1433 = vcmp.eq.f32.partialorder %v1408, %v1427
        %vm1434 = vcmp.eq.f32.partialorder %v1409, %v1430
        %v1435 = vsel %vm1431, %v410, 64
        %v1436 = vsel %vm1432, %v410, 64
        %v1437 = vsel %vm1433, %v410, 64
        %v1438 = vsel %vm1434, %v410, 64
        %v1439 = vsel %vm627, %v1435, 2147483647
        %v1440 = vand.u32 %v1439, 65535
        %v1441 = vshra.s32 %v1439, 16
        %v1442 = vcvt.s32.f32 %v1440
        %v1443 = vcvt.s32.f32 %v1441
        %1444 = vmin.xlane.f32.xlu0 %v1443
        %v1445 = vpop.xlane.xlu0 %1444
        %vm1446 = vcmp.eq.f32.partialorder %v1443, %v1445
        %v1447 = vsel %vm1446, %v1442, inf
        %1448 = vmin.xlane.f32.xlu0 %v1447
        %v1449 = vpop.xlane.xlu0 %1448
        %v1450 = vcvt.f32.s32 %v1449
        %v1451 = vcvt.f32.s32 %v1445
        %v1452 = vshll.u32 %v1451, 16
        %v1453 = vadd.s32 %v1452, %v1450
        %v1454 = vsel %vm627, %v1436, 2147483647
        %v1455 = vand.u32 %v1454, 65535
        %v1456 = vshra.s32 %v1454, 16
        %v1457 = vcvt.s32.f32 %v1455
        %v1458 = vcvt.s32.f32 %v1456
        %1459 = vmin.xlane.f32.xlu0 %v1458
        %v1460 = vpop.xlane.xlu0 %1459
        %vm1461 = vcmp.eq.f32.partialorder %v1458, %v1460
        %v1462 = vsel %vm1461, %v1457, inf
        %1463 = vmin.xlane.f32.xlu0 %v1462
        %v1464 = vpop.xlane.xlu0 %1463
        %v1465 = vcvt.f32.s32 %v1464
        %v1466 = vcvt.f32.s32 %v1460
        %v1467 = vshll.u32 %v1466, 16
        %v1468 = vadd.s32 %v1467, %v1465
        %v1469 = vsel %vm627, %v1437, 2147483647
        %v1470 = vand.u32 %v1469, 65535
        %v1471 = vshra.s32 %v1469, 16
        %v1472 = vcvt.s32.f32 %v1470
        %v1473 = vcvt.s32.f32 %v1471
        %1474 = vmin.xlane.f32.xlu0 %v1473
        %v1475 = vpop.xlane.xlu0 %1474
        %vm1476 = vcmp.eq.f32.partialorder %v1473, %v1475
        %v1477 = vsel %vm1476, %v1472, inf
        %1478 = vmin.xlane.f32.xlu0 %v1477
        %v1479 = vpop.xlane.xlu0 %1478
        %v1480 = vcvt.f32.s32 %v1479
        %v1481 = vcvt.f32.s32 %v1475
        %v1482 = vshll.u32 %v1481, 16
        %v1483 = vadd.s32 %v1482, %v1480
        %v1484 = vsel %vm627, %v1438, 2147483647
        %v1485 = vand.u32 %v1484, 65535
        %v1486 = vshra.s32 %v1484, 16
        %v1487 = vcvt.s32.f32 %v1485
        %v1488 = vcvt.s32.f32 %v1486
        %1489 = vmin.xlane.f32.xlu0 %v1488
        %v1490 = vpop.xlane.xlu0 %1489
        %vm1491 = vcmp.eq.f32.partialorder %v1488, %v1490
        %v1492 = vsel %vm1491, %v1487, inf
        %1493 = vmin.xlane.f32.xlu0 %v1492
        %v1494 = vpop.xlane.xlu0 %1493
        %v1495 = vcvt.f32.s32 %v1494
        %v1496 = vcvt.f32.s32 %v1490
        %v1497 = vshll.u32 %v1496, 16
        %v1498 = vadd.s32 %v1497, %v1495
        %vm1499 = vcmp.eq.s32.totalorder %v410, %v1453
        %vm1500 = vcmp.eq.s32.totalorder %v410, %v1468
        %vm1501 = vcmp.eq.s32.totalorder %v410, %v1483
        %vm1502 = vcmp.eq.s32.totalorder %v410, %v1498
        %v1503 = vsel %vm1499, %v623, 0.0
        %v1504 = vsel %vm1500, %v624, 0.0
        %v1505 = vsel %vm1501, %v625, 0.0
        %v1506 = vsel %vm1502, %v626, 0.0
        %v1507 = vsel %vm627, %v1503, 0.0
        %1508 = vadd.xlane.f32.xlu0 %v1507
        %v1509 = vpop.xlane.xlu0 %1508
        %v1510 = vsel %vm627, %v1504, 0.0
        %1511 = vadd.xlane.f32.xlu0 %v1510
        %v1512 = vpop.xlane.xlu0 %1511
        %v1513 = vsel %vm627, %v1505, 0.0
        %1514 = vadd.xlane.f32.xlu0 %v1513
        %v1515 = vpop.xlane.xlu0 %1514
        %v1516 = vsel %vm627, %v1506, 0.0
        %1517 = vadd.xlane.f32.xlu0 %v1516
        %v1518 = vpop.xlane.xlu0 %1517
        %vm1519 = vcmp.eq.s32.totalorder %v410, 7
        %v1520 = vsel %vm1519, %v1453, %v1411
        %v1521 = vsel %vm1519, %v1468, %v1412
        %v1522 = vsel %vm1519, %v1483, %v1413
        %v1523 = vsel %vm1519, %v1498, %v1414
        %v1524 = vsel %vm1519, %v1509, %v1415
        %v1525 = vsel %vm1519, %v1512, %v1416
        %v1526 = vsel %vm1519, %v1515, %v1417
        %v1527 = vsel %vm1519, %v1518, %v1418
        %1528 = vst [vmem:[%s376] sm:$0xff] %v1520
        %1529 = vst [vmem:[%s376 + $0x8] sm:$0xff] %v1521
        %1530 = vst [vmem:[%s376 + $0x10] sm:$0xff] %v1522
        %1531 = vst [vmem:[%s376 + $0x18] sm:$0xff] %v1523
        %1532 = vst [vmem:[%s383] sm:$0xff] %v1524
        %1533 = vst [vmem:[%s383 + $0x8] sm:$0xff] %v1525
        %1534 = vst [vmem:[%s383 + $0x10] sm:$0xff] %v1526
        %1535 = vst [vmem:[%s383 + $0x18] sm:$0xff] %v1527
        %s1536 = sand.u32 %s156, 1
        %s1537 = scalar_lea.sflag [#allocation4], %s1536
        %s1538 = sand.u32 %s156, 1
        %s1539 = smul.addr %s1538, 32
        %s1540 = scalar_lea.vmem [#allocation10], %s1539
        %s1541 = sand.u32 %s182, 1
        %s1542 = scalar_lea.sflag [#allocation12], %s1541
        %s1543 = sand.u32 %s182, 1
        %s1544 = smul.addr %s1543, 32
        %s1545 = scalar_lea.vmem [#allocation11], %s1544
        // Predicated region
        $region61: #{tpu_custom_call.1} parent=39 // pred_check
          %p1546 = pneg %p166
        $region62: #{tpu_custom_call.1} parent=39 // pred_check_branch
          %1548 = sbr.rel (%p1546) target = $region64
        $region63: #{tpu_custom_call.1} parent=39 // pred_region
          %s1549 = smul.u32 4, %s28
          %s1551 = ssub.s32 512, 512
          %1552 = vsyncadd %s1537, %s1551
          %s1553 = smul.addr %s1549, 128
          %s1554 = scalar_lea.hbm %s5, %s1553
          %s1555 = sshll.u32 %s1540, 4
          %s1556 = int_to_ptr.vmem [resolvable:$true] %s1555
          %1561 = dma.vmem_to_hbm [thread:$0]  %s1556, 512, %s1554, %s1537, 128, 128, 8
        $region64: #{tpu_custom_call.1} parent=39 // pred_fallthru
          _
        // Predicated region
        $region65: #{tpu_custom_call.1} parent=39 // pred_check
          %p1562 = pneg %p192
        $region66: #{tpu_custom_call.1} parent=39 // pred_check_branch
          %1564 = sbr.rel (%p1562) target = $region68
        $region67: #{tpu_custom_call.1} parent=39 // pred_region
          %s1565 = smul.u32 4, %s28
          %s1567 = ssub.s32 512, 512
          %1568 = vsyncadd %s1542, %s1567
          %s1569 = smul.addr %s1565, 128
          %s1570 = scalar_lea.hbm %s6, %s1569
          %s1571 = sshll.u32 %s1545, 4
          %s1572 = int_to_ptr.vmem [resolvable:$true] %s1571
          %1577 = dma.vmem_to_hbm [thread:$0]  %s1572, 512, %s1570, %s1542, 128, 128, 8
        $region68: #{tpu_custom_call.1} parent=39 // pred_fallthru
          _
      $region40: #{tpu_custom_call.1} parent=5 // pred_fallthru
        _
      %p1578 = scmp.le.s32.totalorder 2, %s23
      // Predicated region
      $region69: #{tpu_custom_call.1} parent=5 // pred_check
        %p1579 = pneg %p1578
      $region70: #{tpu_custom_call.1} parent=5 // pred_check_branch
        %1581 = sbr.rel (%p1579) target = $region72
      $region71: #{tpu_custom_call.1} parent=5 // pred_region
        %s1582 = ssub.s32 %s23, 2
        // Predicated region
        $region73: #{tpu_custom_call.1} parent=71 // pred_check
          %p1583 = pneg %p172
        $region74: #{tpu_custom_call.1} parent=71 // pred_check_branch
          %1585 = sbr.rel (%p1583) target = $region76
        $region75: #{tpu_custom_call.1} parent=71 // pred_region
          %s1586 = sand.u32 %s157, 1
          %s1587 = scalar_lea.sflag [#allocation4], %s1586
          %s1588 = sand.u32 %s157, 1
          %s1589 = smul.addr %s1588, 32
          %s1590 = scalar_lea.vmem [#allocation10], %s1589
          %1591 = dma.done %s1587, 512
        $region76: #{tpu_custom_call.1} parent=71 // pred_fallthru
          _
        // Predicated region
        $region77: #{tpu_custom_call.1} parent=71 // pred_check
          %p1592 = pneg %p198
        $region78: #{tpu_custom_call.1} parent=71 // pred_check_branch
          %1594 = sbr.rel (%p1592) target = $region80
        $region79: #{tpu_custom_call.1} parent=71 // pred_region
          %s1595 = sand.u32 %s183, 1
          %s1596 = scalar_lea.sflag [#allocation12], %s1595
          %s1597 = sand.u32 %s183, 1
          %s1598 = smul.addr %s1597, 32
          %s1599 = scalar_lea.vmem [#allocation11], %s1598
          %1600 = dma.done %s1596, 512
        $region80: #{tpu_custom_call.1} parent=71 // pred_fallthru
          _
      $region72: #{tpu_custom_call.1} parent=5 // pred_fallthru
        _
    $region6: #{tpu_custom_call.1} parent=1 // loop_footer
      %s27 = sadd.s32 1, %s23
    $region7: #{tpu_custom_call.1} parent=1 // loop_footer_branch
      %22 = sbr.rel target = $region3
    $region8: #{tpu_custom_call.1} parent=1 // loop_exit
      _
    %1601 = vsyncpa [#allocation3], 1
    %s1602 = scalar_lea.sflag [#allocation3], 1
    %1603 = vsyncpa %s1602, 1
    %1604 = vsyncpa [#allocation6], 1
    %1605 = vsyncpa [#allocation4], 1
    %s1606 = scalar_lea.sflag [#allocation4], 1
    %1607 = vsyncpa %s1606, 1
    %1608 = vsyncpa [#allocation12], 1
    %s1609 = scalar_lea.sflag [#allocation12], 1
    %1610 = vsyncpa %s1609, 1

</llo_original>
